<compile_context>
chip_gen: v6e
topology: v6e:2x2x1
jax: 0.10.0
libtpu: 0.0.40
codegen_flags: <defaults>
</compile_context>

<pallas_src>
import functools

import jax
import jax.numpy as jnp
from jax import lax
from jax.experimental import pallas as pl
from jax.experimental.pallas import tpu as pltpu

_BN_EPS = 1e-5
_INV_SQRT2 = 0.7071067811865476


def _gelu_exact(x):
    # PyTorch nn.GELU() default: exact erf formulation (f32).
    return 0.5 * x * (1.0 + lax.erf(x * _INV_SQRT2))


def _col_masks(out_rows, width, chans):
    """Per-output-position column masks for the wrap-around taps.

    Returns (keep_left, keep_right), each (out_rows*width, chans) bool:
      keep_left  is False where the output column is 0      (dx = -1 tap)
      keep_right is False where the output column is W - 1  (dx = +1 tap)
    Built from a 3-D iota + leading-dim merge (no vector int div/mod needed).
    """
    col = lax.broadcasted_iota(jnp.int32, (out_rows, width, chans), 1)
    col = col.reshape(out_rows * width, chans)
    return col != 0, col != (width - 1)


def _conv3x3_rows(a_ext, w_ref, out_rows, width, keep_l, keep_r):
    """3x3 'same' conv as 9 accumulating MXU matmuls on row-flattened data.

    a_ext : ((out_rows + 2) * width + 2, C) bf16 value.  Flat row r*width + c of
            the *unextended* array is pixel (r, c) of an (out_rows + 2)-row tile
            whose first/last rows are the (already correct or zero) vertical
            halo; a_ext has one zero flat-row prepended and appended.
    w_ref : (9, C, Cout) ref, tap-major (3*dy + dx).
    Returns (out_rows * width, Cout) f32.
    """
    n = out_rows * width
    acc = None
    for dy in range(3):
        for dx in range(3):
            lhs = a_ext[dy * width + dx: dy * width + dx + n, :]
            if dx == 0:
                lhs = jnp.where(keep_l, lhs, 0)    # no left neighbour at col 0
            elif dx == 2:
                lhs = jnp.where(keep_r, lhs, 0)    # no right neighbour at col W-1
            part = jnp.dot(lhs, w_ref[3 * dy + dx],
                           preferred_element_type=jnp.float32)
            acc = part if acc is None else acc + part
    return acc


# ---------------------------------------------------------------------------
# Pass 1: conv1 (+ bias) for this row block (+ 1-row halo) and BN moments.
# ---------------------------------------------------------------------------
def conv1_kernel(x_ref, w1_ref, b1_ref, h_ref, mom_ref, *, br, width):
    cin = x_ref.shape[-1]
    ch = w1_ref.shape[-1]
    rout = br + 2                                   # owned rows + 1-row halo

    xb = x_ref[0, 0]                                # ((br+4)*W, Cin) bf16
    zrow = jnp.zeros((1, cin), xb.dtype)
    x_ext = jnp.concatenate([zrow, xb, zrow], axis=0)

    keep_l, keep_r = _col_masks(rout, width, cin)
    acc = _conv3x3_rows(x_ext, w1_ref, rout, width, keep_l, keep_r)
    acc = acc + b1_ref[...]                         # (1, Ch) broadcast, f32

    # bf16 inter-pass activations (halves the HBM round trip).
    h_ref[...] = acc.astype(h_ref.dtype).reshape(1, 1, rout * width, ch)

    # BN moment partials over the rows this block OWNS (halo rows excluded, so
    # every image row is counted exactly once across the whole grid).
    owned = acc[width:(br + 1) * width, :]
    s = jnp.sum(owned, axis=0, keepdims=True)
    ss = jnp.sum(owned * owned, axis=0, keepdims=True)
    mom_ref[...] = jnp.concatenate([s, ss], axis=0).reshape(1, 1, 2, ch)


# ---------------------------------------------------------------------------
# Pass 2: BN affine + exact GELU + conv2 for this row block.
# ---------------------------------------------------------------------------
def conv2_kernel(h_ref, scale_ref, shift_ref, w2_ref, b2_ref, out_ref,
                 *, br, width, img_h):
    ch = h_ref.shape[-1]
    cout = w2_ref.shape[-1]
    rin = br + 2
    rb = pl.program_id(1)

    h = h_ref[0, 0].astype(jnp.float32)             # (rin*W, Ch)
    a = _gelu_exact(h * scale_ref[...] + shift_ref[...])
    # TODO(synk): drop_rate > 0 would apply a PRNG dropout mask here.

    # Rows outside the image act as conv2's zero padding: zero them *after*
    # BN+GELU (BN(0)/GELU(0) would otherwise leak a nonzero pad value).
    lrow = lax.broadcasted_iota(jnp.int32, (rin, width, ch), 0)
    lrow = lrow.reshape(rin * width, ch)
    grow = rb * br - 1 + lrow                       # global image row index
    a = jnp.where((grow >= 0) & (grow < img_h), a, 0.0)

    a = a.astype(jnp.bfloat16)
    zrow = jnp.zeros((1, ch), a.dtype)
    a_ext = jnp.concatenate([zrow, a, zrow], axis=0)

    keep_l, keep_r = _col_masks(br, width, ch)
    acc = _conv3x3_rows(a_ext, w2_ref, br, width, keep_l, keep_r)
    acc = acc + b2_ref[...]

    out_ref[...] = acc.reshape(1, 1, br * width, cout)


def _choose_block_rows(img_h, width, ch, cin):
    """Largest row block whose (roughly double-buffered) working set fits a
    conservative VMEM budget; keeps br*W >= 256 preferred so the MXU stays full."""
    budget = 8 * 1024 * 1024
    for br in (64, 32, 16, 8):
        if img_h % br == 0:
            need = 2 * 2 * ((br + 4) * width * cin + 2 * (br + 2) * width * ch)
            if need <= budget:
                return br
    return img_h


@functools.partial(jax.jit, static_argnames=("block_rows",))
def mlp_forward(x_nchw, w1, b1, w2, b2, gamma, beta, block_rows=None):
    # NCHW -> NHWC (channels on the lane axis inside the kernels).
    x = jnp.transpose(x_nchw, (0, 2, 3, 1))
    n, img_h, width, cin = x.shape
    ch = w1.shape[2]
    cout = w2.shape[2]

    br = block_rows if block_rows is not None else _choose_block_rows(
        img_h, width, ch, cin)
    if img_h % br != 0:
        raise ValueError(f"block_rows={br} must divide H={img_h}")
    nrb = img_h // br

    # bf16 MXU operands; weights kept tap-major (9, C, Cout).
    x_bf16 = x.astype(jnp.bfloat16)
    # Overlapping row windows (stride br, size br+4) of the H-zero-padded input:
    # cheap one-shot XLA marshalling on the *small* tensor so the kernels need
    # no halo DMAs and no pad scratch.
    x_pad = jnp.pad(x_bf16, ((0, 0), (2, 2), (0, 0), (0, 0)))
    row_idx = (jnp.arange(nrb) * br)[:, None] + jnp.arange(br + 4)[None, :]
    x_blocks = x_pad[:, row_idx].reshape(n, nrb, (br + 4) * width, cin)

    w1s = w1.astype(jnp.bfloat16)                   # (9, Cin, Ch)
    w2s = w2.astype(jnp.bfloat16)                   # (9, Ch, Cout)
    b1r = b1.reshape(1, ch).astype(jnp.float32)
    b2r = b2.reshape(1, cout).astype(jnp.float32)

    # TODO(synk): set vmem_limit_bytes from pltpu.get_tpu_info() per generation.
    cparams = pltpu.CompilerParams(
        dimension_semantics=("parallel", "parallel"))

    # ---- pass 1: conv1 + BN moment partials (grid over batch x row-blocks) ---
    kern1 = functools.partial(conv1_kernel, br=br, width=width)
    h_blocks, mom = pl.pallas_call(
        kern1,
        grid=(n, nrb),
        in_specs=[
            pl.BlockSpec((1, 1, (br + 4) * width, cin), lambda i, r: (i, r, 0, 0)),
            pl.BlockSpec((9, cin, ch), lambda i, r: (0, 0, 0)),
            pl.BlockSpec((1, ch), lambda i, r: (0, 0)),
        ],
        out_specs=(
            pl.BlockSpec((1, 1, (br + 2) * width, ch), lambda i, r: (i, r, 0, 0)),
            pl.BlockSpec((1, 1, 2, ch), lambda i, r: (i, r, 0, 0)),
        ),
        out_shape=(
            jax.ShapeDtypeStruct((n, nrb, (br + 2) * width, ch), jnp.bfloat16),
            jax.ShapeDtypeStruct((n, nrb, 2, ch), jnp.float32),
        ),
        compiler_params=cparams,
    )(x_blocks, w1s, b1r)

    # ---- finalize BatchNorm statistics (tiny per-channel math, f32) ----------
    cnt = float(n * img_h * width)
    total = jnp.sum(mom, axis=(0, 1))               # (2, Ch)
    mean = total[0] / cnt
    var = jnp.maximum(total[1] / cnt - mean * mean, 0.0)   # clamp >= 0
    scale = gamma.reshape(ch) * lax.rsqrt(var + _BN_EPS)
    shift = beta.reshape(ch) - mean * scale
    scale = scale.reshape(1, ch).astype(jnp.float32)
    shift = shift.reshape(1, ch).astype(jnp.float32)

    # ---- pass 2: BN affine + GELU + conv2 (grid over batch x row-blocks) -----
    kern2 = functools.partial(conv2_kernel, br=br, width=width, img_h=img_h)
    out = pl.pallas_call(
        kern2,
        grid=(n, nrb),
        in_specs=[
            pl.BlockSpec((1, 1, (br + 2) * width, ch), lambda i, r: (i, r, 0, 0)),
            pl.BlockSpec((1, ch), lambda i, r: (0, 0)),
            pl.BlockSpec((1, ch), lambda i, r: (0, 0)),
            pl.BlockSpec((9, ch, cout), lambda i, r: (0, 0, 0)),
            pl.BlockSpec((1, cout), lambda i, r: (0, 0)),
        ],
        out_specs=pl.BlockSpec((1, 1, br * width, cout), lambda i, r: (i, r, 0, 0)),
        out_shape=jax.ShapeDtypeStruct((n, nrb, br * width, cout), jnp.float32),
        compiler_params=cparams,
    )(h_blocks, scale, shift, w2s, b2r)

    out = out.reshape(n, img_h, width, cout)
    return jnp.transpose(out, (0, 3, 1, 2))         # back to NCHW


def init_params(key, in_channels, hidden_channels, out_channels):
    k1, k2 = jax.random.split(key)
    # kaiming_normal_ (fan_in, gain=sqrt(2)) like PyTorch conv init; bias = 0.
    std1 = (2.0 / (in_channels * 9)) ** 0.5
    std2 = (2.0 / (hidden_channels * 9)) ** 0.5
    # weights stored tap-major (9, Cin, Cout) == HWIO flattened over 3x3 window.
    w1 = std1 * jax.random.normal(k1, (9, in_channels, hidden_channels), jnp.float32)
    w2 = std2 * jax.random.normal(k2, (9, hidden_channels, out_channels), jnp.float32)
    b1 = jnp.zeros((1, hidden_channels), jnp.float32)
    b2 = jnp.zeros((1, out_channels), jnp.float32)
    gamma = jnp.ones((1, hidden_channels), jnp.float32)   # BN weight = 1
    beta = jnp.zeros((1, hidden_channels), jnp.float32)   # BN bias = 0
    return w1, b1, w2, b2, gamma, beta


def mlp_reference(x_nchw, w1, b1, w2, b2, gamma, beta):
    # Pure-JAX f32 reference (NHWC convs) for the correctness check.
    x = jnp.transpose(x_nchw, (0, 2, 3, 1)).astype(jnp.float32)
    cin, ch = w1.shape[1], w1.shape[2]
    cout = w2.shape[2]
    dn = ('NHWC', 'HWIO', 'NHWC')
    h = lax.conv_general_dilated(x, w1.reshape(3, 3, cin, ch), (1, 1), 'SAME',
                                 dimension_numbers=dn) + b1.reshape(1, 1, 1, ch)
    mean = h.mean(axis=(0, 1, 2))
    var = h.var(axis=(0, 1, 2))
    h = (h - mean) * lax.rsqrt(var + _BN_EPS) * gamma.reshape(1, 1, 1, ch) \
        + beta.reshape(1, 1, 1, ch)
    h = jax.nn.gelu(h, approximate=False)
    o = lax.conv_general_dilated(h, w2.reshape(3, 3, ch, cout), (1, 1), 'SAME',
                                 dimension_numbers=dn) + b2.reshape(1, 1, 1, cout)
    return jnp.transpose(o, (0, 3, 1, 2))


if __name__ == "__main__":
    key = jax.random.PRNGKey(0)
    k_x, k_p = jax.random.split(key)

    N, C_IN, H, W = 2, 8, 16, 16
    C_HID, C_OUT = 32, 8

    x = jax.random.normal(k_x, (N, C_IN, H, W), jnp.float32)   # NCHW like PyTorch
    params = init_params(k_p, C_IN, C_HID, C_OUT)

    # block_rows=8 -> 2 row blocks per image: exercises the halo / boundary path.
    out = mlp_forward(x, *params, block_rows=8)
    out = jax.block_until_ready(out)

    ref = mlp_reference(x, *params)
    assert out.shape == (N, C_OUT, H, W)
    max_err = float(jnp.max(jnp.abs(out - ref)))
    # bf16 MXU operands + bf16 inter-pass activations vs f32 reference.
    assert jnp.allclose(out, ref, atol=5e-2, rtol=5e-2), \
        f"mismatch vs JAX reference (max |err| = {max_err})"

    print("KERNEL_OK")
</pallas_src>

<mosaic_0001>
module attributes {stable_mosaic.version = 11 : i64} {
  func.func @conv1_kernel(%arg0: i32, %arg1: i32, %arg2: memref<1x1x192x8xbf16, #tpu.memory_space<vmem>>, %arg3: memref<9x8x32xbf16, #tpu.memory_space<vmem>>, %arg4: memref<1x32xf32, #tpu.memory_space<vmem>>, %arg5: memref<1x1x160x32xbf16, #tpu.memory_space<vmem>>, %arg6: memref<1x1x2x32xf32, #tpu.memory_space<vmem>>) attributes {dimension_semantics = [#tpu.dimension_semantics<parallel>, #tpu.dimension_semantics<parallel>], iteration_bounds = array<i64: 2, 2>, scalar_prefetch = 0 : i64, scratch_operands = 0 : i64, tpu.core_type = #tpu.core_type<tc>, window_params = [{transform_indices = @transform_0, window_bounds = array<i64: 1, 1, 192, 8>}, {pipeline_mode = #tpu.pipeline_mode<synchronous>, transform_indices = @transform_1, window_bounds = array<i64: 9, 8, 32>}, {pipeline_mode = #tpu.pipeline_mode<synchronous>, transform_indices = @transform_2, window_bounds = array<i64: 1, 32>}, {transform_indices = @transform_3, window_bounds = array<i64: 1, 1, 160, 32>}, {transform_indices = @transform_4, window_bounds = array<i64: 1, 1, 2, 32>}]} {
    %c0 = arith.constant 0 : index
    %c0_0 = arith.constant 0 : index
    %c0_1 = arith.constant 0 : index
    %c0_2 = arith.constant 0 : index
    %0 = vector.load %arg2[%c0, %c0_0, %c0_1, %c0_2] : memref<1x1x192x8xbf16, #tpu.memory_space<vmem>>, vector<1x1x192x8xbf16>
    %1 = vector.shape_cast %0 : vector<1x1x192x8xbf16> to vector<192x8xbf16>
    %cst = arith.constant 0.000000e+00 : bf16
    %2 = vector.broadcast %cst : bf16 to vector<1x8xbf16>
    %3 = tpu.concatenate %2, %1, %2 in 0 : vector<1x8xbf16>, vector<192x8xbf16>, vector<1x8xbf16> -> vector<194x8xbf16>
    %4 = tpu.iota {dimensions = array<i32: 1>} : vector<10x16x8xi32>
    %5 = vector.shape_cast %4 : vector<10x16x8xi32> to vector<160x8xi32>
    %c0_i32 = arith.constant 0 : i32
    %6 = vector.broadcast %c0_i32 : i32 to vector<160x8xi32>
    %7 = arith.cmpi ne, %5, %6 : vector<160x8xi32>
    %c15_i32 = arith.constant 15 : i32
    %8 = vector.broadcast %c15_i32 : i32 to vector<160x8xi32>
    %9 = arith.cmpi ne, %5, %8 : vector<160x8xi32>
    %10 = vector.extract_strided_slice %3 {offsets = [0, 0], sizes = [160, 8], strides = [1, 1]} : vector<194x8xbf16> to vector<160x8xbf16>
    %c0_i32_3 = arith.constant 0 : i32
    %11 = arith.sitofp %c0_i32_3 : i32 to bf16
    %12 = vector.broadcast %11 : bf16 to vector<160x8xbf16>
    %13 = arith.select %7, %10, %12 : vector<160x8xi1>, vector<160x8xbf16>
    %c0_4 = arith.constant 0 : index
    %c0_5 = arith.constant 0 : index
    %c0_6 = arith.constant 0 : index
    %14 = vector.load %arg3[%c0_4, %c0_5, %c0_6] : memref<9x8x32xbf16, #tpu.memory_space<vmem>>, vector<1x8x32xbf16>
    %15 = vector.shape_cast %14 : vector<1x8x32xbf16> to vector<8x32xbf16>
    %cst_7 = arith.constant dense<0.000000e+00> : vector<160x32xf32>
    %16 = tpu.matmul %13, %15, %cst_7 {dimension_numbers = #tpu.dot_dimension_numbers<[1], [0], [0], [1], [0, 0, 1, 1], [], []>} : vector<160x8xbf16>, vector<8x32xbf16>, vector<160x32xf32> -> vector<160x32xf32>
    %17 = vector.extract_strided_slice %3 {offsets = [1, 0], sizes = [160, 8], strides = [1, 1]} : vector<194x8xbf16> to vector<160x8xbf16>
    %c1 = arith.constant 1 : index
    %c0_8 = arith.constant 0 : index
    %c0_9 = arith.constant 0 : index
    %18 = vector.load %arg3[%c1, %c0_8, %c0_9] : memref<9x8x32xbf16, #tpu.memory_space<vmem>>, vector<1x8x32xbf16>
    %19 = vector.shape_cast %18 : vector<1x8x32xbf16> to vector<8x32xbf16>
    %cst_10 = arith.constant dense<0.000000e+00> : vector<160x32xf32>
    %20 = tpu.matmul %17, %19, %cst_10 {dimension_numbers = #tpu.dot_dimension_numbers<[1], [0], [0], [1], [0, 0, 1, 1], [], []>} : vector<160x8xbf16>, vector<8x32xbf16>, vector<160x32xf32> -> vector<160x32xf32>
    %21 = arith.addf %16, %20 : vector<160x32xf32>
    %22 = vector.extract_strided_slice %3 {offsets = [2, 0], sizes = [160, 8], strides = [1, 1]} : vector<194x8xbf16> to vector<160x8xbf16>
    %c0_i32_11 = arith.constant 0 : i32
    %23 = arith.sitofp %c0_i32_11 : i32 to bf16
    %24 = vector.broadcast %23 : bf16 to vector<160x8xbf16>
    %25 = arith.select %9, %22, %24 : vector<160x8xi1>, vector<160x8xbf16>
    %c2 = arith.constant 2 : index
    %c0_12 = arith.constant 0 : index
    %c0_13 = arith.constant 0 : index
    %26 = vector.load %arg3[%c2, %c0_12, %c0_13] : memref<9x8x32xbf16, #tpu.memory_space<vmem>>, vector<1x8x32xbf16>
    %27 = vector.shape_cast %26 : vector<1x8x32xbf16> to vector<8x32xbf16>
    %cst_14 = arith.constant dense<0.000000e+00> : vector<160x32xf32>
    %28 = tpu.matmul %25, %27, %cst_14 {dimension_numbers = #tpu.dot_dimension_numbers<[1], [0], [0], [1], [0, 0, 1, 1], [], []>} : vector<160x8xbf16>, vector<8x32xbf16>, vector<160x32xf32> -> vector<160x32xf32>
    %29 = arith.addf %21, %28 : vector<160x32xf32>
    %30 = vector.extract_strided_slice %3 {offsets = [16, 0], sizes = [160, 8], strides = [1, 1]} : vector<194x8xbf16> to vector<160x8xbf16>
    %c0_i32_15 = arith.constant 0 : i32
    %31 = arith.sitofp %c0_i32_15 : i32 to bf16
    %32 = vector.broadcast %31 : bf16 to vector<160x8xbf16>
    %33 = arith.select %7, %30, %32 : vector<160x8xi1>, vector<160x8xbf16>
    %c3 = arith.constant 3 : index
    %c0_16 = arith.constant 0 : index
    %c0_17 = arith.constant 0 : index
    %34 = vector.load %arg3[%c3, %c0_16, %c0_17] : memref<9x8x32xbf16, #tpu.memory_space<vmem>>, vector<1x8x32xbf16>
    %35 = vector.shape_cast %34 : vector<1x8x32xbf16> to vector<8x32xbf16>
    %cst_18 = arith.constant dense<0.000000e+00> : vector<160x32xf32>
    %36 = tpu.matmul %33, %35, %cst_18 {dimension_numbers = #tpu.dot_dimension_numbers<[1], [0], [0], [1], [0, 0, 1, 1], [], []>} : vector<160x8xbf16>, vector<8x32xbf16>, vector<160x32xf32> -> vector<160x32xf32>
    %37 = arith.addf %29, %36 : vector<160x32xf32>
    %38 = vector.extract_strided_slice %3 {offsets = [17, 0], sizes = [160, 8], strides = [1, 1]} : vector<194x8xbf16> to vector<160x8xbf16>
    %c4 = arith.constant 4 : index
    %c0_19 = arith.constant 0 : index
    %c0_20 = arith.constant 0 : index
    %39 = vector.load %arg3[%c4, %c0_19, %c0_20] : memref<9x8x32xbf16, #tpu.memory_space<vmem>>, vector<1x8x32xbf16>
    %40 = vector.shape_cast %39 : vector<1x8x32xbf16> to vector<8x32xbf16>
    %cst_21 = arith.constant dense<0.000000e+00> : vector<160x32xf32>
    %41 = tpu.matmul %38, %40, %cst_21 {dimension_numbers = #tpu.dot_dimension_numbers<[1], [0], [0], [1], [0, 0, 1, 1], [], []>} : vector<160x8xbf16>, vector<8x32xbf16>, vector<160x32xf32> -> vector<160x32xf32>
    %42 = arith.addf %37, %41 : vector<160x32xf32>
    %43 = vector.extract_strided_slice %3 {offsets = [18, 0], sizes = [160, 8], strides = [1, 1]} : vector<194x8xbf16> to vector<160x8xbf16>
    %c0_i32_22 = arith.constant 0 : i32
    %44 = arith.sitofp %c0_i32_22 : i32 to bf16
    %45 = vector.broadcast %44 : bf16 to vector<160x8xbf16>
    %46 = arith.select %9, %43, %45 : vector<160x8xi1>, vector<160x8xbf16>
    %c5 = arith.constant 5 : index
    %c0_23 = arith.constant 0 : index
    %c0_24 = arith.constant 0 : index
    %47 = vector.load %arg3[%c5, %c0_23, %c0_24] : memref<9x8x32xbf16, #tpu.memory_space<vmem>>, vector<1x8x32xbf16>
    %48 = vector.shape_cast %47 : vector<1x8x32xbf16> to vector<8x32xbf16>
    %cst_25 = arith.constant dense<0.000000e+00> : vector<160x32xf32>
    %49 = tpu.matmul %46, %48, %cst_25 {dimension_numbers = #tpu.dot_dimension_numbers<[1], [0], [0], [1], [0, 0, 1, 1], [], []>} : vector<160x8xbf16>, vector<8x32xbf16>, vector<160x32xf32> -> vector<160x32xf32>
    %50 = arith.addf %42, %49 : vector<160x32xf32>
    %51 = vector.extract_strided_slice %3 {offsets = [32, 0], sizes = [160, 8], strides = [1, 1]} : vector<194x8xbf16> to vector<160x8xbf16>
    %c0_i32_26 = arith.constant 0 : i32
    %52 = arith.sitofp %c0_i32_26 : i32 to bf16
    %53 = vector.broadcast %52 : bf16 to vector<160x8xbf16>
    %54 = arith.select %7, %51, %53 : vector<160x8xi1>, vector<160x8xbf16>
    %c6 = arith.constant 6 : index
    %c0_27 = arith.constant 0 : index
    %c0_28 = arith.constant 0 : index
    %55 = vector.load %arg3[%c6, %c0_27, %c0_28] : memref<9x8x32xbf16, #tpu.memory_space<vmem>>, vector<1x8x32xbf16>
    %56 = vector.shape_cast %55 : vector<1x8x32xbf16> to vector<8x32xbf16>
    %cst_29 = arith.constant dense<0.000000e+00> : vector<160x32xf32>
    %57 = tpu.matmul %54, %56, %cst_29 {dimension_numbers = #tpu.dot_dimension_numbers<[1], [0], [0], [1], [0, 0, 1, 1], [], []>} : vector<160x8xbf16>, vector<8x32xbf16>, vector<160x32xf32> -> vector<160x32xf32>
    %58 = arith.addf %50, %57 : vector<160x32xf32>
    %59 = vector.extract_strided_slice %3 {offsets = [33, 0], sizes = [160, 8], strides = [1, 1]} : vector<194x8xbf16> to vector<160x8xbf16>
    %c7 = arith.constant 7 : index
    %c0_30 = arith.constant 0 : index
    %c0_31 = arith.constant 0 : index
    %60 = vector.load %arg3[%c7, %c0_30, %c0_31] : memref<9x8x32xbf16, #tpu.memory_space<vmem>>, vector<1x8x32xbf16>
    %61 = vector.shape_cast %60 : vector<1x8x32xbf16> to vector<8x32xbf16>
    %cst_32 = arith.constant dense<0.000000e+00> : vector<160x32xf32>
    %62 = tpu.matmul %59, %61, %cst_32 {dimension_numbers = #tpu.dot_dimension_numbers<[1], [0], [0], [1], [0, 0, 1, 1], [], []>} : vector<160x8xbf16>, vector<8x32xbf16>, vector<160x32xf32> -> vector<160x32xf32>
    %63 = arith.addf %58, %62 : vector<160x32xf32>
    %64 = vector.extract_strided_slice %3 {offsets = [34, 0], sizes = [160, 8], strides = [1, 1]} : vector<194x8xbf16> to vector<160x8xbf16>
    %c0_i32_33 = arith.constant 0 : i32
    %65 = arith.sitofp %c0_i32_33 : i32 to bf16
    %66 = vector.broadcast %65 : bf16 to vector<160x8xbf16>
    %67 = arith.select %9, %64, %66 : vector<160x8xi1>, vector<160x8xbf16>
    %c8 = arith.constant 8 : index
    %c0_34 = arith.constant 0 : index
    %c0_35 = arith.constant 0 : index
    %68 = vector.load %arg3[%c8, %c0_34, %c0_35] : memref<9x8x32xbf16, #tpu.memory_space<vmem>>, vector<1x8x32xbf16>
    %69 = vector.shape_cast %68 : vector<1x8x32xbf16> to vector<8x32xbf16>
    %cst_36 = arith.constant dense<0.000000e+00> : vector<160x32xf32>
    %70 = tpu.matmul %67, %69, %cst_36 {dimension_numbers = #tpu.dot_dimension_numbers<[1], [0], [0], [1], [0, 0, 1, 1], [], []>} : vector<160x8xbf16>, vector<8x32xbf16>, vector<160x32xf32> -> vector<160x32xf32>
    %71 = arith.addf %63, %70 : vector<160x32xf32>
    %c0_37 = arith.constant 0 : index
    %c0_38 = arith.constant 0 : index
    %72 = vector.load %arg4[%c0_37, %c0_38] : memref<1x32xf32, #tpu.memory_space<vmem>>, vector<1x32xf32>
    %73 = vector.broadcast %72 : vector<1x32xf32> to vector<160x32xf32>
    %74 = arith.addf %71, %73 : vector<160x32xf32>
    %75 = arith.truncf %74 : vector<160x32xf32> to vector<160x32xbf16>
    %76 = vector.shape_cast %75 : vector<160x32xbf16> to vector<1x1x160x32xbf16>
    %c0_39 = arith.constant 0 : index
    %c0_40 = arith.constant 0 : index
    %c0_41 = arith.constant 0 : index
    %c0_42 = arith.constant 0 : index
    %77 = vector.load %arg5[%c0_39, %c0_40, %c0_41, %c0_42] : memref<1x1x160x32xbf16, #tpu.memory_space<vmem>>, vector<1x1x160x32xbf16>
    tpu.vector_store %arg5[%c0_39, %c0_40, %c0_41, %c0_42], %76 {strides = array<i32>} : memref<1x1x160x32xbf16, #tpu.memory_space<vmem>>, vector<1x1x160x32xbf16>,
    %78 = vector.extract_strided_slice %74 {offsets = [16, 0], sizes = [128, 32], strides = [1, 1]} : vector<160x32xf32> to vector<128x32xf32>
    %cst_43 = arith.constant dense<0.000000e+00> : vector<32xf32>
    %79 = vector.multi_reduction <add>, %78, %cst_43 [0] : vector<128x32xf32> to vector<32xf32>
    %80 = vector.shape_cast %79 : vector<32xf32> to vector<1x32xf32>
    %81 = arith.mulf %78, %78 : vector<128x32xf32>
    %cst_44 = arith.constant dense<0.000000e+00> : vector<32xf32>
    %82 = vector.multi_reduction <add>, %81, %cst_44 [0] : vector<128x32xf32> to vector<32xf32>
    %83 = vector.shape_cast %82 : vector<32xf32> to vector<1x32xf32>
    %84 = tpu.concatenate %80, %83 in 0 : vector<1x32xf32>, vector<1x32xf32> -> vector<2x32xf32>
    %85 = vector.shape_cast %84 : vector<2x32xf32> to vector<1x1x2x32xf32>
    %c0_45 = arith.constant 0 : index
    %c0_46 = arith.constant 0 : index
    %c0_47 = arith.constant 0 : index
    %c0_48 = arith.constant 0 : index
    %86 = vector.load %arg6[%c0_45, %c0_46, %c0_47, %c0_48] : memref<1x1x2x32xf32, #tpu.memory_space<vmem>>, vector<1x1x2x32xf32>
    tpu.vector_store %arg6[%c0_45, %c0_46, %c0_47, %c0_48], %85 {strides = array<i32>} : memref<1x1x2x32xf32, #tpu.memory_space<vmem>>, vector<1x1x2x32xf32>,
    return
  }
  func.func @transform_0(%arg0: i32, %arg1: i32) -> (i32, i32, i32, i32) {
    %c0_i32 = arith.constant 0 : i32
    %c0_i32_0 = arith.constant 0 : i32
    %c0_i32_1 = arith.constant 0 : i32
    return %arg0, %arg1, %c0_i32, %c0_i32_0 : i32, i32, i32, i32
  }
  func.func @transform_1(%arg0: i32, %arg1: i32) -> (i32, i32, i32) {
    %c0_i32 = arith.constant 0 : i32
    %c0_i32_0 = arith.constant 0 : i32
    %c0_i32_1 = arith.constant 0 : i32
    %c0_i32_2 = arith.constant 0 : i32
    return %c0_i32, %c0_i32_0, %c0_i32_1 : i32, i32, i32
  }
  func.func @transform_2(%arg0: i32, %arg1: i32) -> (i32, i32) {
    %c0_i32 = arith.constant 0 : i32
    %c0_i32_0 = arith.constant 0 : i32
    %c0_i32_1 = arith.constant 0 : i32
    return %c0_i32, %c0_i32_0 : i32, i32
  }
  func.func @transform_3(%arg0: i32, %arg1: i32) -> (i32, i32, i32, i32) {
    %c0_i32 = arith.constant 0 : i32
    %c0_i32_0 = arith.constant 0 : i32
    %c0_i32_1 = arith.constant 0 : i32
    return %arg0, %arg1, %c0_i32, %c0_i32_0 : i32, i32, i32, i32
  }
  func.func @transform_4(%arg0: i32, %arg1: i32) -> (i32, i32, i32, i32) {
    %c0_i32 = arith.constant 0 : i32
    %c0_i32_0 = arith.constant 0 : i32
    %c0_i32_1 = arith.constant 0 : i32
    return %arg0, %arg1, %c0_i32, %c0_i32_0 : i32, i32, i32, i32
  }
}

module attributes {stable_mosaic.version = 11 : i64} {
  func.func @conv2_kernel(%arg0: i32, %arg1: i32, %arg2: memref<1x1x160x32xbf16, #tpu.memory_space<vmem>>, %arg3: memref<1x32xf32, #tpu.memory_space<vmem>>, %arg4: memref<1x32xf32, #tpu.memory_space<vmem>>, %arg5: memref<9x32x8xbf16, #tpu.memory_space<vmem>>, %arg6: memref<1x8xf32, #tpu.memory_space<vmem>>, %arg7: memref<1x1x128x8xf32, #tpu.memory_space<vmem>>) attributes {dimension_semantics = [#tpu.dimension_semantics<parallel>, #tpu.dimension_semantics<parallel>], iteration_bounds = array<i64: 2, 2>, scalar_prefetch = 0 : i64, scratch_operands = 0 : i64, tpu.core_type = #tpu.core_type<tc>, window_params = [{transform_indices = @transform_0, window_bounds = array<i64: 1, 1, 160, 32>}, {pipeline_mode = #tpu.pipeline_mode<synchronous>, transform_indices = @transform_1, window_bounds = array<i64: 1, 32>}, {pipeline_mode = #tpu.pipeline_mode<synchronous>, transform_indices = @transform_2, window_bounds = array<i64: 1, 32>}, {pipeline_mode = #tpu.pipeline_mode<synchronous>, transform_indices = @transform_3, window_bounds = array<i64: 9, 32, 8>}, {pipeline_mode = #tpu.pipeline_mode<synchronous>, transform_indices = @transform_4, window_bounds = array<i64: 1, 8>}, {transform_indices = @transform_5, window_bounds = array<i64: 1, 1, 128, 8>}]} {
    %c0 = arith.constant 0 : index
    %c0_0 = arith.constant 0 : index
    %c0_1 = arith.constant 0 : index
    %c0_2 = arith.constant 0 : index
    %0 = vector.load %arg2[%c0, %c0_0, %c0_1, %c0_2] : memref<1x1x160x32xbf16, #tpu.memory_space<vmem>>, vector<1x1x160x32xbf16>
    %1 = vector.shape_cast %0 : vector<1x1x160x32xbf16> to vector<160x32xbf16>
    %2 = arith.extf %1 : vector<160x32xbf16> to vector<160x32xf32>
    %c0_3 = arith.constant 0 : index
    %c0_4 = arith.constant 0 : index
    %3 = vector.load %arg3[%c0_3, %c0_4] : memref<1x32xf32, #tpu.memory_space<vmem>>, vector<1x32xf32>
    %4 = vector.broadcast %3 : vector<1x32xf32> to vector<160x32xf32>
    %5 = arith.mulf %2, %4 : vector<160x32xf32>
    %c0_5 = arith.constant 0 : index
    %c0_6 = arith.constant 0 : index
    %6 = vector.load %arg4[%c0_5, %c0_6] : memref<1x32xf32, #tpu.memory_space<vmem>>, vector<1x32xf32>
    %7 = vector.broadcast %6 : vector<1x32xf32> to vector<160x32xf32>
    %8 = arith.addf %5, %7 : vector<160x32xf32>
    %cst = arith.constant 5.000000e-01 : f32
    %9 = vector.broadcast %cst : f32 to vector<160x32xf32>
    %10 = arith.mulf %9, %8 : vector<160x32xf32>
    %cst_7 = arith.constant 0.707106769 : f32
    %11 = vector.broadcast %cst_7 : f32 to vector<160x32xf32>
    %12 = arith.mulf %8, %11 : vector<160x32xf32>
    %13 = math.erf %12 : vector<160x32xf32>
    %cst_8 = arith.constant 1.000000e+00 : f32
    %14 = vector.broadcast %cst_8 : f32 to vector<160x32xf32>
    %15 = arith.addf %14, %13 : vector<160x32xf32>
    %16 = arith.mulf %10, %15 : vector<160x32xf32>
    %17 = tpu.iota {dimensions = array<i32: 0>} : vector<10x16x32xi32>
    %18 = vector.shape_cast %17 : vector<10x16x32xi32> to vector<160x32xi32>
    %c8_i32 = arith.constant 8 : i32
    %19 = arith.muli %arg1, %c8_i32 : i32
    %c1_i32 = arith.constant 1 : i32
    %20 = arith.subi %19, %c1_i32 : i32
    %21 = vector.broadcast %20 : i32 to vector<160x32xi32>
    %22 = arith.addi %21, %18 : vector<160x32xi32>
    %c0_i32 = arith.constant 0 : i32
    %23 = vector.broadcast %c0_i32 : i32 to vector<160x32xi32>
    %24 = arith.cmpi sge, %22, %23 : vector<160x32xi32>
    %c16_i32 = arith.constant 16 : i32
    %25 = vector.broadcast %c16_i32 : i32 to vector<160x32xi32>
    %26 = arith.cmpi slt, %22, %25 : vector<160x32xi32>
    %27 = arith.andi %24, %26 : vector<160x32xi1>
    %cst_9 = arith.constant 0.000000e+00 : f32
    %28 = vector.broadcast %cst_9 : f32 to vector<160x32xf32>
    %29 = arith.select %27, %16, %28 : vector<160x32xi1>, vector<160x32xf32>
    %30 = arith.truncf %29 : vector<160x32xf32> to vector<160x32xbf16>
    %cst_10 = arith.constant 0.000000e+00 : bf16
    %31 = vector.broadcast %cst_10 : bf16 to vector<1x32xbf16>
    %32 = tpu.concatenate %31, %30, %31 in 0 : vector<1x32xbf16>, vector<160x32xbf16>, vector<1x32xbf16> -> vector<162x32xbf16>
    %33 = tpu.iota {dimensions = array<i32: 1>} : vector<8x16x32xi32>
    %34 = vector.shape_cast %33 : vector<8x16x32xi32> to vector<128x32xi32>
    %c0_i32_11 = arith.constant 0 : i32
    %35 = vector.broadcast %c0_i32_11 : i32 to vector<128x32xi32>
    %36 = arith.cmpi ne, %34, %35 : vector<128x32xi32>
    %c15_i32 = arith.constant 15 : i32
    %37 = vector.broadcast %c15_i32 : i32 to vector<128x32xi32>
    %38 = arith.cmpi ne, %34, %37 : vector<128x32xi32>
    %39 = vector.extract_strided_slice %32 {offsets = [0, 0], sizes = [128, 32], strides = [1, 1]} : vector<162x32xbf16> to vector<128x32xbf16>
    %c0_i32_12 = arith.constant 0 : i32
    %40 = arith.sitofp %c0_i32_12 : i32 to bf16
    %41 = vector.broadcast %40 : bf16 to vector<128x32xbf16>
    %42 = arith.select %36, %39, %41 : vector<128x32xi1>, vector<128x32xbf16>
    %c0_13 = arith.constant 0 : index
    %c0_14 = arith.constant 0 : index
    %c0_15 = arith.constant 0 : index
    %43 = vector.load %arg5[%c0_13, %c0_14, %c0_15] : memref<9x32x8xbf16, #tpu.memory_space<vmem>>, vector<1x32x8xbf16>
    %44 = vector.shape_cast %43 : vector<1x32x8xbf16> to vector<32x8xbf16>
    %cst_16 = arith.constant dense<0.000000e+00> : vector<128x8xf32>
    %45 = tpu.matmul %42, %44, %cst_16 {dimension_numbers = #tpu.dot_dimension_numbers<[1], [0], [0], [1], [0, 0, 1, 1], [], []>} : vector<128x32xbf16>, vector<32x8xbf16>, vector<128x8xf32> -> vector<128x8xf32>
    %46 = vector.extract_strided_slice %32 {offsets = [1, 0], sizes = [128, 32], strides = [1, 1]} : vector<162x32xbf16> to vector<128x32xbf16>
    %c1 = arith.constant 1 : index
    %c0_17 = arith.constant 0 : index
    %c0_18 = arith.constant 0 : index
    %47 = vector.load %arg5[%c1, %c0_17, %c0_18] : memref<9x32x8xbf16, #tpu.memory_space<vmem>>, vector<1x32x8xbf16>
    %48 = vector.shape_cast %47 : vector<1x32x8xbf16> to vector<32x8xbf16>
    %cst_19 = arith.constant dense<0.000000e+00> : vector<128x8xf32>
    %49 = tpu.matmul %46, %48, %cst_19 {dimension_numbers = #tpu.dot_dimension_numbers<[1], [0], [0], [1], [0, 0, 1, 1], [], []>} : vector<128x32xbf16>, vector<32x8xbf16>, vector<128x8xf32> -> vector<128x8xf32>
    %50 = arith.addf %45, %49 : vector<128x8xf32>
    %51 = vector.extract_strided_slice %32 {offsets = [2, 0], sizes = [128, 32], strides = [1, 1]} : vector<162x32xbf16> to vector<128x32xbf16>
    %c0_i32_20 = arith.constant 0 : i32
    %52 = arith.sitofp %c0_i32_20 : i32 to bf16
    %53 = vector.broadcast %52 : bf16 to vector<128x32xbf16>
    %54 = arith.select %38, %51, %53 : vector<128x32xi1>, vector<128x32xbf16>
    %c2 = arith.constant 2 : index
    %c0_21 = arith.constant 0 : index
    %c0_22 = arith.constant 0 : index
    %55 = vector.load %arg5[%c2, %c0_21, %c0_22] : memref<9x32x8xbf16, #tpu.memory_space<vmem>>, vector<1x32x8xbf16>
    %56 = vector.shape_cast %55 : vector<1x32x8xbf16> to vector<32x8xbf16>
    %cst_23 = arith.constant dense<0.000000e+00> : vector<128x8xf32>
    %57 = tpu.matmul %54, %56, %cst_23 {dimension_numbers = #tpu.dot_dimension_numbers<[1], [0], [0], [1], [0, 0, 1, 1], [], []>} : vector<128x32xbf16>, vector<32x8xbf16>, vector<128x8xf32> -> vector<128x8xf32>
    %58 = arith.addf %50, %57 : vector<128x8xf32>
    %59 = vector.extract_strided_slice %32 {offsets = [16, 0], sizes = [128, 32], strides = [1, 1]} : vector<162x32xbf16> to vector<128x32xbf16>
    %c0_i32_24 = arith.constant 0 : i32
    %60 = arith.sitofp %c0_i32_24 : i32 to bf16
    %61 = vector.broadcast %60 : bf16 to vector<128x32xbf16>
    %62 = arith.select %36, %59, %61 : vector<128x32xi1>, vector<128x32xbf16>
    %c3 = arith.constant 3 : index
    %c0_25 = arith.constant 0 : index
    %c0_26 = arith.constant 0 : index
    %63 = vector.load %arg5[%c3, %c0_25, %c0_26] : memref<9x32x8xbf16, #tpu.memory_space<vmem>>, vector<1x32x8xbf16>
    %64 = vector.shape_cast %63 : vector<1x32x8xbf16> to vector<32x8xbf16>
    %cst_27 = arith.constant dense<0.000000e+00> : vector<128x8xf32>
    %65 = tpu.matmul %62, %64, %cst_27 {dimension_numbers = #tpu.dot_dimension_numbers<[1], [0], [0], [1], [0, 0, 1, 1], [], []>} : vector<128x32xbf16>, vector<32x8xbf16>, vector<128x8xf32> -> vector<128x8xf32>
    %66 = arith.addf %58, %65 : vector<128x8xf32>
    %67 = vector.extract_strided_slice %32 {offsets = [17, 0], sizes = [128, 32], strides = [1, 1]} : vector<162x32xbf16> to vector<128x32xbf16>
    %c4 = arith.constant 4 : index
    %c0_28 = arith.constant 0 : index
    %c0_29 = arith.constant 0 : index
    %68 = vector.load %arg5[%c4, %c0_28, %c0_29] : memref<9x32x8xbf16, #tpu.memory_space<vmem>>, vector<1x32x8xbf16>
    %69 = vector.shape_cast %68 : vector<1x32x8xbf16> to vector<32x8xbf16>
    %cst_30 = arith.constant dense<0.000000e+00> : vector<128x8xf32>
    %70 = tpu.matmul %67, %69, %cst_30 {dimension_numbers = #tpu.dot_dimension_numbers<[1], [0], [0], [1], [0, 0, 1, 1], [], []>} : vector<128x32xbf16>, vector<32x8xbf16>, vector<128x8xf32> -> vector<128x8xf32>
    %71 = arith.addf %66, %70 : vector<128x8xf32>
    %72 = vector.extract_strided_slice %32 {offsets = [18, 0], sizes = [128, 32], strides = [1, 1]} : vector<162x32xbf16> to vector<128x32xbf16>
    %c0_i32_31 = arith.constant 0 : i32
    %73 = arith.sitofp %c0_i32_31 : i32 to bf16
    %74 = vector.broadcast %73 : bf16 to vector<128x32xbf16>
    %75 = arith.select %38, %72, %74 : vector<128x32xi1>, vector<128x32xbf16>
    %c5 = arith.constant 5 : index
    %c0_32 = arith.constant 0 : index
    %c0_33 = arith.constant 0 : index
    %76 = vector.load %arg5[%c5, %c0_32, %c0_33] : memref<9x32x8xbf16, #tpu.memory_space<vmem>>, vector<1x32x8xbf16>
    %77 = vector.shape_cast %76 : vector<1x32x8xbf16> to vector<32x8xbf16>
    %cst_34 = arith.constant dense<0.000000e+00> : vector<128x8xf32>
    %78 = tpu.matmul %75, %77, %cst_34 {dimension_numbers = #tpu.dot_dimension_numbers<[1], [0], [0], [1], [0, 0, 1, 1], [], []>} : vector<128x32xbf16>, vector<32x8xbf16>, vector<128x8xf32> -> vector<128x8xf32>
    %79 = arith.addf %71, %78 : vector<128x8xf32>
    %80 = vector.extract_strided_slice %32 {offsets = [32, 0], sizes = [128, 32], strides = [1, 1]} : vector<162x32xbf16> to vector<128x32xbf16>
    %c0_i32_35 = arith.constant 0 : i32
    %81 = arith.sitofp %c0_i32_35 : i32 to bf16
    %82 = vector.broadcast %81 : bf16 to vector<128x32xbf16>
    %83 = arith.select %36, %80, %82 : vector<128x32xi1>, vector<128x32xbf16>
    %c6 = arith.constant 6 : index
    %c0_36 = arith.constant 0 : index
    %c0_37 = arith.constant 0 : index
    %84 = vector.load %arg5[%c6, %c0_36, %c0_37] : memref<9x32x8xbf16, #tpu.memory_space<vmem>>, vector<1x32x8xbf16>
    %85 = vector.shape_cast %84 : vector<1x32x8xbf16> to vector<32x8xbf16>
    %cst_38 = arith.constant dense<0.000000e+00> : vector<128x8xf32>
    %86 = tpu.matmul %83, %85, %cst_38 {dimension_numbers = #tpu.dot_dimension_numbers<[1], [0], [0], [1], [0, 0, 1, 1], [], []>} : vector<128x32xbf16>, vector<32x8xbf16>, vector<128x8xf32> -> vector<128x8xf32>
    %87 = arith.addf %79, %86 : vector<128x8xf32>
    %88 = vector.extract_strided_slice %32 {offsets = [33, 0], sizes = [128, 32], strides = [1, 1]} : vector<162x32xbf16> to vector<128x32xbf16>
    %c7 = arith.constant 7 : index
    %c0_39 = arith.constant 0 : index
    %c0_40 = arith.constant 0 : index
    %89 = vector.load %arg5[%c7, %c0_39, %c0_40] : memref<9x32x8xbf16, #tpu.memory_space<vmem>>, vector<1x32x8xbf16>
    %90 = vector.shape_cast %89 : vector<1x32x8xbf16> to vector<32x8xbf16>
    %cst_41 = arith.constant dense<0.000000e+00> : vector<128x8xf32>
    %91 = tpu.matmul %88, %90, %cst_41 {dimension_numbers = #tpu.dot_dimension_numbers<[1], [0], [0], [1], [0, 0, 1, 1], [], []>} : vector<128x32xbf16>, vector<32x8xbf16>, vector<128x8xf32> -> vector<128x8xf32>
    %92 = arith.addf %87, %91 : vector<128x8xf32>
    %93 = vector.extract_strided_slice %32 {offsets = [34, 0], sizes = [128, 32], strides = [1, 1]} : vector<162x32xbf16> to vector<128x32xbf16>
    %c0_i32_42 = arith.constant 0 : i32
    %94 = arith.sitofp %c0_i32_42 : i32 to bf16
    %95 = vector.broadcast %94 : bf16 to vector<128x32xbf16>
    %96 = arith.select %38, %93, %95 : vector<128x32xi1>, vector<128x32xbf16>
    %c8 = arith.constant 8 : index
    %c0_43 = arith.constant 0 : index
    %c0_44 = arith.constant 0 : index
    %97 = vector.load %arg5[%c8, %c0_43, %c0_44] : memref<9x32x8xbf16, #tpu.memory_space<vmem>>, vector<1x32x8xbf16>
    %98 = vector.shape_cast %97 : vector<1x32x8xbf16> to vector<32x8xbf16>
    %cst_45 = arith.constant dense<0.000000e+00> : vector<128x8xf32>
    %99 = tpu.matmul %96, %98, %cst_45 {dimension_numbers = #tpu.dot_dimension_numbers<[1], [0], [0], [1], [0, 0, 1, 1], [], []>} : vector<128x32xbf16>, vector<32x8xbf16>, vector<128x8xf32> -> vector<128x8xf32>
    %100 = arith.addf %92, %99 : vector<128x8xf32>
    %c0_46 = arith.constant 0 : index
    %c0_47 = arith.constant 0 : index
    %101 = vector.load %arg6[%c0_46, %c0_47] : memref<1x8xf32, #tpu.memory_space<vmem>>, vector<1x8xf32>
    %102 = vector.broadcast %101 : vector<1x8xf32> to vector<128x8xf32>
    %103 = arith.addf %100, %102 : vector<128x8xf32>
    %104 = vector.shape_cast %103 : vector<128x8xf32> to vector<1x1x128x8xf32>
    %c0_48 = arith.constant 0 : index
    %c0_49 = arith.constant 0 : index
    %c0_50 = arith.constant 0 : index
    %c0_51 = arith.constant 0 : index
    %105 = vector.load %arg7[%c0_48, %c0_49, %c0_50, %c0_51] : memref<1x1x128x8xf32, #tpu.memory_space<vmem>>, vector<1x1x128x8xf32>
    tpu.vector_store %arg7[%c0_48, %c0_49, %c0_50, %c0_51], %104 {strides = array<i32>} : memref<1x1x128x8xf32, #tpu.memory_space<vmem>>, vector<1x1x128x8xf32>,
    return
  }
  func.func @transform_0(%arg0: i32, %arg1: i32) -> (i32, i32, i32, i32) {
    %c0_i32 = arith.constant 0 : i32
    %c0_i32_0 = arith.constant 0 : i32
    %c0_i32_1 = arith.constant 0 : i32
    return %arg0, %arg1, %c0_i32, %c0_i32_0 : i32, i32, i32, i32
  }
  func.func @transform_1(%arg0: i32, %arg1: i32) -> (i32, i32) {
    %c0_i32 = arith.constant 0 : i32
    %c0_i32_0 = arith.constant 0 : i32
    %c0_i32_1 = arith.constant 0 : i32
    return %c0_i32, %c0_i32_0 : i32, i32
  }
  func.func @transform_2(%arg0: i32, %arg1: i32) -> (i32, i32) {
    %c0_i32 = arith.constant 0 : i32
    %c0_i32_0 = arith.constant 0 : i32
    %c0_i32_1 = arith.constant 0 : i32
    return %c0_i32, %c0_i32_0 : i32, i32
  }
  func.func @transform_3(%arg0: i32, %arg1: i32) -> (i32, i32, i32) {
    %c0_i32 = arith.constant 0 : i32
    %c0_i32_0 = arith.constant 0 : i32
    %c0_i32_1 = arith.constant 0 : i32
    %c0_i32_2 = arith.constant 0 : i32
    return %c0_i32, %c0_i32_0, %c0_i32_1 : i32, i32, i32
  }
  func.func @transform_4(%arg0: i32, %arg1: i32) -> (i32, i32) {
    %c0_i32 = arith.constant 0 : i32
    %c0_i32_0 = arith.constant 0 : i32
    %c0_i32_1 = arith.constant 0 : i32
    return %c0_i32, %c0_i32_0 : i32, i32
  }
  func.func @transform_5(%arg0: i32, %arg1: i32) -> (i32, i32, i32, i32) {
    %c0_i32 = arith.constant 0 : i32
    %c0_i32_0 = arith.constant 0 : i32
    %c0_i32_1 = arith.constant 0 : i32
    return %arg0, %arg1, %c0_i32, %c0_i32_0 : i32, i32, i32, i32
  }
}

</mosaic_0001>

<llo_original>
// kernel: mlp_forward.2
$region0: #{mlp_forward.2}
  #allocation0 [shape = 'u32[]', space=smem, size = 0x4, offset = 0x4, fixed_abs, tag = 'smem constant byte address 0x4 - core index']
  #allocation1 [shape = 'u32[144,128]{1,0:T(1,128)}', space=vmem, size = 0x12000, scoped, tag = 'internal scratch']
  %s0 = inlined_call_operand.vmem [shape: bf16[2,2,192,8], index: 0, kind: input, shape index: {}]
  %s1 = inlined_call_operand.vmem [shape: bf16[9,8,32], index: 1, kind: input, shape index: {}]
  %s2 = inlined_call_operand.vmem [shape: f32[1,32], index: 2, kind: input, shape index: {}]
  %s3 = inlined_call_operand.vmem [shape: bf16[2,2,160,32], index: 3, kind: output, shape index: {0}]
  %s4 = inlined_call_operand.vmem [shape: f32[2,2,2,32], index: 4, kind: output, shape index: {1}]
  %5 = xla_tuple %s3, %s4
  %s6 = sld [smem:[#allocation0]]
  $region53: #{mlp_forward.2} parent=0
    _
  %s8 = ssub.s32 1, %s6
  %s9 = scalar_select 0, %s8, %s6
  loop: start=0, step=1, limit=6
  $region2: #{mlp_forward.2} parent=0 // loop_pre_header
    _
  $region3: #{mlp_forward.2} parent=0 // loop_header
    %s11 = sphi 0, %s15
    %p12 = scmp.ge.s32.totalorder %s11, 6
    %s18 = sphi 0, %s30
    %s19 = sphi 0, %s26
    %s20 = sphi 0, %s18
    %s21 = sphi 0, %s19
    %s22 = sphi 0, %s20
    %s23 = sphi 0, %s21
    %s35 = sphi 0, %s37
    %s38 = sphi 0, %s35
    %s39 = sphi 0, %s38
    %s55 = sphi 0, %s39
    %s59 = sphi 0, %s59
    %s61 = sphi 0, %s59
    %s62 = sphi 0, %s61
    %s76 = sphi 0, %s62
    %s80 = sphi 0, %s80
    %s82 = sphi 0, %s80
    %s83 = sphi 0, %s82
    %s97 = sphi 0, %s83
    %s105 = sphi 0, %s107
    %s108 = sphi 0, %s105
    %s109 = sphi 0, %s108
    %s125 = sphi 0, %s109
    %s133 = sphi 0, %s135
    %s136 = sphi 0, %s133
    %s137 = sphi 0, %s136
    %s153 = sphi 0, %s137
  $region4: #{mlp_forward.2} parent=0 // loop_header_branch
    %14 = sbr.rel (%p12) target = $region8
  $region5: #{mlp_forward.2} parent=0 // loop_body
    %s16 = ssub.s32 %s11, 1
    %s17 = ssub.s32 %s11, 2
    %s24 = sadd.s32 1, %s19
    %p25 = scmp.ge.s32.totalorder %s24, 2
    %s26 = scalar_select %p25, 0, %s24
    %s27 = sadd.s32 1, %s18
    %s28 = scalar_select %p25, %s27, %s18
    %p29 = scmp.ge.s32.totalorder %s28, 2
    %s30 = scalar_select %p29, 0, %s28
    %s31 = ssub.s32 %s18, %s30
    %s32 = ssub.s32 %s19, %s26
    %s33 = sor.u32 %s31, %s32
    %p34 = scmp.eq.s32.totalorder %s33, 0
    %s36 = sadd.s32 %s35, 1
    %s37 = scalar_select %p34, %s35, %s36
    %p40 = pneg %p34
    %p41 = scmp.eq.s32.totalorder %s11, 3
    %p42 = por %p40, %p41
    %p43 = scmp.ne.s32.totalorder %s35, %s38
    %p44 = scmp.eq.s32.totalorder %s11, 0
    %p45 = por %p43, %p44
    %p46 = scmp.ne.s32.totalorder %s35, %s38
    %p47 = scmp.eq.s32.totalorder %s16, 3
    %p48 = por %p46, %p47
    %p49 = scmp.ne.s32.totalorder %s38, %s39
    %p50 = scmp.eq.s32.totalorder %s16, 0
    %p51 = por %p49, %p50
    %p52 = scmp.ne.s32.totalorder %s38, %s39
    %p53 = scmp.eq.s32.totalorder %s17, 3
    %p54 = por %p52, %p53
    %p56 = scmp.ne.s32.totalorder %s39, %s55
    %p57 = scmp.eq.s32.totalorder %s17, 0
    %p58 = por %p56, %p57
    %s60 = sadd.s32 %s59, 1
    %p63 = scmp.eq.s32.totalorder %s11, 3
    %p64 = scmp.ne.s32.totalorder %s59, %s61
    %p65 = scmp.eq.s32.totalorder %s11, 0
    %p66 = por %p64, %p65
    %p67 = scmp.ne.s32.totalorder %s59, %s61
    %p68 = scmp.eq.s32.totalorder %s16, 3
    %p69 = por %p67, %p68
    %p70 = scmp.ne.s32.totalorder %s61, %s62
    %p71 = scmp.eq.s32.totalorder %s16, 0
    %p72 = por %p70, %p71
    %p73 = scmp.ne.s32.totalorder %s61, %s62
    %p74 = scmp.eq.s32.totalorder %s17, 3
    %p75 = por %p73, %p74
    %p77 = scmp.ne.s32.totalorder %s62, %s76
    %p78 = scmp.eq.s32.totalorder %s17, 0
    %p79 = por %p77, %p78
    %s81 = sadd.s32 %s80, 1
    %p84 = scmp.eq.s32.totalorder %s11, 3
    %p85 = scmp.ne.s32.totalorder %s80, %s82
    %p86 = scmp.eq.s32.totalorder %s11, 0
    %p87 = por %p85, %p86
    %p88 = scmp.ne.s32.totalorder %s80, %s82
    %p89 = scmp.eq.s32.totalorder %s16, 3
    %p90 = por %p88, %p89
    %p91 = scmp.ne.s32.totalorder %s82, %s83
    %p92 = scmp.eq.s32.totalorder %s16, 0
    %p93 = por %p91, %p92
    %p94 = scmp.ne.s32.totalorder %s82, %s83
    %p95 = scmp.eq.s32.totalorder %s17, 3
    %p96 = por %p94, %p95
    %p98 = scmp.ne.s32.totalorder %s83, %s97
    %p99 = scmp.eq.s32.totalorder %s17, 0
    %p100 = por %p98, %p99
    %s101 = ssub.s32 %s18, %s30
    %s102 = ssub.s32 %s19, %s26
    %s103 = sor.u32 %s101, %s102
    %p104 = scmp.eq.s32.totalorder %s103, 0
    %s106 = sadd.s32 %s105, 1
    %s107 = scalar_select %p104, %s105, %s106
    %p110 = pneg %p104
    %p111 = scmp.eq.s32.totalorder %s11, 3
    %p112 = por %p110, %p111
    %p113 = scmp.ne.s32.totalorder %s105, %s108
    %p114 = scmp.eq.s32.totalorder %s11, 0
    %p115 = por %p113, %p114
    %p116 = scmp.ne.s32.totalorder %s105, %s108
    %p117 = scmp.eq.s32.totalorder %s16, 3
    %p118 = por %p116, %p117
    %p119 = scmp.ne.s32.totalorder %s108, %s109
    %p120 = scmp.eq.s32.totalorder %s16, 0
    %p121 = por %p119, %p120
    %p122 = scmp.ne.s32.totalorder %s108, %s109
    %p123 = scmp.eq.s32.totalorder %s17, 3
    %p124 = por %p122, %p123
    %p126 = scmp.ne.s32.totalorder %s109, %s125
    %p127 = scmp.eq.s32.totalorder %s17, 0
    %p128 = por %p126, %p127
    %s129 = ssub.s32 %s18, %s30
    %s130 = ssub.s32 %s19, %s26
    %s131 = sor.u32 %s129, %s130
    %p132 = scmp.eq.s32.totalorder %s131, 0
    %s134 = sadd.s32 %s133, 1
    %s135 = scalar_select %p132, %s133, %s134
    %p138 = pneg %p132
    %p139 = scmp.eq.s32.totalorder %s11, 3
    %p140 = por %p138, %p139
    %p141 = scmp.ne.s32.totalorder %s133, %s136
    %p142 = scmp.eq.s32.totalorder %s11, 0
    %p143 = por %p141, %p142
    %p144 = scmp.ne.s32.totalorder %s133, %s136
    %p145 = scmp.eq.s32.totalorder %s16, 3
    %p146 = por %p144, %p145
    %p147 = scmp.ne.s32.totalorder %s136, %s137
    %p148 = scmp.eq.s32.totalorder %s16, 0
    %p149 = por %p147, %p148
    %p150 = scmp.ne.s32.totalorder %s136, %s137
    %p151 = scmp.eq.s32.totalorder %s17, 3
    %p152 = por %p150, %p151
    %p154 = scmp.ne.s32.totalorder %s137, %s153
    %p155 = scmp.eq.s32.totalorder %s17, 0
    %p156 = por %p154, %p155
    %p157 = scmp.le.s32.totalorder 1, %s11
    %p158 = scmp.lt.s32.totalorder %s11, 5
    %p159 = pnand %p157, %p158
    %p160 = pneg %p159
    // Predicated region
    $region9: #{mlp_forward.2} parent=5 // pred_check
      _
    $region10: #{mlp_forward.2} parent=5 // pred_check_branch
      %162 = sbr.rel (%p159) target = $region12
    $region11: #{mlp_forward.2} parent=5 // pred_region
      %s163 = ssub.s32 %s11, 1
      // Predicated region
      $region13: #{mlp_forward.2} parent=11 // pred_check
        %p164 = pneg %p72
      $region14: #{mlp_forward.2} parent=11 // pred_check_branch
        %166 = sbr.rel (%p164) target = $region16
      $region15: #{mlp_forward.2} parent=11 // pred_region
        _
      $region16: #{mlp_forward.2} parent=11 // pred_fallthru
        _
      // Predicated region
      $region17: #{mlp_forward.2} parent=11 // pred_check
        %p167 = pneg %p93
      $region18: #{mlp_forward.2} parent=11 // pred_check_branch
        %169 = sbr.rel (%p167) target = $region20
      $region19: #{mlp_forward.2} parent=11 // pred_region
        _
      $region20: #{mlp_forward.2} parent=11 // pred_fallthru
        _
    $region12: #{mlp_forward.2} parent=5 // pred_fallthru
      _
    %p170 = scmp.lt.s32.totalorder %s11, 4
    // Predicated region
    $region21: #{mlp_forward.2} parent=5 // pred_check
      %p171 = pneg %p170
    $region22: #{mlp_forward.2} parent=5 // pred_check_branch
      %173 = sbr.rel (%p171) target = $region24
    $region23: #{mlp_forward.2} parent=5 // pred_region
      // Predicated region
      $region25: #{mlp_forward.2} parent=23 // pred_check
        %p174 = pneg %p45
      $region26: #{mlp_forward.2} parent=23 // pred_check_branch
        %176 = sbr.rel (%p174) target = $region28
      $region27: #{mlp_forward.2} parent=23 // pred_region
        %p177 = scmp.lt.s32.totalorder %s18, 1
        %s178 = scalar_select %p177, %s18, 1
        %p179 = scmp.lt.s32.totalorder %s19, 1
        %s180 = scalar_select %p179, %s19, 1
        %s181 = smul.addr %s180, 24
        %s182 = smul.addr %s178, 48
        %s183 = sadd.s32 %s181, %s182
        %s184 = smul.addr %s183, 4
        %s185 = scalar_lea.vmem %s0, %s184
      $region28: #{mlp_forward.2} parent=23 // pred_fallthru
        _
    $region24: #{mlp_forward.2} parent=5 // pred_fallthru
      _
    %p186 = scmp.le.s32.totalorder 1, %s11
    %p187 = scmp.lt.s32.totalorder %s11, 5
    %p188 = pnand %p186, %p187
    %p189 = pneg %p188
    // Predicated region
    $region29: #{mlp_forward.2} parent=5 // pred_check
      _
    $region30: #{mlp_forward.2} parent=5 // pred_check_branch
      %191 = sbr.rel (%p188) target = $region32
    $region31: #{mlp_forward.2} parent=5 // pred_region
      %s192 = ssub.s32 %s11, 1
      %p193 = scmp.lt.s32.totalorder %s20, 1
      %s194 = scalar_select %p193, %s20, 1
      %p195 = scmp.lt.s32.totalorder %s21, 1
      %s196 = scalar_select %p195, %s21, 1
      %s197 = smul.addr %s196, 24
      %s198 = smul.addr %s194, 48
      %s199 = sadd.s32 %s197, %s198
      %s200 = smul.addr %s199, 4
      %s201 = scalar_lea.vmem %s0, %s200
      %p202 = pneg %p51
      %p203 = pneg %p48
      %p204 = pneg %p72
      %p205 = pneg %p69
      %p206 = pneg %p93
      %p207 = pneg %p90
      %p208 = pneg %p121
      %p209 = pneg %p118
      %p210 = scmp.lt.s32.totalorder %s20, 1
      %s211 = scalar_select %p210, %s20, 1
      %p212 = scmp.lt.s32.totalorder %s21, 1
      %s213 = scalar_select %p212, %s21, 1
      %s214 = smul.addr %s213, 20
      %s215 = smul.addr %s211, 40
      %s216 = sadd.s32 %s214, %s215
      %s217 = smul.addr %s216, 4
      %s218 = scalar_lea.vmem %s3, %s217
      %p219 = pneg %p149
      %p220 = pneg %p146
      %p221 = scmp.lt.s32.totalorder %s20, 1
      %s222 = scalar_select %p221, %s20, 1
      %p223 = scmp.lt.s32.totalorder %s21, 1
      %s224 = scalar_select %p223, %s21, 1
      %s225 = smul.addr %s222, 2
      %s226 = sadd.s32 %s224, %s225
      %s227 = smul.addr %s226, 2
      %s228 = scalar_lea.vmem %s4, %s227
      %p229 = scmp.lt.s32.totalorder %s20, 1
      %s230 = scalar_select %p229, %s20, 1
      %p231 = scmp.lt.s32.totalorder %s21, 1
      %s232 = scalar_select %p231, %s21, 1
      %s233 = smul.addr %s232, 24
      %s234 = smul.addr %s230, 48
      %s235 = sadd.s32 %s233, %s234
      %s236 = smul.addr %s235, 4
      %s237 = scalar_lea.vmem %s0, %s236
      %p238 = scmp.lt.s32.totalorder %s20, 1
      %s239 = scalar_select %p238, %s20, 1
      %p240 = scmp.lt.s32.totalorder %s21, 1
      %s241 = scalar_select %p240, %s21, 1
      %s242 = smul.addr %s241, 20
      %s243 = smul.addr %s239, 40
      %s244 = sadd.s32 %s242, %s243
      %s245 = smul.addr %s244, 4
      %s246 = scalar_lea.vmem %s3, %s245
      %p247 = scmp.lt.s32.totalorder %s20, 1
      %s248 = scalar_select %p247, %s20, 1
      %p249 = scmp.lt.s32.totalorder %s21, 1
      %s250 = scalar_select %p249, %s21, 1
      %s251 = smul.addr %s248, 2
      %s252 = sadd.s32 %s250, %s251
      %s253 = smul.addr %s252, 2
      %s254 = scalar_lea.vmem %s4, %s253
      %v258 = vld [vmem:[%s237] sm:$0xf]
      %v259 = vld [vmem:[%s237 + $0x4] sm:$0xf]
      %v260 = vld [vmem:[%s237 + $0x8] sm:$0xf]
      %v261 = vld [vmem:[%s237 + $0xc] sm:$0xf]
      %v262 = vld [vmem:[%s237 + $0x10] sm:$0xf]
      %v263 = vld [vmem:[%s237 + $0x14] sm:$0xf]
      %v264 = vld [vmem:[%s237 + $0x18] sm:$0xf]
      %v265 = vld [vmem:[%s237 + $0x1c] sm:$0xf]
      %v266 = vld [vmem:[%s237 + $0x20] sm:$0xf]
      %v267 = vld [vmem:[%s237 + $0x24] sm:$0xf]
      %v268 = vld [vmem:[%s237 + $0x28] sm:$0xf]
      %v269 = vld [vmem:[%s237 + $0x2c] sm:$0xf]
      %v270 = vld [vmem:[%s237 + $0x30] sm:$0xf]
      %v271 = vld [vmem:[%s237 + $0x34] sm:$0xf]
      %v272 = vld [vmem:[%s237 + $0x38] sm:$0xf]
      %v273 = vld [vmem:[%s237 + $0x3c] sm:$0xf]
      %v274 = vld [vmem:[%s237 + $0x40] sm:$0xf]
      %v275 = vld [vmem:[%s237 + $0x44] sm:$0xf]
      %v276 = vld [vmem:[%s237 + $0x48] sm:$0xf]
      %v277 = vld [vmem:[%s237 + $0x4c] sm:$0xf]
      %v278 = vld [vmem:[%s237 + $0x50] sm:$0xf]
      %v279 = vld [vmem:[%s237 + $0x54] sm:$0xf]
      %v280 = vld [vmem:[%s237 + $0x58] sm:$0xf]
      %v281 = vld [vmem:[%s237 + $0x5c] sm:$0xf]
      %v306 = vunpack.c.l.b16 %v258
      %v307 = vunpack.c.l.b16 %v259
      %v308 = vunpack.c.l.b16 %v260
      %v309 = vunpack.c.l.b16 %v261
      %v310 = vunpack.c.l.b16 %v262
      %v311 = vunpack.c.l.b16 %v263
      %v312 = vunpack.c.l.b16 %v264
      %v313 = vunpack.c.l.b16 %v265
      %v314 = vunpack.c.l.b16 %v266
      %v315 = vunpack.c.l.b16 %v267
      %v316 = vunpack.c.l.b16 %v268
      %v317 = vunpack.c.l.b16 %v269
      %v318 = vunpack.c.l.b16 %v270
      %v319 = vunpack.c.l.b16 %v271
      %v320 = vunpack.c.l.b16 %v272
      %v321 = vunpack.c.l.b16 %v273
      %v322 = vunpack.c.l.b16 %v274
      %v323 = vunpack.c.l.b16 %v275
      %v324 = vunpack.c.l.b16 %v276
      %v325 = vunpack.c.l.b16 %v277
      %v326 = vunpack.c.l.b16 %v278
      %v327 = vunpack.c.l.b16 %v279
      %v328 = vunpack.c.l.b16 %v280
      %v329 = vunpack.c.l.b16 %v281
      %v330 = vpack.c.b16 %v307, %v306
      %v331 = vpack.c.b16 %v309, %v308
      %v332 = vpack.c.b16 %v311, %v310
      %v333 = vpack.c.b16 %v313, %v312
      %v334 = vpack.c.b16 %v315, %v314
      %v335 = vpack.c.b16 %v317, %v316
      %v336 = vpack.c.b16 %v319, %v318
      %v337 = vpack.c.b16 %v321, %v320
      %v338 = vpack.c.b16 %v323, %v322
      %v339 = vpack.c.b16 %v325, %v324
      %v340 = vpack.c.b16 %v327, %v326
      %v341 = vpack.c.b16 %v329, %v328
      %vm342 = vsmask.f32 256
      %v344 = vshrl.u32 %v330, 16
      %v346 = vrot.slane %v344, 7
      %v347 = vshll.u32 %v330, 16
      %v349 = vor.u32 %v346, %v347
      %v351 = vshrl.u32 %v331, 16
      %v353 = vrot.slane %v351, 7
      %v354 = vshll.u32 %v331, 16
      %v356 = vor.u32 %v353, %v354
      %v357 = vsel %vm342, %v346, %v356
      %v359 = vshrl.u32 %v332, 16
      %v361 = vrot.slane %v359, 7
      %v362 = vshll.u32 %v332, 16
      %v364 = vor.u32 %v361, %v362
      %v365 = vsel %vm342, %v353, %v364
      %v367 = vshrl.u32 %v333, 16
      %v369 = vrot.slane %v367, 7
      %v370 = vshll.u32 %v333, 16
      %v372 = vor.u32 %v369, %v370
      %v373 = vsel %vm342, %v361, %v372
      %v375 = vshrl.u32 %v334, 16
      %v377 = vrot.slane %v375, 7
      %v378 = vshll.u32 %v334, 16
      %v380 = vor.u32 %v377, %v378
      %v381 = vsel %vm342, %v369, %v380
      %v383 = vshrl.u32 %v335, 16
      %v385 = vrot.slane %v383, 7
      %v386 = vshll.u32 %v335, 16
      %v388 = vor.u32 %v385, %v386
      %v389 = vsel %vm342, %v377, %v388
      %v391 = vshrl.u32 %v336, 16
      %v393 = vrot.slane %v391, 7
      %v394 = vshll.u32 %v336, 16
      %v396 = vor.u32 %v393, %v394
      %v397 = vsel %vm342, %v385, %v396
      %v399 = vshrl.u32 %v337, 16
      %v401 = vrot.slane %v399, 7
      %v402 = vshll.u32 %v337, 16
      %v404 = vor.u32 %v401, %v402
      %v405 = vsel %vm342, %v393, %v404
      %v407 = vshrl.u32 %v338, 16
      %v409 = vrot.slane %v407, 7
      %v410 = vshll.u32 %v338, 16
      %v412 = vor.u32 %v409, %v410
      %v413 = vsel %vm342, %v401, %v412
      %v415 = vshrl.u32 %v339, 16
      %v417 = vrot.slane %v415, 7
      %v418 = vshll.u32 %v339, 16
      %v420 = vor.u32 %v417, %v418
      %v421 = vsel %vm342, %v409, %v420
      %v423 = vshrl.u32 %v340, 16
      %v425 = vrot.slane %v423, 7
      %v426 = vshll.u32 %v340, 16
      %v428 = vor.u32 %v425, %v426
      %v429 = vsel %vm342, %v417, %v428
      %v431 = vshrl.u32 %v341, 16
      %v433 = vrot.slane %v431, 7
      %v434 = vshll.u32 %v341, 16
      %v436 = vor.u32 %v433, %v434
      %v437 = vsel %vm342, %v425, %v436
      %vm451 = vcmask 1040384
      %vm452 = vmand %vm451, %vm342
      %v453 = vsel %vm452, 0, %v349
      %v454 = vsel %vm452, %v433, 0
      %v455 = vlaneseq
      %v456 = vshrl.u32 %v455, 7
      %v457 = vadd.s32 %v456, 8
      %vm458 = vcmp.ne.s32.totalorder %v456, 0
      %vm459 = vcmp.ne.s32.totalorder %v457, 0
      %vm460 = vcmp.ne.s32.totalorder %v456, 15
      %vm461 = vcmp.ne.s32.totalorder %v457, 15
      %vm462 = vmpackc.low %vm458, %vm458
      %vm463 = vmpackc.low %vm459, %vm459
      %v464 = vsel %vm462, 65537, 0
      %v465 = vsel %vm463, 65537, 0
      %v466 = vunpack.c.l.b16 %v464
      %v467 = vunpack.c.l.b16 %v465
      %v468 = vpack.c.b16 %v467, %v466
      %vm469 = vcmp.ne.s16.totalorder %v468, 0
      %v470 = vsel %vm469, %v453, 0
      %v471 = vsel %vm469, %v357, 0
      %v472 = vsel %vm469, %v365, 0
      %v473 = vsel %vm469, %v373, 0
      %v474 = vsel %vm469, %v381, 0
      %v475 = vsel %vm469, %v389, 0
      %v476 = vsel %vm469, %v397, 0
      %v477 = vsel %vm469, %v405, 0
      %v478 = vsel %vm469, %v413, 0
      %v479 = vsel %vm469, %v421, 0
      %v480 = vld [vmem:[%s1] sm:$0xf]
      %s481 = scalar_lea.vmem %s1, 4
      %v482 = vld [vmem:[%s481] sm:$0xf]
      %vm483 = vsmask.f32 7424
      %v485 = vshrl.u32 %v453, 16
      %v487 = vshll.u32 %v453, 16
      %v489 = vrot.slane %v487, 1
      %v490 = vor.u32 %v485, %v489
      %v492 = vshll.u32 %v357, 16
      %v494 = vrot.slane %v492, 1
      %v495 = vsel %vm483, %v490, %v494
      %v496 = vshrl.u32 %v357, 16
      %v498 = vor.u32 %v496, %v494
      %v500 = vshll.u32 %v365, 16
      %v502 = vrot.slane %v500, 1
      %v503 = vsel %vm483, %v498, %v502
      %v504 = vshrl.u32 %v365, 16
      %v506 = vor.u32 %v504, %v502
      %v508 = vshll.u32 %v373, 16
      %v510 = vrot.slane %v508, 1
      %v511 = vsel %vm483, %v506, %v510
      %v512 = vshrl.u32 %v373, 16
      %v514 = vor.u32 %v512, %v510
      %v516 = vshll.u32 %v381, 16
      %v518 = vrot.slane %v516, 1
      %v519 = vsel %vm483, %v514, %v518
      %v520 = vshrl.u32 %v381, 16
      %v522 = vor.u32 %v520, %v518
      %v524 = vshll.u32 %v389, 16
      %v526 = vrot.slane %v524, 1
      %v527 = vsel %vm483, %v522, %v526
      %v528 = vshrl.u32 %v389, 16
      %v530 = vor.u32 %v528, %v526
      %v532 = vshll.u32 %v397, 16
      %v534 = vrot.slane %v532, 1
      %v535 = vsel %vm483, %v530, %v534
      %v536 = vshrl.u32 %v397, 16
      %v538 = vor.u32 %v536, %v534
      %v540 = vshll.u32 %v405, 16
      %v542 = vrot.slane %v540, 1
      %v543 = vsel %vm483, %v538, %v542
      %v544 = vshrl.u32 %v405, 16
      %v546 = vor.u32 %v544, %v542
      %v548 = vshll.u32 %v413, 16
      %v550 = vrot.slane %v548, 1
      %v551 = vsel %vm483, %v546, %v550
      %v552 = vshrl.u32 %v413, 16
      %v554 = vor.u32 %v552, %v550
      %v556 = vshll.u32 %v421, 16
      %v558 = vrot.slane %v556, 1
      %v559 = vsel %vm483, %v554, %v558
      %v560 = vshrl.u32 %v421, 16
      %v562 = vor.u32 %v560, %v558
      %v564 = vshll.u32 %v429, 16
      %v566 = vrot.slane %v564, 1
      %v567 = vsel %vm483, %v562, %v566
      %vm568 = vcmask 64512
      %v570 = vsel %vm568, %v495, 0
      %v573 = vsel %vm568, %v503, 0
      %v576 = vsel %vm568, %v511, 0
      %v579 = vsel %vm568, %v519, 0
      %v582 = vsel %vm568, %v527, 0
      %v585 = vsel %vm568, %v535, 0
      %v588 = vsel %vm568, %v543, 0
      %v591 = vsel %vm568, %v551, 0
      %v594 = vsel %vm568, %v559, 0
      %v597 = vsel %vm568, %v567, 0
      %vm599 = vcmask 1043456
      %v601 = vsel %vm599, %v482, 0
      %603 = vmatprep.subr.bf16.mxu0 0
      %604 = vmatpush1.bf16.msra.mxu0 0
      %605 = vmatprep.subr.bf16.mxu0 0
      %606 = vmatpush1.bf16.msra.mxu0 0
      %607 = vmatprep.subr.bf16.mxu0 0
      %608 = vmatpush1.bf16.msra.mxu0 0
      %609 = vmatprep.subr.bf16.mxu0 0
      %610 = vmatpush1.bf16.msra.mxu0 0
      %611 = vmatprep.subr.bf16.mxu0 0
      %612 = vmatpush1.bf16.msra.mxu0 0
      %613 = vmatprep.subr.bf16.mxu0 0
      %614 = vmatpush1.bf16.msra.mxu0 0
      %615 = vmatprep.subr.bf16.mxu0 0
      %616 = vmatpush1.bf16.msra.mxu0 0
      %617 = vmatprep.subr.bf16.mxu0 0
      %618 = vmatpush1.bf16.msra.mxu0 %v601
      %619 = vmatprep.subr.bf16.mxu0 0
      %620 = vmatpush2.bf16.msra.mxu0 0
      %621 = vmatprep.subr.bf16.mxu0 0
      %622 = vmatpush2.bf16.msra.mxu0 0
      %623 = vmatprep.subr.bf16.mxu0 0
      %624 = vmatpush2.bf16.msra.mxu0 0
      %625 = vmatprep.subr.bf16.mxu0 0
      %626 = vmatpush2.bf16.msra.mxu0 0
      %627 = vmatprep.subr.bf16.mxu0 0
      %628 = vmatpush2.bf16.msra.mxu0 0
      %629 = vmatprep.subr.bf16.mxu0 0
      %630 = vmatpush2.bf16.msra.mxu0 0
      %631 = vmatprep.subr.bf16.mxu0 0
      %632 = vmatpush2.bf16.msra.mxu0 0
      %633 = vmatprep.subr.bf16.mxu0 0
      %634 = vmatpush2.bf16.msra.mxu0 0
      %635 = vmatprep.mubr.bf16.mxu0 0
      %636 = vmatmul.mubr.bf16.gmra.mxu0 %v570
      %v637 = vpop.f32.mrf.mxu0
      %v638 = vadd.f32 0.0, %v637
      %v639 = vpop.f32.mrf.mxu0
      %v640 = vpop.f32.mrf.mxu0
      %v641 = vadd.f32 0.0, %v640
      %v642 = vpop.f32.mrf.mxu0
      %643 = vmatprep.mubr.bf16.mxu0 0
      %644 = vmatmul.mubr.bf16.gmra.mxu0 %v573
      %v645 = vpop.f32.mrf.mxu0
      %v646 = vadd.f32 0.0, %v645
      %v647 = vpop.f32.mrf.mxu0
      %v648 = vpop.f32.mrf.mxu0
      %v649 = vadd.f32 0.0, %v648
      %v650 = vpop.f32.mrf.mxu0
      %651 = vmatprep.mubr.bf16.mxu0 0
      %652 = vmatmul.mubr.bf16.gmra.mxu0 %v576
      %v653 = vpop.f32.mrf.mxu0
      %v654 = vadd.f32 0.0, %v653
      %v655 = vpop.f32.mrf.mxu0
      %v656 = vpop.f32.mrf.mxu0
      %v657 = vadd.f32 0.0, %v656
      %v658 = vpop.f32.mrf.mxu0
      %659 = vmatprep.mubr.bf16.mxu0 0
      %660 = vmatmul.mubr.bf16.gmra.mxu0 %v579
      %v661 = vpop.f32.mrf.mxu0
      %v662 = vadd.f32 0.0, %v661
      %v663 = vpop.f32.mrf.mxu0
      %v664 = vpop.f32.mrf.mxu0
      %v665 = vadd.f32 0.0, %v664
      %v666 = vpop.f32.mrf.mxu0
      %667 = vmatprep.mubr.bf16.mxu0 0
      %668 = vmatmul.mubr.bf16.gmra.mxu0 %v582
      %v669 = vpop.f32.mrf.mxu0
      %v670 = vadd.f32 0.0, %v669
      %v671 = vpop.f32.mrf.mxu0
      %v672 = vpop.f32.mrf.mxu0
      %v673 = vadd.f32 0.0, %v672
      %v674 = vpop.f32.mrf.mxu0
      %675 = vmatprep.mubr.bf16.mxu0 0
      %676 = vmatmul.mubr.bf16.gmra.mxu0 %v585
      %v677 = vpop.f32.mrf.mxu0
      %v678 = vadd.f32 0.0, %v677
      %v679 = vpop.f32.mrf.mxu0
      %v680 = vpop.f32.mrf.mxu0
      %v681 = vadd.f32 0.0, %v680
      %v682 = vpop.f32.mrf.mxu0
      %683 = vmatprep.mubr.bf16.mxu0 0
      %684 = vmatmul.mubr.bf16.gmra.mxu0 %v588
      %v685 = vpop.f32.mrf.mxu0
      %v686 = vadd.f32 0.0, %v685
      %v687 = vpop.f32.mrf.mxu0
      %v688 = vpop.f32.mrf.mxu0
      %v689 = vadd.f32 0.0, %v688
      %v690 = vpop.f32.mrf.mxu0
      %691 = vmatprep.mubr.bf16.mxu0 0
      %692 = vmatmul.mubr.bf16.gmra.mxu0 %v591
      %v693 = vpop.f32.mrf.mxu0
      %v694 = vadd.f32 0.0, %v693
      %v695 = vpop.f32.mrf.mxu0
      %v696 = vpop.f32.mrf.mxu0
      %v697 = vadd.f32 0.0, %v696
      %v698 = vpop.f32.mrf.mxu0
      %699 = vmatprep.mubr.bf16.mxu0 0
      %700 = vmatmul.mubr.bf16.gmra.mxu0 %v594
      %v701 = vpop.f32.mrf.mxu0
      %v702 = vadd.f32 0.0, %v701
      %v703 = vpop.f32.mrf.mxu0
      %v704 = vpop.f32.mrf.mxu0
      %v705 = vadd.f32 0.0, %v704
      %v706 = vpop.f32.mrf.mxu0
      %707 = vmatprep.mubr.bf16.mxu0 0
      %708 = vmatmul.mubr.bf16.gmra.mxu0 %v597
      %v709 = vpop.f32.mrf.mxu0
      %v710 = vadd.f32 0.0, %v709
      %v711 = vpop.f32.mrf.mxu0
      %v712 = vpop.f32.mrf.mxu0
      %v713 = vadd.f32 0.0, %v712
      %v714 = vpop.f32.mrf.mxu0
      %715 = vdwg.mxu0
      %v717 = vsel %vm568, %v470, 0
      %v720 = vsel %vm568, %v471, 0
      %v723 = vsel %vm568, %v472, 0
      %v726 = vsel %vm568, %v473, 0
      %v729 = vsel %vm568, %v474, 0
      %v732 = vsel %vm568, %v475, 0
      %v735 = vsel %vm568, %v476, 0
      %v738 = vsel %vm568, %v477, 0
      %v741 = vsel %vm568, %v478, 0
      %v744 = vsel %vm568, %v479, 0
      %v747 = vsel %vm599, %v480, 0
      %749 = vmatprep.subr.bf16.mxu0 0
      %750 = vmatpush1.bf16.msra.mxu0 0
      %751 = vmatprep.subr.bf16.mxu0 0
      %752 = vmatpush1.bf16.msra.mxu0 0
      %753 = vmatprep.subr.bf16.mxu0 0
      %754 = vmatpush1.bf16.msra.mxu0 0
      %755 = vmatprep.subr.bf16.mxu0 0
      %756 = vmatpush1.bf16.msra.mxu0 0
      %757 = vmatprep.subr.bf16.mxu0 0
      %758 = vmatpush1.bf16.msra.mxu0 0
      %759 = vmatprep.subr.bf16.mxu0 0
      %760 = vmatpush1.bf16.msra.mxu0 0
      %761 = vmatprep.subr.bf16.mxu0 0
      %762 = vmatpush1.bf16.msra.mxu0 0
      %763 = vmatprep.subr.bf16.mxu0 0
      %764 = vmatpush1.bf16.msra.mxu0 %v747
      %765 = vmatprep.subr.bf16.mxu0 0
      %766 = vmatpush2.bf16.msra.mxu0 0
      %767 = vmatprep.subr.bf16.mxu0 0
      %768 = vmatpush2.bf16.msra.mxu0 0
      %769 = vmatprep.subr.bf16.mxu0 0
      %770 = vmatpush2.bf16.msra.mxu0 0
      %771 = vmatprep.subr.bf16.mxu0 0
      %772 = vmatpush2.bf16.msra.mxu0 0
      %773 = vmatprep.subr.bf16.mxu0 0
      %774 = vmatpush2.bf16.msra.mxu0 0
      %775 = vmatprep.subr.bf16.mxu0 0
      %776 = vmatpush2.bf16.msra.mxu0 0
      %777 = vmatprep.subr.bf16.mxu0 0
      %778 = vmatpush2.bf16.msra.mxu0 0
      %779 = vmatprep.subr.bf16.mxu0 0
      %780 = vmatpush2.bf16.msra.mxu0 0
      %781 = vmatprep.mubr.bf16.mxu0 0
      %782 = vmatmul.mubr.bf16.gmra.mxu0 %v717
      %v783 = vpop.f32.mrf.mxu0
      %v784 = vadd.f32 %v638, %v783
      %v785 = vpop.f32.mrf.mxu0
      %v786 = vpop.f32.mrf.mxu0
      %v787 = vadd.f32 %v641, %v786
      %v788 = vpop.f32.mrf.mxu0
      %789 = vmatprep.mubr.bf16.mxu0 0
      %790 = vmatmul.mubr.bf16.gmra.mxu0 %v720
      %v791 = vpop.f32.mrf.mxu0
      %v792 = vadd.f32 %v646, %v791
      %v793 = vpop.f32.mrf.mxu0
      %v794 = vpop.f32.mrf.mxu0
      %v795 = vadd.f32 %v649, %v794
      %v796 = vpop.f32.mrf.mxu0
      %797 = vmatprep.mubr.bf16.mxu0 0
      %798 = vmatmul.mubr.bf16.gmra.mxu0 %v723
      %v799 = vpop.f32.mrf.mxu0
      %v800 = vadd.f32 %v654, %v799
      %v801 = vpop.f32.mrf.mxu0
      %v802 = vpop.f32.mrf.mxu0
      %v803 = vadd.f32 %v657, %v802
      %v804 = vpop.f32.mrf.mxu0
      %805 = vmatprep.mubr.bf16.mxu0 0
      %806 = vmatmul.mubr.bf16.gmra.mxu0 %v726
      %v807 = vpop.f32.mrf.mxu0
      %v808 = vadd.f32 %v662, %v807
      %v809 = vpop.f32.mrf.mxu0
      %v810 = vpop.f32.mrf.mxu0
      %v811 = vadd.f32 %v665, %v810
      %v812 = vpop.f32.mrf.mxu0
      %813 = vmatprep.mubr.bf16.mxu0 0
      %814 = vmatmul.mubr.bf16.gmra.mxu0 %v729
      %v815 = vpop.f32.mrf.mxu0
      %v816 = vadd.f32 %v670, %v815
      %v817 = vpop.f32.mrf.mxu0
      %v818 = vpop.f32.mrf.mxu0
      %v819 = vadd.f32 %v673, %v818
      %v820 = vpop.f32.mrf.mxu0
      %821 = vmatprep.mubr.bf16.mxu0 0
      %822 = vmatmul.mubr.bf16.gmra.mxu0 %v732
      %v823 = vpop.f32.mrf.mxu0
      %v824 = vadd.f32 %v678, %v823
      %v825 = vpop.f32.mrf.mxu0
      %v826 = vpop.f32.mrf.mxu0
      %v827 = vadd.f32 %v681, %v826
      %v828 = vpop.f32.mrf.mxu0
      %829 = vmatprep.mubr.bf16.mxu0 0
      %830 = vmatmul.mubr.bf16.gmra.mxu0 %v735
      %v831 = vpop.f32.mrf.mxu0
      %v832 = vadd.f32 %v686, %v831
      %v833 = vpop.f32.mrf.mxu0
      %v834 = vpop.f32.mrf.mxu0
      %v835 = vadd.f32 %v689, %v834
      %v836 = vpop.f32.mrf.mxu0
      %837 = vmatprep.mubr.bf16.mxu0 0
      %838 = vmatmul.mubr.bf16.gmra.mxu0 %v738
      %v839 = vpop.f32.mrf.mxu0
      %v840 = vadd.f32 %v694, %v839
      %v841 = vpop.f32.mrf.mxu0
      %v842 = vpop.f32.mrf.mxu0
      %v843 = vadd.f32 %v697, %v842
      %v844 = vpop.f32.mrf.mxu0
      %845 = vmatprep.mubr.bf16.mxu0 0
      %846 = vmatmul.mubr.bf16.gmra.mxu0 %v741
      %v847 = vpop.f32.mrf.mxu0
      %v848 = vadd.f32 %v702, %v847
      %v849 = vpop.f32.mrf.mxu0
      %v850 = vpop.f32.mrf.mxu0
      %v851 = vadd.f32 %v705, %v850
      %v852 = vpop.f32.mrf.mxu0
      %853 = vmatprep.mubr.bf16.mxu0 0
      %854 = vmatmul.mubr.bf16.gmra.mxu0 %v744
      %v855 = vpop.f32.mrf.mxu0
      %v856 = vadd.f32 %v710, %v855
      %v857 = vpop.f32.mrf.mxu0
      %v858 = vpop.f32.mrf.mxu0
      %v859 = vadd.f32 %v713, %v858
      %v860 = vpop.f32.mrf.mxu0
      %861 = vdwg.mxu0
      %vm862 = vmpackc.low %vm460, %vm460
      %vm863 = vmpackc.low %vm461, %vm461
      %v864 = vsel %vm862, 65537, 0
      %v865 = vsel %vm863, 65537, 0
      %v866 = vunpack.c.l.b16 %v864
      %v867 = vunpack.c.l.b16 %v865
      %v868 = vpack.c.b16 %v867, %v866
      %v869 = vrot.slane %v868, 7
      %v870 = vsel %vm451, %v869, %v869
      %vm871 = vcmp.ne.s16.totalorder %v869, 0
      %vm872 = vcmp.ne.s16.totalorder %v870, 0
      %v873 = vsel %vm871, %v453, 0
      %v874 = vsel %vm872, %v357, 0
      %v875 = vsel %vm872, %v365, 0
      %v876 = vsel %vm872, %v373, 0
      %v877 = vsel %vm872, %v381, 0
      %v878 = vsel %vm872, %v389, 0
      %v879 = vsel %vm872, %v397, 0
      %v880 = vsel %vm872, %v405, 0
      %v881 = vsel %vm872, %v413, 0
      %v882 = vsel %vm872, %v421, 0
      %v883 = vsel %vm871, %v429, 0
      %s884 = scalar_lea.vmem %s1, 8
      %v885 = vld [vmem:[%s884] sm:$0xf]
      %vm897 = vcmask 1046528
      %v898 = vrot.slane %v873, 1
      %v899 = vrot.slane %v874, 1
      %v900 = vsel %vm897, %v898, %v899
      %v901 = vrot.slane %v875, 1
      %v902 = vsel %vm897, %v899, %v901
      %v903 = vrot.slane %v876, 1
      %v904 = vsel %vm897, %v901, %v903
      %v905 = vrot.slane %v877, 1
      %v906 = vsel %vm897, %v903, %v905
      %v907 = vrot.slane %v878, 1
      %v908 = vsel %vm897, %v905, %v907
      %v909 = vrot.slane %v879, 1
      %v910 = vsel %vm897, %v907, %v909
      %v911 = vrot.slane %v880, 1
      %v912 = vsel %vm897, %v909, %v911
      %v913 = vrot.slane %v881, 1
      %v914 = vsel %vm897, %v911, %v913
      %v915 = vrot.slane %v882, 1
      %v916 = vsel %vm897, %v913, %v915
      %v917 = vrot.slane %v883, 1
      %v918 = vsel %vm897, %v915, %v917
      %v920 = vsel %vm568, %v900, 0
      %v923 = vsel %vm568, %v902, 0
      %v926 = vsel %vm568, %v904, 0
      %v929 = vsel %vm568, %v906, 0
      %v932 = vsel %vm568, %v908, 0
      %v935 = vsel %vm568, %v910, 0
      %v938 = vsel %vm568, %v912, 0
      %v941 = vsel %vm568, %v914, 0
      %v944 = vsel %vm568, %v916, 0
      %v947 = vsel %vm568, %v918, 0
      %v950 = vsel %vm599, %v885, 0
      %952 = vmatprep.subr.bf16.mxu0 0
      %953 = vmatpush1.bf16.msra.mxu0 0
      %954 = vmatprep.subr.bf16.mxu0 0
      %955 = vmatpush1.bf16.msra.mxu0 0
      %956 = vmatprep.subr.bf16.mxu0 0
      %957 = vmatpush1.bf16.msra.mxu0 0
      %958 = vmatprep.subr.bf16.mxu0 0
      %959 = vmatpush1.bf16.msra.mxu0 0
      %960 = vmatprep.subr.bf16.mxu0 0
      %961 = vmatpush1.bf16.msra.mxu0 0
      %962 = vmatprep.subr.bf16.mxu0 0
      %963 = vmatpush1.bf16.msra.mxu0 0
      %964 = vmatprep.subr.bf16.mxu0 0
      %965 = vmatpush1.bf16.msra.mxu0 0
      %966 = vmatprep.subr.bf16.mxu0 0
      %967 = vmatpush1.bf16.msra.mxu0 %v950
      %968 = vmatprep.subr.bf16.mxu0 0
      %969 = vmatpush2.bf16.msra.mxu0 0
      %970 = vmatprep.subr.bf16.mxu0 0
      %971 = vmatpush2.bf16.msra.mxu0 0
      %972 = vmatprep.subr.bf16.mxu0 0
      %973 = vmatpush2.bf16.msra.mxu0 0
      %974 = vmatprep.subr.bf16.mxu0 0
      %975 = vmatpush2.bf16.msra.mxu0 0
      %976 = vmatprep.subr.bf16.mxu0 0
      %977 = vmatpush2.bf16.msra.mxu0 0
      %978 = vmatprep.subr.bf16.mxu0 0
      %979 = vmatpush2.bf16.msra.mxu0 0
      %980 = vmatprep.subr.bf16.mxu0 0
      %981 = vmatpush2.bf16.msra.mxu0 0
      %982 = vmatprep.subr.bf16.mxu0 0
      %983 = vmatpush2.bf16.msra.mxu0 0
      %984 = vmatprep.mubr.bf16.mxu0 0
      %985 = vmatmul.mubr.bf16.gmra.mxu0 %v920
      %v986 = vpop.f32.mrf.mxu0
      %v987 = vadd.f32 0.0, %v986
      %v988 = vpop.f32.mrf.mxu0
      %v989 = vpop.f32.mrf.mxu0
      %v990 = vadd.f32 0.0, %v989
      %v991 = vpop.f32.mrf.mxu0
      %992 = vmatprep.mubr.bf16.mxu0 0
      %993 = vmatmul.mubr.bf16.gmra.mxu0 %v923
      %v994 = vpop.f32.mrf.mxu0
      %v995 = vadd.f32 0.0, %v994
      %v996 = vpop.f32.mrf.mxu0
      %v997 = vpop.f32.mrf.mxu0
      %v998 = vadd.f32 0.0, %v997
      %v999 = vpop.f32.mrf.mxu0
      %1000 = vmatprep.mubr.bf16.mxu0 0
      %1001 = vmatmul.mubr.bf16.gmra.mxu0 %v926
      %v1002 = vpop.f32.mrf.mxu0
      %v1003 = vadd.f32 0.0, %v1002
      %v1004 = vpop.f32.mrf.mxu0
      %v1005 = vpop.f32.mrf.mxu0
      %v1006 = vadd.f32 0.0, %v1005
      %v1007 = vpop.f32.mrf.mxu0
      %1008 = vmatprep.mubr.bf16.mxu0 0
      %1009 = vmatmul.mubr.bf16.gmra.mxu0 %v929
      %v1010 = vpop.f32.mrf.mxu0
      %v1011 = vadd.f32 0.0, %v1010
      %v1012 = vpop.f32.mrf.mxu0
      %v1013 = vpop.f32.mrf.mxu0
      %v1014 = vadd.f32 0.0, %v1013
      %v1015 = vpop.f32.mrf.mxu0
      %1016 = vmatprep.mubr.bf16.mxu0 0
      %1017 = vmatmul.mubr.bf16.gmra.mxu0 %v932
      %v1018 = vpop.f32.mrf.mxu0
      %v1019 = vadd.f32 0.0, %v1018
      %v1020 = vpop.f32.mrf.mxu0
      %v1021 = vpop.f32.mrf.mxu0
      %v1022 = vadd.f32 0.0, %v1021
      %v1023 = vpop.f32.mrf.mxu0
      %1024 = vmatprep.mubr.bf16.mxu0 0
      %1025 = vmatmul.mubr.bf16.gmra.mxu0 %v935
      %v1026 = vpop.f32.mrf.mxu0
      %v1027 = vadd.f32 0.0, %v1026
      %v1028 = vpop.f32.mrf.mxu0
      %v1029 = vpop.f32.mrf.mxu0
      %v1030 = vadd.f32 0.0, %v1029
      %v1031 = vpop.f32.mrf.mxu0
      %1032 = vmatprep.mubr.bf16.mxu0 0
      %1033 = vmatmul.mubr.bf16.gmra.mxu0 %v938
      %v1034 = vpop.f32.mrf.mxu0
      %v1035 = vadd.f32 0.0, %v1034
      %v1036 = vpop.f32.mrf.mxu0
      %v1037 = vpop.f32.mrf.mxu0
      %v1038 = vadd.f32 0.0, %v1037
      %v1039 = vpop.f32.mrf.mxu0
      %1040 = vmatprep.mubr.bf16.mxu0 0
      %1041 = vmatmul.mubr.bf16.gmra.mxu0 %v941
      %v1042 = vpop.f32.mrf.mxu0
      %v1043 = vadd.f32 0.0, %v1042
      %v1044 = vpop.f32.mrf.mxu0
      %v1045 = vpop.f32.mrf.mxu0
      %v1046 = vadd.f32 0.0, %v1045
      %v1047 = vpop.f32.mrf.mxu0
      %1048 = vmatprep.mubr.bf16.mxu0 0
      %1049 = vmatmul.mubr.bf16.gmra.mxu0 %v944
      %v1050 = vpop.f32.mrf.mxu0
      %v1051 = vadd.f32 0.0, %v1050
      %v1052 = vpop.f32.mrf.mxu0
      %v1053 = vpop.f32.mrf.mxu0
      %v1054 = vadd.f32 0.0, %v1053
      %v1055 = vpop.f32.mrf.mxu0
      %1056 = vmatprep.mubr.bf16.mxu0 0
      %1057 = vmatmul.mubr.bf16.gmra.mxu0 %v947
      %v1058 = vpop.f32.mrf.mxu0
      %v1059 = vadd.f32 0.0, %v1058
      %v1060 = vpop.f32.mrf.mxu0
      %v1061 = vpop.f32.mrf.mxu0
      %v1062 = vadd.f32 0.0, %v1061
      %v1063 = vpop.f32.mrf.mxu0
      %1064 = vdwg.mxu0
      %v1065 = vadd.f32 %v784, %v987
      %v1066 = vadd.f32 %v787, %v990
      %v1067 = vadd.f32 %v792, %v995
      %v1068 = vadd.f32 %v795, %v998
      %v1069 = vadd.f32 %v800, %v1003
      %v1070 = vadd.f32 %v803, %v1006
      %v1071 = vadd.f32 %v808, %v1011
      %v1072 = vadd.f32 %v811, %v1014
      %v1073 = vadd.f32 %v816, %v1019
      %v1074 = vadd.f32 %v819, %v1022
      %v1075 = vadd.f32 %v824, %v1027
      %v1076 = vadd.f32 %v827, %v1030
      %v1077 = vadd.f32 %v832, %v1035
      %v1078 = vadd.f32 %v835, %v1038
      %v1079 = vadd.f32 %v840, %v1043
      %v1080 = vadd.f32 %v843, %v1046
      %v1081 = vadd.f32 %v848, %v1051
      %v1082 = vadd.f32 %v851, %v1054
      %v1083 = vadd.f32 %v856, %v1059
      %v1084 = vadd.f32 %v859, %v1062
      %v1085 = vsel %vm469, %v429, 0
      %s1086 = scalar_lea.vmem %s1, 12
      %v1087 = vld [vmem:[%s1086] sm:$0xf]
      %v1089 = vsel %vm568, %v1085, 0
      %v1092 = vsel %vm599, %v1087, 0
      %1094 = vmatprep.subr.bf16.mxu0 0
      %1095 = vmatpush1.bf16.msra.mxu0 0
      %1096 = vmatprep.subr.bf16.mxu0 0
      %1097 = vmatpush1.bf16.msra.mxu0 0
      %1098 = vmatprep.subr.bf16.mxu0 0
      %1099 = vmatpush1.bf16.msra.mxu0 0
      %1100 = vmatprep.subr.bf16.mxu0 0
      %1101 = vmatpush1.bf16.msra.mxu0 0
      %1102 = vmatprep.subr.bf16.mxu0 0
      %1103 = vmatpush1.bf16.msra.mxu0 0
      %1104 = vmatprep.subr.bf16.mxu0 0
      %1105 = vmatpush1.bf16.msra.mxu0 0
      %1106 = vmatprep.subr.bf16.mxu0 0
      %1107 = vmatpush1.bf16.msra.mxu0 0
      %1108 = vmatprep.subr.bf16.mxu0 0
      %1109 = vmatpush1.bf16.msra.mxu0 %v1092
      %1110 = vmatprep.subr.bf16.mxu0 0
      %1111 = vmatpush2.bf16.msra.mxu0 0
      %1112 = vmatprep.subr.bf16.mxu0 0
      %1113 = vmatpush2.bf16.msra.mxu0 0
      %1114 = vmatprep.subr.bf16.mxu0 0
      %1115 = vmatpush2.bf16.msra.mxu0 0
      %1116 = vmatprep.subr.bf16.mxu0 0
      %1117 = vmatpush2.bf16.msra.mxu0 0
      %1118 = vmatprep.subr.bf16.mxu0 0
      %1119 = vmatpush2.bf16.msra.mxu0 0
      %1120 = vmatprep.subr.bf16.mxu0 0
      %1121 = vmatpush2.bf16.msra.mxu0 0
      %1122 = vmatprep.subr.bf16.mxu0 0
      %1123 = vmatpush2.bf16.msra.mxu0 0
      %1124 = vmatprep.subr.bf16.mxu0 0
      %1125 = vmatpush2.bf16.msra.mxu0 0
      %1126 = vmatprep.mubr.bf16.mxu0 0
      %1127 = vmatmul.mubr.bf16.gmra.mxu0 %v720
      %v1128 = vpop.f32.mrf.mxu0
      %v1129 = vadd.f32 0.0, %v1128
      %v1130 = vpop.f32.mrf.mxu0
      %v1131 = vpop.f32.mrf.mxu0
      %v1132 = vadd.f32 0.0, %v1131
      %v1133 = vpop.f32.mrf.mxu0
      %1134 = vmatprep.mubr.bf16.mxu0 0
      %1135 = vmatmul.mubr.bf16.gmra.mxu0 %v723
      %v1136 = vpop.f32.mrf.mxu0
      %v1137 = vadd.f32 0.0, %v1136
      %v1138 = vpop.f32.mrf.mxu0
      %v1139 = vpop.f32.mrf.mxu0
      %v1140 = vadd.f32 0.0, %v1139
      %v1141 = vpop.f32.mrf.mxu0
      %1142 = vmatprep.mubr.bf16.mxu0 0
      %1143 = vmatmul.mubr.bf16.gmra.mxu0 %v726
      %v1144 = vpop.f32.mrf.mxu0
      %v1145 = vadd.f32 0.0, %v1144
      %v1146 = vpop.f32.mrf.mxu0
      %v1147 = vpop.f32.mrf.mxu0
      %v1148 = vadd.f32 0.0, %v1147
      %v1149 = vpop.f32.mrf.mxu0
      %1150 = vmatprep.mubr.bf16.mxu0 0
      %1151 = vmatmul.mubr.bf16.gmra.mxu0 %v729
      %v1152 = vpop.f32.mrf.mxu0
      %v1153 = vadd.f32 0.0, %v1152
      %v1154 = vpop.f32.mrf.mxu0
      %v1155 = vpop.f32.mrf.mxu0
      %v1156 = vadd.f32 0.0, %v1155
      %v1157 = vpop.f32.mrf.mxu0
      %1158 = vmatprep.mubr.bf16.mxu0 0
      %1159 = vmatmul.mubr.bf16.gmra.mxu0 %v732
      %v1160 = vpop.f32.mrf.mxu0
      %v1161 = vadd.f32 0.0, %v1160
      %v1162 = vpop.f32.mrf.mxu0
      %v1163 = vpop.f32.mrf.mxu0
      %v1164 = vadd.f32 0.0, %v1163
      %v1165 = vpop.f32.mrf.mxu0
      %1166 = vmatprep.mubr.bf16.mxu0 0
      %1167 = vmatmul.mubr.bf16.gmra.mxu0 %v735
      %v1168 = vpop.f32.mrf.mxu0
      %v1169 = vadd.f32 0.0, %v1168
      %v1170 = vpop.f32.mrf.mxu0
      %v1171 = vpop.f32.mrf.mxu0
      %v1172 = vadd.f32 0.0, %v1171
      %v1173 = vpop.f32.mrf.mxu0
      %1174 = vmatprep.mubr.bf16.mxu0 0
      %1175 = vmatmul.mubr.bf16.gmra.mxu0 %v738
      %v1176 = vpop.f32.mrf.mxu0
      %v1177 = vadd.f32 0.0, %v1176
      %v1178 = vpop.f32.mrf.mxu0
      %v1179 = vpop.f32.mrf.mxu0
      %v1180 = vadd.f32 0.0, %v1179
      %v1181 = vpop.f32.mrf.mxu0
      %1182 = vmatprep.mubr.bf16.mxu0 0
      %1183 = vmatmul.mubr.bf16.gmra.mxu0 %v741
      %v1184 = vpop.f32.mrf.mxu0
      %v1185 = vadd.f32 0.0, %v1184
      %v1186 = vpop.f32.mrf.mxu0
      %v1187 = vpop.f32.mrf.mxu0
      %v1188 = vadd.f32 0.0, %v1187
      %v1189 = vpop.f32.mrf.mxu0
      %1190 = vmatprep.mubr.bf16.mxu0 0
      %1191 = vmatmul.mubr.bf16.gmra.mxu0 %v744
      %v1192 = vpop.f32.mrf.mxu0
      %v1193 = vadd.f32 0.0, %v1192
      %v1194 = vpop.f32.mrf.mxu0
      %v1195 = vpop.f32.mrf.mxu0
      %v1196 = vadd.f32 0.0, %v1195
      %v1197 = vpop.f32.mrf.mxu0
      %1198 = vmatprep.mubr.bf16.mxu0 0
      %1199 = vmatmul.mubr.bf16.gmra.mxu0 %v1089
      %v1200 = vpop.f32.mrf.mxu0
      %v1201 = vadd.f32 0.0, %v1200
      %v1202 = vpop.f32.mrf.mxu0
      %v1203 = vpop.f32.mrf.mxu0
      %v1204 = vadd.f32 0.0, %v1203
      %v1205 = vpop.f32.mrf.mxu0
      %1206 = vdwg.mxu0
      %v1207 = vadd.f32 %v1065, %v1129
      %v1208 = vadd.f32 %v1066, %v1132
      %v1209 = vadd.f32 %v1067, %v1137
      %v1210 = vadd.f32 %v1068, %v1140
      %v1211 = vadd.f32 %v1069, %v1145
      %v1212 = vadd.f32 %v1070, %v1148
      %v1213 = vadd.f32 %v1071, %v1153
      %v1214 = vadd.f32 %v1072, %v1156
      %v1215 = vadd.f32 %v1073, %v1161
      %v1216 = vadd.f32 %v1074, %v1164
      %v1217 = vadd.f32 %v1075, %v1169
      %v1218 = vadd.f32 %v1076, %v1172
      %v1219 = vadd.f32 %v1077, %v1177
      %v1220 = vadd.f32 %v1078, %v1180
      %v1221 = vadd.f32 %v1079, %v1185
      %v1222 = vadd.f32 %v1080, %v1188
      %v1223 = vadd.f32 %v1081, %v1193
      %v1224 = vadd.f32 %v1082, %v1196
      %v1225 = vadd.f32 %v1083, %v1201
      %v1226 = vadd.f32 %v1084, %v1204
      %s1227 = scalar_lea.vmem %s1, 16
      %v1228 = vld [vmem:[%s1227] sm:$0xf]
      %v1229 = vshrl.u32 %v429, 16
      %v1231 = vor.u32 %v1229, %v566
      %v1233 = vshll.u32 %v437, 16
      %v1235 = vrot.slane %v1233, 1
      %v1236 = vsel %vm483, %v1231, %v1235
      %v1238 = vsel %vm568, %v1236, 0
      %v1241 = vsel %vm599, %v1228, 0
      %1243 = vmatprep.subr.bf16.mxu0 0
      %1244 = vmatpush1.bf16.msra.mxu0 0
      %1245 = vmatprep.subr.bf16.mxu0 0
      %1246 = vmatpush1.bf16.msra.mxu0 0
      %1247 = vmatprep.subr.bf16.mxu0 0
      %1248 = vmatpush1.bf16.msra.mxu0 0
      %1249 = vmatprep.subr.bf16.mxu0 0
      %1250 = vmatpush1.bf16.msra.mxu0 0
      %1251 = vmatprep.subr.bf16.mxu0 0
      %1252 = vmatpush1.bf16.msra.mxu0 0
      %1253 = vmatprep.subr.bf16.mxu0 0
      %1254 = vmatpush1.bf16.msra.mxu0 0
      %1255 = vmatprep.subr.bf16.mxu0 0
      %1256 = vmatpush1.bf16.msra.mxu0 0
      %1257 = vmatprep.subr.bf16.mxu0 0
      %1258 = vmatpush1.bf16.msra.mxu0 %v1241
      %1259 = vmatprep.subr.bf16.mxu0 0
      %1260 = vmatpush2.bf16.msra.mxu0 0
      %1261 = vmatprep.subr.bf16.mxu0 0
      %1262 = vmatpush2.bf16.msra.mxu0 0
      %1263 = vmatprep.subr.bf16.mxu0 0
      %1264 = vmatpush2.bf16.msra.mxu0 0
      %1265 = vmatprep.subr.bf16.mxu0 0
      %1266 = vmatpush2.bf16.msra.mxu0 0
      %1267 = vmatprep.subr.bf16.mxu0 0
      %1268 = vmatpush2.bf16.msra.mxu0 0
      %1269 = vmatprep.subr.bf16.mxu0 0
      %1270 = vmatpush2.bf16.msra.mxu0 0
      %1271 = vmatprep.subr.bf16.mxu0 0
      %1272 = vmatpush2.bf16.msra.mxu0 0
      %1273 = vmatprep.subr.bf16.mxu0 0
      %1274 = vmatpush2.bf16.msra.mxu0 0
      %1275 = vmatprep.mubr.bf16.mxu0 0
      %1276 = vmatmul.mubr.bf16.gmra.mxu0 %v573
      %v1277 = vpop.f32.mrf.mxu0
      %v1278 = vadd.f32 0.0, %v1277
      %v1279 = vpop.f32.mrf.mxu0
      %v1280 = vpop.f32.mrf.mxu0
      %v1281 = vadd.f32 0.0, %v1280
      %v1282 = vpop.f32.mrf.mxu0
      %1283 = vmatprep.mubr.bf16.mxu0 0
      %1284 = vmatmul.mubr.bf16.gmra.mxu0 %v576
      %v1285 = vpop.f32.mrf.mxu0
      %v1286 = vadd.f32 0.0, %v1285
      %v1287 = vpop.f32.mrf.mxu0
      %v1288 = vpop.f32.mrf.mxu0
      %v1289 = vadd.f32 0.0, %v1288
      %v1290 = vpop.f32.mrf.mxu0
      %1291 = vmatprep.mubr.bf16.mxu0 0
      %1292 = vmatmul.mubr.bf16.gmra.mxu0 %v579
      %v1293 = vpop.f32.mrf.mxu0
      %v1294 = vadd.f32 0.0, %v1293
      %v1295 = vpop.f32.mrf.mxu0
      %v1296 = vpop.f32.mrf.mxu0
      %v1297 = vadd.f32 0.0, %v1296
      %v1298 = vpop.f32.mrf.mxu0
      %1299 = vmatprep.mubr.bf16.mxu0 0
      %1300 = vmatmul.mubr.bf16.gmra.mxu0 %v582
      %v1301 = vpop.f32.mrf.mxu0
      %v1302 = vadd.f32 0.0, %v1301
      %v1303 = vpop.f32.mrf.mxu0
      %v1304 = vpop.f32.mrf.mxu0
      %v1305 = vadd.f32 0.0, %v1304
      %v1306 = vpop.f32.mrf.mxu0
      %1307 = vmatprep.mubr.bf16.mxu0 0
      %1308 = vmatmul.mubr.bf16.gmra.mxu0 %v585
      %v1309 = vpop.f32.mrf.mxu0
      %v1310 = vadd.f32 0.0, %v1309
      %v1311 = vpop.f32.mrf.mxu0
      %v1312 = vpop.f32.mrf.mxu0
      %v1313 = vadd.f32 0.0, %v1312
      %v1314 = vpop.f32.mrf.mxu0
      %1315 = vmatprep.mubr.bf16.mxu0 0
      %1316 = vmatmul.mubr.bf16.gmra.mxu0 %v588
      %v1317 = vpop.f32.mrf.mxu0
      %v1318 = vadd.f32 0.0, %v1317
      %v1319 = vpop.f32.mrf.mxu0
      %v1320 = vpop.f32.mrf.mxu0
      %v1321 = vadd.f32 0.0, %v1320
      %v1322 = vpop.f32.mrf.mxu0
      %1323 = vmatprep.mubr.bf16.mxu0 0
      %1324 = vmatmul.mubr.bf16.gmra.mxu0 %v591
      %v1325 = vpop.f32.mrf.mxu0
      %v1326 = vadd.f32 0.0, %v1325
      %v1327 = vpop.f32.mrf.mxu0
      %v1328 = vpop.f32.mrf.mxu0
      %v1329 = vadd.f32 0.0, %v1328
      %v1330 = vpop.f32.mrf.mxu0
      %1331 = vmatprep.mubr.bf16.mxu0 0
      %1332 = vmatmul.mubr.bf16.gmra.mxu0 %v594
      %v1333 = vpop.f32.mrf.mxu0
      %v1334 = vadd.f32 0.0, %v1333
      %v1335 = vpop.f32.mrf.mxu0
      %v1336 = vpop.f32.mrf.mxu0
      %v1337 = vadd.f32 0.0, %v1336
      %v1338 = vpop.f32.mrf.mxu0
      %1339 = vmatprep.mubr.bf16.mxu0 0
      %1340 = vmatmul.mubr.bf16.gmra.mxu0 %v597
      %v1341 = vpop.f32.mrf.mxu0
      %v1342 = vadd.f32 0.0, %v1341
      %v1343 = vpop.f32.mrf.mxu0
      %v1344 = vpop.f32.mrf.mxu0
      %v1345 = vadd.f32 0.0, %v1344
      %v1346 = vpop.f32.mrf.mxu0
      %1347 = vmatprep.mubr.bf16.mxu0 0
      %1348 = vmatmul.mubr.bf16.gmra.mxu0 %v1238
      %v1349 = vpop.f32.mrf.mxu0
      %v1350 = vadd.f32 0.0, %v1349
      %v1351 = vpop.f32.mrf.mxu0
      %v1352 = vpop.f32.mrf.mxu0
      %v1353 = vadd.f32 0.0, %v1352
      %v1354 = vpop.f32.mrf.mxu0
      %1355 = vdwg.mxu0
      %v1356 = vadd.f32 %v1207, %v1278
      %v1357 = vadd.f32 %v1208, %v1281
      %v1358 = vadd.f32 %v1209, %v1286
      %v1359 = vadd.f32 %v1210, %v1289
      %v1360 = vadd.f32 %v1211, %v1294
      %v1361 = vadd.f32 %v1212, %v1297
      %v1362 = vadd.f32 %v1213, %v1302
      %v1363 = vadd.f32 %v1214, %v1305
      %v1364 = vadd.f32 %v1215, %v1310
      %v1365 = vadd.f32 %v1216, %v1313
      %v1366 = vadd.f32 %v1217, %v1318
      %v1367 = vadd.f32 %v1218, %v1321
      %v1368 = vadd.f32 %v1219, %v1326
      %v1369 = vadd.f32 %v1220, %v1329
      %v1370 = vadd.f32 %v1221, %v1334
      %v1371 = vadd.f32 %v1222, %v1337
      %v1372 = vadd.f32 %v1223, %v1342
      %v1373 = vadd.f32 %v1224, %v1345
      %v1374 = vadd.f32 %v1225, %v1350
      %v1375 = vadd.f32 %v1226, %v1353
      %v1376 = vsel %vm871, %v357, 0
      %v1377 = vsel %vm872, %v429, 0
      %v1378 = vsel %vm871, %v437, 0
      %s1379 = scalar_lea.vmem %s1, 20
      %v1380 = vld [vmem:[%s1379] sm:$0xf]
      %v1384 = vrot.slane %v1376, 1
      %v1385 = vsel %vm897, %v1384, %v901
      %v1386 = vrot.slane %v1377, 1
      %v1387 = vsel %vm897, %v915, %v1386
      %v1388 = vrot.slane %v1378, 1
      %v1389 = vsel %vm897, %v1386, %v1388
      %v1391 = vsel %vm568, %v1385, 0
      %v1394 = vsel %vm568, %v1387, 0
      %v1397 = vsel %vm568, %v1389, 0
      %v1400 = vsel %vm599, %v1380, 0
      %1402 = vmatprep.subr.bf16.mxu0 0
      %1403 = vmatpush1.bf16.msra.mxu0 0
      %1404 = vmatprep.subr.bf16.mxu0 0
      %1405 = vmatpush1.bf16.msra.mxu0 0
      %1406 = vmatprep.subr.bf16.mxu0 0
      %1407 = vmatpush1.bf16.msra.mxu0 0
      %1408 = vmatprep.subr.bf16.mxu0 0
      %1409 = vmatpush1.bf16.msra.mxu0 0
      %1410 = vmatprep.subr.bf16.mxu0 0
      %1411 = vmatpush1.bf16.msra.mxu0 0
      %1412 = vmatprep.subr.bf16.mxu0 0
      %1413 = vmatpush1.bf16.msra.mxu0 0
      %1414 = vmatprep.subr.bf16.mxu0 0
      %1415 = vmatpush1.bf16.msra.mxu0 0
      %1416 = vmatprep.subr.bf16.mxu0 0
      %1417 = vmatpush1.bf16.msra.mxu0 %v1400
      %1418 = vmatprep.subr.bf16.mxu0 0
      %1419 = vmatpush2.bf16.msra.mxu0 0
      %1420 = vmatprep.subr.bf16.mxu0 0
      %1421 = vmatpush2.bf16.msra.mxu0 0
      %1422 = vmatprep.subr.bf16.mxu0 0
      %1423 = vmatpush2.bf16.msra.mxu0 0
      %1424 = vmatprep.subr.bf16.mxu0 0
      %1425 = vmatpush2.bf16.msra.mxu0 0
      %1426 = vmatprep.subr.bf16.mxu0 0
      %1427 = vmatpush2.bf16.msra.mxu0 0
      %1428 = vmatprep.subr.bf16.mxu0 0
      %1429 = vmatpush2.bf16.msra.mxu0 0
      %1430 = vmatprep.subr.bf16.mxu0 0
      %1431 = vmatpush2.bf16.msra.mxu0 0
      %1432 = vmatprep.subr.bf16.mxu0 0
      %1433 = vmatpush2.bf16.msra.mxu0 0
      %1434 = vmatprep.mubr.bf16.mxu0 0
      %1435 = vmatmul.mubr.bf16.gmra.mxu0 %v1391
      %v1436 = vpop.f32.mrf.mxu0
      %v1437 = vadd.f32 0.0, %v1436
      %v1438 = vpop.f32.mrf.mxu0
      %v1439 = vpop.f32.mrf.mxu0
      %v1440 = vadd.f32 0.0, %v1439
      %v1441 = vpop.f32.mrf.mxu0
      %1442 = vmatprep.mubr.bf16.mxu0 0
      %1443 = vmatmul.mubr.bf16.gmra.mxu0 %v926
      %v1444 = vpop.f32.mrf.mxu0
      %v1445 = vadd.f32 0.0, %v1444
      %v1446 = vpop.f32.mrf.mxu0
      %v1447 = vpop.f32.mrf.mxu0
      %v1448 = vadd.f32 0.0, %v1447
      %v1449 = vpop.f32.mrf.mxu0
      %1450 = vmatprep.mubr.bf16.mxu0 0
      %1451 = vmatmul.mubr.bf16.gmra.mxu0 %v929
      %v1452 = vpop.f32.mrf.mxu0
      %v1453 = vadd.f32 0.0, %v1452
      %v1454 = vpop.f32.mrf.mxu0
      %v1455 = vpop.f32.mrf.mxu0
      %v1456 = vadd.f32 0.0, %v1455
      %v1457 = vpop.f32.mrf.mxu0
      %1458 = vmatprep.mubr.bf16.mxu0 0
      %1459 = vmatmul.mubr.bf16.gmra.mxu0 %v932
      %v1460 = vpop.f32.mrf.mxu0
      %v1461 = vadd.f32 0.0, %v1460
      %v1462 = vpop.f32.mrf.mxu0
      %v1463 = vpop.f32.mrf.mxu0
      %v1464 = vadd.f32 0.0, %v1463
      %v1465 = vpop.f32.mrf.mxu0
      %1466 = vmatprep.mubr.bf16.mxu0 0
      %1467 = vmatmul.mubr.bf16.gmra.mxu0 %v935
      %v1468 = vpop.f32.mrf.mxu0
      %v1469 = vadd.f32 0.0, %v1468
      %v1470 = vpop.f32.mrf.mxu0
      %v1471 = vpop.f32.mrf.mxu0
      %v1472 = vadd.f32 0.0, %v1471
      %v1473 = vpop.f32.mrf.mxu0
      %1474 = vmatprep.mubr.bf16.mxu0 0
      %1475 = vmatmul.mubr.bf16.gmra.mxu0 %v938
      %v1476 = vpop.f32.mrf.mxu0
      %v1477 = vadd.f32 0.0, %v1476
      %v1478 = vpop.f32.mrf.mxu0
      %v1479 = vpop.f32.mrf.mxu0
      %v1480 = vadd.f32 0.0, %v1479
      %v1481 = vpop.f32.mrf.mxu0
      %1482 = vmatprep.mubr.bf16.mxu0 0
      %1483 = vmatmul.mubr.bf16.gmra.mxu0 %v941
      %v1484 = vpop.f32.mrf.mxu0
      %v1485 = vadd.f32 0.0, %v1484
      %v1486 = vpop.f32.mrf.mxu0
      %v1487 = vpop.f32.mrf.mxu0
      %v1488 = vadd.f32 0.0, %v1487
      %v1489 = vpop.f32.mrf.mxu0
      %1490 = vmatprep.mubr.bf16.mxu0 0
      %1491 = vmatmul.mubr.bf16.gmra.mxu0 %v944
      %v1492 = vpop.f32.mrf.mxu0
      %v1493 = vadd.f32 0.0, %v1492
      %v1494 = vpop.f32.mrf.mxu0
      %v1495 = vpop.f32.mrf.mxu0
      %v1496 = vadd.f32 0.0, %v1495
      %v1497 = vpop.f32.mrf.mxu0
      %1498 = vmatprep.mubr.bf16.mxu0 0
      %1499 = vmatmul.mubr.bf16.gmra.mxu0 %v1394
      %v1500 = vpop.f32.mrf.mxu0
      %v1501 = vadd.f32 0.0, %v1500
      %v1502 = vpop.f32.mrf.mxu0
      %v1503 = vpop.f32.mrf.mxu0
      %v1504 = vadd.f32 0.0, %v1503
      %v1505 = vpop.f32.mrf.mxu0
      %1506 = vmatprep.mubr.bf16.mxu0 0
      %1507 = vmatmul.mubr.bf16.gmra.mxu0 %v1397
      %v1508 = vpop.f32.mrf.mxu0
      %v1509 = vadd.f32 0.0, %v1508
      %v1510 = vpop.f32.mrf.mxu0
      %v1511 = vpop.f32.mrf.mxu0
      %v1512 = vadd.f32 0.0, %v1511
      %v1513 = vpop.f32.mrf.mxu0
      %1514 = vdwg.mxu0
      %v1515 = vadd.f32 %v1356, %v1437
      %v1516 = vadd.f32 %v1357, %v1440
      %v1517 = vadd.f32 %v1358, %v1445
      %v1518 = vadd.f32 %v1359, %v1448
      %v1519 = vadd.f32 %v1360, %v1453
      %v1520 = vadd.f32 %v1361, %v1456
      %v1521 = vadd.f32 %v1362, %v1461
      %v1522 = vadd.f32 %v1363, %v1464
      %v1523 = vadd.f32 %v1364, %v1469
      %v1524 = vadd.f32 %v1365, %v1472
      %v1525 = vadd.f32 %v1366, %v1477
      %v1526 = vadd.f32 %v1367, %v1480
      %v1527 = vadd.f32 %v1368, %v1485
      %v1528 = vadd.f32 %v1369, %v1488
      %v1529 = vadd.f32 %v1370, %v1493
      %v1530 = vadd.f32 %v1371, %v1496
      %v1531 = vadd.f32 %v1372, %v1501
      %v1532 = vadd.f32 %v1373, %v1504
      %v1533 = vadd.f32 %v1374, %v1509
      %v1534 = vadd.f32 %v1375, %v1512
      %v1535 = vsel %vm469, %v437, 0
      %s1536 = scalar_lea.vmem %s1, 24
      %v1537 = vld [vmem:[%s1536] sm:$0xf]
      %v1539 = vsel %vm568, %v1535, 0
      %v1542 = vsel %vm599, %v1537, 0
      %1544 = vmatprep.subr.bf16.mxu0 0
      %1545 = vmatpush1.bf16.msra.mxu0 0
      %1546 = vmatprep.subr.bf16.mxu0 0
      %1547 = vmatpush1.bf16.msra.mxu0 0
      %1548 = vmatprep.subr.bf16.mxu0 0
      %1549 = vmatpush1.bf16.msra.mxu0 0
      %1550 = vmatprep.subr.bf16.mxu0 0
      %1551 = vmatpush1.bf16.msra.mxu0 0
      %1552 = vmatprep.subr.bf16.mxu0 0
      %1553 = vmatpush1.bf16.msra.mxu0 0
      %1554 = vmatprep.subr.bf16.mxu0 0
      %1555 = vmatpush1.bf16.msra.mxu0 0
      %1556 = vmatprep.subr.bf16.mxu0 0
      %1557 = vmatpush1.bf16.msra.mxu0 0
      %1558 = vmatprep.subr.bf16.mxu0 0
      %1559 = vmatpush1.bf16.msra.mxu0 %v1542
      %1560 = vmatprep.subr.bf16.mxu0 0
      %1561 = vmatpush2.bf16.msra.mxu0 0
      %1562 = vmatprep.subr.bf16.mxu0 0
      %1563 = vmatpush2.bf16.msra.mxu0 0
      %1564 = vmatprep.subr.bf16.mxu0 0
      %1565 = vmatpush2.bf16.msra.mxu0 0
      %1566 = vmatprep.subr.bf16.mxu0 0
      %1567 = vmatpush2.bf16.msra.mxu0 0
      %1568 = vmatprep.subr.bf16.mxu0 0
      %1569 = vmatpush2.bf16.msra.mxu0 0
      %1570 = vmatprep.subr.bf16.mxu0 0
      %1571 = vmatpush2.bf16.msra.mxu0 0
      %1572 = vmatprep.subr.bf16.mxu0 0
      %1573 = vmatpush2.bf16.msra.mxu0 0
      %1574 = vmatprep.subr.bf16.mxu0 0
      %1575 = vmatpush2.bf16.msra.mxu0 0
      %1576 = vmatprep.mubr.bf16.mxu0 0
      %1577 = vmatmul.mubr.bf16.gmra.mxu0 %v723
      %v1578 = vpop.f32.mrf.mxu0
      %v1579 = vadd.f32 0.0, %v1578
      %v1580 = vpop.f32.mrf.mxu0
      %v1581 = vpop.f32.mrf.mxu0
      %v1582 = vadd.f32 0.0, %v1581
      %v1583 = vpop.f32.mrf.mxu0
      %1584 = vmatprep.mubr.bf16.mxu0 0
      %1585 = vmatmul.mubr.bf16.gmra.mxu0 %v726
      %v1586 = vpop.f32.mrf.mxu0
      %v1587 = vadd.f32 0.0, %v1586
      %v1588 = vpop.f32.mrf.mxu0
      %v1589 = vpop.f32.mrf.mxu0
      %v1590 = vadd.f32 0.0, %v1589
      %v1591 = vpop.f32.mrf.mxu0
      %1592 = vmatprep.mubr.bf16.mxu0 0
      %1593 = vmatmul.mubr.bf16.gmra.mxu0 %v729
      %v1594 = vpop.f32.mrf.mxu0
      %v1595 = vadd.f32 0.0, %v1594
      %v1596 = vpop.f32.mrf.mxu0
      %v1597 = vpop.f32.mrf.mxu0
      %v1598 = vadd.f32 0.0, %v1597
      %v1599 = vpop.f32.mrf.mxu0
      %1600 = vmatprep.mubr.bf16.mxu0 0
      %1601 = vmatmul.mubr.bf16.gmra.mxu0 %v732
      %v1602 = vpop.f32.mrf.mxu0
      %v1603 = vadd.f32 0.0, %v1602
      %v1604 = vpop.f32.mrf.mxu0
      %v1605 = vpop.f32.mrf.mxu0
      %v1606 = vadd.f32 0.0, %v1605
      %v1607 = vpop.f32.mrf.mxu0
      %1608 = vmatprep.mubr.bf16.mxu0 0
      %1609 = vmatmul.mubr.bf16.gmra.mxu0 %v735
      %v1610 = vpop.f32.mrf.mxu0
      %v1611 = vadd.f32 0.0, %v1610
      %v1612 = vpop.f32.mrf.mxu0
      %v1613 = vpop.f32.mrf.mxu0
      %v1614 = vadd.f32 0.0, %v1613
      %v1615 = vpop.f32.mrf.mxu0
      %1616 = vmatprep.mubr.bf16.mxu0 0
      %1617 = vmatmul.mubr.bf16.gmra.mxu0 %v738
      %v1618 = vpop.f32.mrf.mxu0
      %v1619 = vadd.f32 0.0, %v1618
      %v1620 = vpop.f32.mrf.mxu0
      %v1621 = vpop.f32.mrf.mxu0
      %v1622 = vadd.f32 0.0, %v1621
      %v1623 = vpop.f32.mrf.mxu0
      %1624 = vmatprep.mubr.bf16.mxu0 0
      %1625 = vmatmul.mubr.bf16.gmra.mxu0 %v741
      %v1626 = vpop.f32.mrf.mxu0
      %v1627 = vadd.f32 0.0, %v1626
      %v1628 = vpop.f32.mrf.mxu0
      %v1629 = vpop.f32.mrf.mxu0
      %v1630 = vadd.f32 0.0, %v1629
      %v1631 = vpop.f32.mrf.mxu0
      %1632 = vmatprep.mubr.bf16.mxu0 0
      %1633 = vmatmul.mubr.bf16.gmra.mxu0 %v744
      %v1634 = vpop.f32.mrf.mxu0
      %v1635 = vadd.f32 0.0, %v1634
      %v1636 = vpop.f32.mrf.mxu0
      %v1637 = vpop.f32.mrf.mxu0
      %v1638 = vadd.f32 0.0, %v1637
      %v1639 = vpop.f32.mrf.mxu0
      %1640 = vmatprep.mubr.bf16.mxu0 0
      %1641 = vmatmul.mubr.bf16.gmra.mxu0 %v1089
      %v1642 = vpop.f32.mrf.mxu0
      %v1643 = vadd.f32 0.0, %v1642
      %v1644 = vpop.f32.mrf.mxu0
      %v1645 = vpop.f32.mrf.mxu0
      %v1646 = vadd.f32 0.0, %v1645
      %v1647 = vpop.f32.mrf.mxu0
      %1648 = vmatprep.mubr.bf16.mxu0 0
      %1649 = vmatmul.mubr.bf16.gmra.mxu0 %v1539
      %v1650 = vpop.f32.mrf.mxu0
      %v1651 = vadd.f32 0.0, %v1650
      %v1652 = vpop.f32.mrf.mxu0
      %v1653 = vpop.f32.mrf.mxu0
      %v1654 = vadd.f32 0.0, %v1653
      %v1655 = vpop.f32.mrf.mxu0
      %1656 = vdwg.mxu0
      %v1657 = vadd.f32 %v1515, %v1579
      %v1658 = vadd.f32 %v1516, %v1582
      %v1659 = vadd.f32 %v1517, %v1587
      %v1660 = vadd.f32 %v1518, %v1590
      %v1661 = vadd.f32 %v1519, %v1595
      %v1662 = vadd.f32 %v1520, %v1598
      %v1663 = vadd.f32 %v1521, %v1603
      %v1664 = vadd.f32 %v1522, %v1606
      %v1665 = vadd.f32 %v1523, %v1611
      %v1666 = vadd.f32 %v1524, %v1614
      %v1667 = vadd.f32 %v1525, %v1619
      %v1668 = vadd.f32 %v1526, %v1622
      %v1669 = vadd.f32 %v1527, %v1627
      %v1670 = vadd.f32 %v1528, %v1630
      %v1671 = vadd.f32 %v1529, %v1635
      %v1672 = vadd.f32 %v1530, %v1638
      %v1673 = vadd.f32 %v1531, %v1643
      %v1674 = vadd.f32 %v1532, %v1646
      %v1675 = vadd.f32 %v1533, %v1651
      %v1676 = vadd.f32 %v1534, %v1654
      %s1677 = scalar_lea.vmem %s1, 28
      %v1678 = vld [vmem:[%s1677] sm:$0xf]
      %v1679 = vshrl.u32 %v437, 16
      %v1681 = vor.u32 %v1679, %v1235
      %v1683 = vshll.u32 %v454, 16
      %v1685 = vrot.slane %v1683, 1
      %v1686 = vsel %vm483, %v1681, %v1685
      %v1688 = vsel %vm568, %v1686, 0
      %v1691 = vsel %vm599, %v1678, 0
      %1693 = vmatprep.subr.bf16.mxu0 0
      %1694 = vmatpush1.bf16.msra.mxu0 0
      %1695 = vmatprep.subr.bf16.mxu0 0
      %1696 = vmatpush1.bf16.msra.mxu0 0
      %1697 = vmatprep.subr.bf16.mxu0 0
      %1698 = vmatpush1.bf16.msra.mxu0 0
      %1699 = vmatprep.subr.bf16.mxu0 0
      %1700 = vmatpush1.bf16.msra.mxu0 0
      %1701 = vmatprep.subr.bf16.mxu0 0
      %1702 = vmatpush1.bf16.msra.mxu0 0
      %1703 = vmatprep.subr.bf16.mxu0 0
      %1704 = vmatpush1.bf16.msra.mxu0 0
      %1705 = vmatprep.subr.bf16.mxu0 0
      %1706 = vmatpush1.bf16.msra.mxu0 0
      %1707 = vmatprep.subr.bf16.mxu0 0
      %1708 = vmatpush1.bf16.msra.mxu0 %v1691
      %1709 = vmatprep.subr.bf16.mxu0 0
      %1710 = vmatpush2.bf16.msra.mxu0 0
      %1711 = vmatprep.subr.bf16.mxu0 0
      %1712 = vmatpush2.bf16.msra.mxu0 0
      %1713 = vmatprep.subr.bf16.mxu0 0
      %1714 = vmatpush2.bf16.msra.mxu0 0
      %1715 = vmatprep.subr.bf16.mxu0 0
      %1716 = vmatpush2.bf16.msra.mxu0 0
      %1717 = vmatprep.subr.bf16.mxu0 0
      %1718 = vmatpush2.bf16.msra.mxu0 0
      %1719 = vmatprep.subr.bf16.mxu0 0
      %1720 = vmatpush2.bf16.msra.mxu0 0
      %1721 = vmatprep.subr.bf16.mxu0 0
      %1722 = vmatpush2.bf16.msra.mxu0 0
      %1723 = vmatprep.subr.bf16.mxu0 0
      %1724 = vmatpush2.bf16.msra.mxu0 0
      %1725 = vmatprep.mubr.bf16.mxu0 0
      %1726 = vmatmul.mubr.bf16.gmra.mxu0 %v576
      %v1727 = vpop.f32.mrf.mxu0
      %v1728 = vadd.f32 0.0, %v1727
      %v1729 = vpop.f32.mrf.mxu0
      %v1730 = vpop.f32.mrf.mxu0
      %v1731 = vadd.f32 0.0, %v1730
      %v1732 = vpop.f32.mrf.mxu0
      %1733 = vmatprep.mubr.bf16.mxu0 0
      %1734 = vmatmul.mubr.bf16.gmra.mxu0 %v579
      %v1735 = vpop.f32.mrf.mxu0
      %v1736 = vadd.f32 0.0, %v1735
      %v1737 = vpop.f32.mrf.mxu0
      %v1738 = vpop.f32.mrf.mxu0
      %v1739 = vadd.f32 0.0, %v1738
      %v1740 = vpop.f32.mrf.mxu0
      %1741 = vmatprep.mubr.bf16.mxu0 0
      %1742 = vmatmul.mubr.bf16.gmra.mxu0 %v582
      %v1743 = vpop.f32.mrf.mxu0
      %v1744 = vadd.f32 0.0, %v1743
      %v1745 = vpop.f32.mrf.mxu0
      %v1746 = vpop.f32.mrf.mxu0
      %v1747 = vadd.f32 0.0, %v1746
      %v1748 = vpop.f32.mrf.mxu0
      %1749 = vmatprep.mubr.bf16.mxu0 0
      %1750 = vmatmul.mubr.bf16.gmra.mxu0 %v585
      %v1751 = vpop.f32.mrf.mxu0
      %v1752 = vadd.f32 0.0, %v1751
      %v1753 = vpop.f32.mrf.mxu0
      %v1754 = vpop.f32.mrf.mxu0
      %v1755 = vadd.f32 0.0, %v1754
      %v1756 = vpop.f32.mrf.mxu0
      %1757 = vmatprep.mubr.bf16.mxu0 0
      %1758 = vmatmul.mubr.bf16.gmra.mxu0 %v588
      %v1759 = vpop.f32.mrf.mxu0
      %v1760 = vadd.f32 0.0, %v1759
      %v1761 = vpop.f32.mrf.mxu0
      %v1762 = vpop.f32.mrf.mxu0
      %v1763 = vadd.f32 0.0, %v1762
      %v1764 = vpop.f32.mrf.mxu0
      %1765 = vmatprep.mubr.bf16.mxu0 0
      %1766 = vmatmul.mubr.bf16.gmra.mxu0 %v591
      %v1767 = vpop.f32.mrf.mxu0
      %v1768 = vadd.f32 0.0, %v1767
      %v1769 = vpop.f32.mrf.mxu0
      %v1770 = vpop.f32.mrf.mxu0
      %v1771 = vadd.f32 0.0, %v1770
      %v1772 = vpop.f32.mrf.mxu0
      %1773 = vmatprep.mubr.bf16.mxu0 0
      %1774 = vmatmul.mubr.bf16.gmra.mxu0 %v594
      %v1775 = vpop.f32.mrf.mxu0
      %v1776 = vadd.f32 0.0, %v1775
      %v1777 = vpop.f32.mrf.mxu0
      %v1778 = vpop.f32.mrf.mxu0
      %v1779 = vadd.f32 0.0, %v1778
      %v1780 = vpop.f32.mrf.mxu0
      %1781 = vmatprep.mubr.bf16.mxu0 0
      %1782 = vmatmul.mubr.bf16.gmra.mxu0 %v597
      %v1783 = vpop.f32.mrf.mxu0
      %v1784 = vadd.f32 0.0, %v1783
      %v1785 = vpop.f32.mrf.mxu0
      %v1786 = vpop.f32.mrf.mxu0
      %v1787 = vadd.f32 0.0, %v1786
      %v1788 = vpop.f32.mrf.mxu0
      %1789 = vmatprep.mubr.bf16.mxu0 0
      %1790 = vmatmul.mubr.bf16.gmra.mxu0 %v1238
      %v1791 = vpop.f32.mrf.mxu0
      %v1792 = vadd.f32 0.0, %v1791
      %v1793 = vpop.f32.mrf.mxu0
      %v1794 = vpop.f32.mrf.mxu0
      %v1795 = vadd.f32 0.0, %v1794
      %v1796 = vpop.f32.mrf.mxu0
      %1797 = vmatprep.mubr.bf16.mxu0 0
      %1798 = vmatmul.mubr.bf16.gmra.mxu0 %v1688
      %v1799 = vpop.f32.mrf.mxu0
      %v1800 = vadd.f32 0.0, %v1799
      %v1801 = vpop.f32.mrf.mxu0
      %v1802 = vpop.f32.mrf.mxu0
      %v1803 = vadd.f32 0.0, %v1802
      %v1804 = vpop.f32.mrf.mxu0
      %1805 = vdwg.mxu0
      %v1806 = vadd.f32 %v1657, %v1728
      %v1807 = vadd.f32 %v1658, %v1731
      %v1808 = vadd.f32 %v1659, %v1736
      %v1809 = vadd.f32 %v1660, %v1739
      %v1810 = vadd.f32 %v1661, %v1744
      %v1811 = vadd.f32 %v1662, %v1747
      %v1812 = vadd.f32 %v1663, %v1752
      %v1813 = vadd.f32 %v1664, %v1755
      %v1814 = vadd.f32 %v1665, %v1760
      %v1815 = vadd.f32 %v1666, %v1763
      %v1816 = vadd.f32 %v1667, %v1768
      %v1817 = vadd.f32 %v1668, %v1771
      %v1818 = vadd.f32 %v1669, %v1776
      %v1819 = vadd.f32 %v1670, %v1779
      %v1820 = vadd.f32 %v1671, %v1784
      %v1821 = vadd.f32 %v1672, %v1787
      %v1822 = vadd.f32 %v1673, %v1792
      %v1823 = vadd.f32 %v1674, %v1795
      %v1824 = vadd.f32 %v1675, %v1800
      %v1825 = vadd.f32 %v1676, %v1803
      %v1826 = vsel %vm871, %v365, 0
      %v1827 = vsel %vm872, %v437, 0
      %v1828 = vsel %vm871, %v454, 0
      %s1829 = scalar_lea.vmem %s1, 32
      %v1830 = vld [vmem:[%s1829] sm:$0xf]
      %v1834 = vrot.slane %v1826, 1
      %v1835 = vsel %vm897, %v1834, %v903
      %v1836 = vrot.slane %v1827, 1
      %v1837 = vsel %vm897, %v1386, %v1836
      %v1838 = vrot.slane %v1828, 1
      %v1839 = vsel %vm897, %v1836, %v1838
      %v1841 = vsel %vm568, %v1835, 0
      %v1844 = vsel %vm568, %v1837, 0
      %v1847 = vsel %vm568, %v1839, 0
      %v1850 = vsel %vm599, %v1830, 0
      %1852 = vmatprep.subr.bf16.mxu0 0
      %1853 = vmatpush1.bf16.msra.mxu0 0
      %1854 = vmatprep.subr.bf16.mxu0 0
      %1855 = vmatpush1.bf16.msra.mxu0 0
      %1856 = vmatprep.subr.bf16.mxu0 0
      %1857 = vmatpush1.bf16.msra.mxu0 0
      %1858 = vmatprep.subr.bf16.mxu0 0
      %1859 = vmatpush1.bf16.msra.mxu0 0
      %1860 = vmatprep.subr.bf16.mxu0 0
      %1861 = vmatpush1.bf16.msra.mxu0 0
      %1862 = vmatprep.subr.bf16.mxu0 0
      %1863 = vmatpush1.bf16.msra.mxu0 0
      %1864 = vmatprep.subr.bf16.mxu0 0
      %1865 = vmatpush1.bf16.msra.mxu0 0
      %1866 = vmatprep.subr.bf16.mxu0 0
      %1867 = vmatpush1.bf16.msra.mxu0 %v1850
      %1868 = vmatprep.subr.bf16.mxu0 0
      %1869 = vmatpush2.bf16.msra.mxu0 0
      %1870 = vmatprep.subr.bf16.mxu0 0
      %1871 = vmatpush2.bf16.msra.mxu0 0
      %1872 = vmatprep.subr.bf16.mxu0 0
      %1873 = vmatpush2.bf16.msra.mxu0 0
      %1874 = vmatprep.subr.bf16.mxu0 0
      %1875 = vmatpush2.bf16.msra.mxu0 0
      %1876 = vmatprep.subr.bf16.mxu0 0
      %1877 = vmatpush2.bf16.msra.mxu0 0
      %1878 = vmatprep.subr.bf16.mxu0 0
      %1879 = vmatpush2.bf16.msra.mxu0 0
      %1880 = vmatprep.subr.bf16.mxu0 0
      %1881 = vmatpush2.bf16.msra.mxu0 0
      %1882 = vmatprep.subr.bf16.mxu0 0
      %1883 = vmatpush2.bf16.msra.mxu0 0
      %1884 = vmatprep.mubr.bf16.mxu0 0
      %1885 = vmatmul.mubr.bf16.gmra.mxu0 %v1841
      %v1886 = vpop.f32.mrf.mxu0
      %v1887 = vadd.f32 0.0, %v1886
      %v1888 = vpop.f32.mrf.mxu0
      %v1889 = vpop.f32.mrf.mxu0
      %v1890 = vadd.f32 0.0, %v1889
      %v1891 = vpop.f32.mrf.mxu0
      %1892 = vmatprep.mubr.bf16.mxu0 0
      %1893 = vmatmul.mubr.bf16.gmra.mxu0 %v929
      %v1894 = vpop.f32.mrf.mxu0
      %v1895 = vadd.f32 0.0, %v1894
      %v1896 = vpop.f32.mrf.mxu0
      %v1897 = vpop.f32.mrf.mxu0
      %v1898 = vadd.f32 0.0, %v1897
      %v1899 = vpop.f32.mrf.mxu0
      %1900 = vmatprep.mubr.bf16.mxu0 0
      %1901 = vmatmul.mubr.bf16.gmra.mxu0 %v932
      %v1902 = vpop.f32.mrf.mxu0
      %v1903 = vadd.f32 0.0, %v1902
      %v1904 = vpop.f32.mrf.mxu0
      %v1905 = vpop.f32.mrf.mxu0
      %v1906 = vadd.f32 0.0, %v1905
      %v1907 = vpop.f32.mrf.mxu0
      %1908 = vmatprep.mubr.bf16.mxu0 0
      %1909 = vmatmul.mubr.bf16.gmra.mxu0 %v935
      %v1910 = vpop.f32.mrf.mxu0
      %v1911 = vadd.f32 0.0, %v1910
      %v1912 = vpop.f32.mrf.mxu0
      %v1913 = vpop.f32.mrf.mxu0
      %v1914 = vadd.f32 0.0, %v1913
      %v1915 = vpop.f32.mrf.mxu0
      %1916 = vmatprep.mubr.bf16.mxu0 0
      %1917 = vmatmul.mubr.bf16.gmra.mxu0 %v938
      %v1918 = vpop.f32.mrf.mxu0
      %v1919 = vadd.f32 0.0, %v1918
      %v1920 = vpop.f32.mrf.mxu0
      %v1921 = vpop.f32.mrf.mxu0
      %v1922 = vadd.f32 0.0, %v1921
      %v1923 = vpop.f32.mrf.mxu0
      %1924 = vmatprep.mubr.bf16.mxu0 0
      %1925 = vmatmul.mubr.bf16.gmra.mxu0 %v941
      %v1926 = vpop.f32.mrf.mxu0
      %v1927 = vadd.f32 0.0, %v1926
      %v1928 = vpop.f32.mrf.mxu0
      %v1929 = vpop.f32.mrf.mxu0
      %v1930 = vadd.f32 0.0, %v1929
      %v1931 = vpop.f32.mrf.mxu0
      %1932 = vmatprep.mubr.bf16.mxu0 0
      %1933 = vmatmul.mubr.bf16.gmra.mxu0 %v944
      %v1934 = vpop.f32.mrf.mxu0
      %v1935 = vadd.f32 0.0, %v1934
      %v1936 = vpop.f32.mrf.mxu0
      %v1937 = vpop.f32.mrf.mxu0
      %v1938 = vadd.f32 0.0, %v1937
      %v1939 = vpop.f32.mrf.mxu0
      %1940 = vmatprep.mubr.bf16.mxu0 0
      %1941 = vmatmul.mubr.bf16.gmra.mxu0 %v1394
      %v1942 = vpop.f32.mrf.mxu0
      %v1943 = vadd.f32 0.0, %v1942
      %v1944 = vpop.f32.mrf.mxu0
      %v1945 = vpop.f32.mrf.mxu0
      %v1946 = vadd.f32 0.0, %v1945
      %v1947 = vpop.f32.mrf.mxu0
      %1948 = vmatprep.mubr.bf16.mxu0 0
      %1949 = vmatmul.mubr.bf16.gmra.mxu0 %v1844
      %v1950 = vpop.f32.mrf.mxu0
      %v1951 = vadd.f32 0.0, %v1950
      %v1952 = vpop.f32.mrf.mxu0
      %v1953 = vpop.f32.mrf.mxu0
      %v1954 = vadd.f32 0.0, %v1953
      %v1955 = vpop.f32.mrf.mxu0
      %1956 = vmatprep.mubr.bf16.mxu0 0
      %1957 = vmatmul.mubr.bf16.gmra.mxu0 %v1847
      %v1958 = vpop.f32.mrf.mxu0
      %v1959 = vadd.f32 0.0, %v1958
      %v1960 = vpop.f32.mrf.mxu0
      %v1961 = vpop.f32.mrf.mxu0
      %v1962 = vadd.f32 0.0, %v1961
      %v1963 = vpop.f32.mrf.mxu0
      %1964 = vdwg.mxu0
      %v1965 = vadd.f32 %v1806, %v1887
      %v1966 = vadd.f32 %v1807, %v1890
      %v1967 = vadd.f32 %v1808, %v1895
      %v1968 = vadd.f32 %v1809, %v1898
      %v1969 = vadd.f32 %v1810, %v1903
      %v1970 = vadd.f32 %v1811, %v1906
      %v1971 = vadd.f32 %v1812, %v1911
      %v1972 = vadd.f32 %v1813, %v1914
      %v1973 = vadd.f32 %v1814, %v1919
      %v1974 = vadd.f32 %v1815, %v1922
      %v1975 = vadd.f32 %v1816, %v1927
      %v1976 = vadd.f32 %v1817, %v1930
      %v1977 = vadd.f32 %v1818, %v1935
      %v1978 = vadd.f32 %v1819, %v1938
      %v1979 = vadd.f32 %v1820, %v1943
      %v1980 = vadd.f32 %v1821, %v1946
      %v1981 = vadd.f32 %v1822, %v1951
      %v1982 = vadd.f32 %v1823, %v1954
      %v1983 = vadd.f32 %v1824, %v1959
      %v1984 = vadd.f32 %v1825, %v1962
      %v1985 = vld [vmem:[%s2] sm:$0x1]
      %v1987 = vlaneseq
      %v1988 = vshrl.u32 %v1987, 7
      %v1989 = vsub.s32 0, %v1988
      %v1990 = vrot.slane %v1985, %v1989
      %v1992 = vadd.f32 %v1965, %v1990
      %v1993 = vadd.f32 %v1966, %v1990
      %v1994 = vadd.f32 %v1967, %v1990
      %v1995 = vadd.f32 %v1968, %v1990
      %v1996 = vadd.f32 %v1969, %v1990
      %v1997 = vadd.f32 %v1970, %v1990
      %v1998 = vadd.f32 %v1971, %v1990
      %v1999 = vadd.f32 %v1972, %v1990
      %v2000 = vadd.f32 %v1973, %v1990
      %v2001 = vadd.f32 %v1974, %v1990
      %v2002 = vadd.f32 %v1975, %v1990
      %v2003 = vadd.f32 %v1976, %v1990
      %v2004 = vadd.f32 %v1977, %v1990
      %v2005 = vadd.f32 %v1978, %v1990
      %v2006 = vadd.f32 %v1979, %v1990
      %v2007 = vadd.f32 %v1980, %v1990
      %v2008 = vadd.f32 %v1981, %v1990
      %v2009 = vadd.f32 %v1982, %v1990
      %v2010 = vadd.f32 %v1983, %v1990
      %v2011 = vadd.f32 %v1984, %v1990
      %v2012 = vpack.c.bf16 %v1993, %v1992
      %v2013 = vpack.c.bf16 %v1995, %v1994
      %v2014 = vpack.c.bf16 %v1997, %v1996
      %v2015 = vpack.c.bf16 %v1999, %v1998
      %v2016 = vpack.c.bf16 %v2001, %v2000
      %v2017 = vpack.c.bf16 %v2003, %v2002
      %v2018 = vpack.c.bf16 %v2005, %v2004
      %v2019 = vpack.c.bf16 %v2007, %v2006
      %v2020 = vpack.c.bf16 %v2009, %v2008
      %v2021 = vpack.c.bf16 %v2011, %v2010
      %v2032 = vunpack.c.l.b16 %v2012
      %v2033 = vunpack.c.h.b16 %v2012
      %v2034 = vunpack.c.l.b16 %v2013
      %v2035 = vunpack.c.h.b16 %v2013
      %v2036 = vunpack.c.l.b16 %v2014
      %v2037 = vunpack.c.h.b16 %v2014
      %v2038 = vunpack.c.l.b16 %v2015
      %v2039 = vunpack.c.h.b16 %v2015
      %v2040 = vunpack.c.l.b16 %v2016
      %v2041 = vunpack.c.h.b16 %v2016
      %v2042 = vunpack.c.l.b16 %v2017
      %v2043 = vunpack.c.h.b16 %v2017
      %v2044 = vunpack.c.l.b16 %v2018
      %v2045 = vunpack.c.h.b16 %v2018
      %v2046 = vunpack.c.l.b16 %v2019
      %v2047 = vunpack.c.h.b16 %v2019
      %v2048 = vunpack.c.l.b16 %v2020
      %v2049 = vunpack.c.h.b16 %v2020
      %v2050 = vunpack.c.l.b16 %v2021
      %v2051 = vunpack.c.h.b16 %v2021
      %v2052 = vpack.c.b16 %v2032, %v2032
      %v2053 = vpack.c.b16 %v2033, %v2033
      %v2054 = vpack.c.b16 %v2034, %v2034
      %v2055 = vpack.c.b16 %v2035, %v2035
      %v2056 = vpack.c.b16 %v2036, %v2036
      %v2057 = vpack.c.b16 %v2037, %v2037
      %v2058 = vpack.c.b16 %v2038, %v2038
      %v2059 = vpack.c.b16 %v2039, %v2039
      %v2060 = vpack.c.b16 %v2040, %v2040
      %v2061 = vpack.c.b16 %v2041, %v2041
      %v2062 = vpack.c.b16 %v2042, %v2042
      %v2063 = vpack.c.b16 %v2043, %v2043
      %v2064 = vpack.c.b16 %v2044, %v2044
      %v2065 = vpack.c.b16 %v2045, %v2045
      %v2066 = vpack.c.b16 %v2046, %v2046
      %v2067 = vpack.c.b16 %v2047, %v2047
      %v2068 = vpack.c.b16 %v2048, %v2048
      %v2069 = vpack.c.b16 %v2049, %v2049
      %v2070 = vpack.c.b16 %v2050, %v2050
      %v2071 = vpack.c.b16 %v2051, %v2051
      %vm2092 = vcmask 257024
      %2093 = vst.msk [vmem:[%s246] sm:$0xf] %vm2092, %v2052
      %2094 = vst.msk [vmem:[%s246 + $0x4] sm:$0xf] %vm2092, %v2053
      %2095 = vst.msk [vmem:[%s246 + $0x8] sm:$0xf] %vm2092, %v2054
      %2096 = vst.msk [vmem:[%s246 + $0xc] sm:$0xf] %vm2092, %v2055
      %2097 = vst.msk [vmem:[%s246 + $0x10] sm:$0xf] %vm2092, %v2056
      %2098 = vst.msk [vmem:[%s246 + $0x14] sm:$0xf] %vm2092, %v2057
      %2099 = vst.msk [vmem:[%s246 + $0x18] sm:$0xf] %vm2092, %v2058
      %2100 = vst.msk [vmem:[%s246 + $0x1c] sm:$0xf] %vm2092, %v2059
      %2101 = vst.msk [vmem:[%s246 + $0x20] sm:$0xf] %vm2092, %v2060
      %2102 = vst.msk [vmem:[%s246 + $0x24] sm:$0xf] %vm2092, %v2061
      %2103 = vst.msk [vmem:[%s246 + $0x28] sm:$0xf] %vm2092, %v2062
      %2104 = vst.msk [vmem:[%s246 + $0x2c] sm:$0xf] %vm2092, %v2063
      %2105 = vst.msk [vmem:[%s246 + $0x30] sm:$0xf] %vm2092, %v2064
      %2106 = vst.msk [vmem:[%s246 + $0x34] sm:$0xf] %vm2092, %v2065
      %2107 = vst.msk [vmem:[%s246 + $0x38] sm:$0xf] %vm2092, %v2066
      %2108 = vst.msk [vmem:[%s246 + $0x3c] sm:$0xf] %vm2092, %v2067
      %2109 = vst.msk [vmem:[%s246 + $0x40] sm:$0xf] %vm2092, %v2068
      %2110 = vst.msk [vmem:[%s246 + $0x44] sm:$0xf] %vm2092, %v2069
      %2111 = vst.msk [vmem:[%s246 + $0x48] sm:$0xf] %vm2092, %v2070
      %2112 = vst.msk [vmem:[%s246 + $0x4c] sm:$0xf] %vm2092, %v2071
      %vm2113 = vcmask 261120
      %v2114 = vsel %vm2113, %v1994, 0.0
      %v2115 = vsel %vm2113, %v1995, 0.0
      %v2116 = vadd.f32 %v2114, %v2115
      %v2117 = vsel %vm2113, %v1996, 0.0
      %v2118 = vadd.f32 %v2116, %v2117
      %v2119 = vsel %vm2113, %v1997, 0.0
      %v2120 = vadd.f32 %v2118, %v2119
      %v2121 = vsel %vm2113, %v1998, 0.0
      %v2122 = vadd.f32 %v2120, %v2121
      %v2123 = vsel %vm2113, %v1999, 0.0
      %v2124 = vadd.f32 %v2122, %v2123
      %v2125 = vsel %vm2113, %v2000, 0.0
      %v2126 = vadd.f32 %v2124, %v2125
      %v2127 = vsel %vm2113, %v2001, 0.0
      %v2128 = vadd.f32 %v2126, %v2127
      %v2129 = vsel %vm2113, %v2002, 0.0
      %v2130 = vadd.f32 %v2128, %v2129
      %v2131 = vsel %vm2113, %v2003, 0.0
      %v2132 = vadd.f32 %v2130, %v2131
      %v2133 = vsel %vm2113, %v2004, 0.0
      %v2134 = vadd.f32 %v2132, %v2133
      %v2135 = vsel %vm2113, %v2005, 0.0
      %v2136 = vadd.f32 %v2134, %v2135
      %v2137 = vsel %vm2113, %v2006, 0.0
      %v2138 = vadd.f32 %v2136, %v2137
      %v2139 = vsel %vm2113, %v2007, 0.0
      %v2140 = vadd.f32 %v2138, %v2139
      %v2141 = vsel %vm2113, %v2008, 0.0
      %v2142 = vadd.f32 %v2140, %v2141
      %v2143 = vsel %vm2113, %v2009, 0.0
      %v2144 = vadd.f32 %v2142, %v2143
      %v2145 = vrot.slane %v2144, 4
      %v2146 = vadd.f32 %v2144, %v2145
      %v2147 = vrot.slane %v2146, 2
      %v2148 = vadd.f32 %v2146, %v2147
      %v2149 = vrot.slane %v2148, 1
      %v2150 = vadd.f32 %v2148, %v2149
      %v2151 = vmul.f32 %v1994, %v1994
      %v2152 = vmul.f32 %v1995, %v1995
      %v2153 = vmul.f32 %v1996, %v1996
      %v2154 = vmul.f32 %v1997, %v1997
      %v2155 = vmul.f32 %v1998, %v1998
      %v2156 = vmul.f32 %v1999, %v1999
      %v2157 = vmul.f32 %v2000, %v2000
      %v2158 = vmul.f32 %v2001, %v2001
      %v2159 = vmul.f32 %v2002, %v2002
      %v2160 = vmul.f32 %v2003, %v2003
      %v2161 = vmul.f32 %v2004, %v2004
      %v2162 = vmul.f32 %v2005, %v2005
      %v2163 = vmul.f32 %v2006, %v2006
      %v2164 = vmul.f32 %v2007, %v2007
      %v2165 = vmul.f32 %v2008, %v2008
      %v2166 = vmul.f32 %v2009, %v2009
      %v2167 = vsel %vm2113, %v2151, 0.0
      %v2168 = vsel %vm2113, %v2152, 0.0
      %v2169 = vadd.f32 %v2167, %v2168
      %v2170 = vsel %vm2113, %v2153, 0.0
      %v2171 = vadd.f32 %v2169, %v2170
      %v2172 = vsel %vm2113, %v2154, 0.0
      %v2173 = vadd.f32 %v2171, %v2172
      %v2174 = vsel %vm2113, %v2155, 0.0
      %v2175 = vadd.f32 %v2173, %v2174
      %v2176 = vsel %vm2113, %v2156, 0.0
      %v2177 = vadd.f32 %v2175, %v2176
      %v2178 = vsel %vm2113, %v2157, 0.0
      %v2179 = vadd.f32 %v2177, %v2178
      %v2180 = vsel %vm2113, %v2158, 0.0
      %v2181 = vadd.f32 %v2179, %v2180
      %v2182 = vsel %vm2113, %v2159, 0.0
      %v2183 = vadd.f32 %v2181, %v2182
      %v2184 = vsel %vm2113, %v2160, 0.0
      %v2185 = vadd.f32 %v2183, %v2184
      %v2186 = vsel %vm2113, %v2161, 0.0
      %v2187 = vadd.f32 %v2185, %v2186
      %v2188 = vsel %vm2113, %v2162, 0.0
      %v2189 = vadd.f32 %v2187, %v2188
      %v2190 = vsel %vm2113, %v2163, 0.0
      %v2191 = vadd.f32 %v2189, %v2190
      %v2192 = vsel %vm2113, %v2164, 0.0
      %v2193 = vadd.f32 %v2191, %v2192
      %v2194 = vsel %vm2113, %v2165, 0.0
      %v2195 = vadd.f32 %v2193, %v2194
      %v2196 = vsel %vm2113, %v2166, 0.0
      %v2197 = vadd.f32 %v2195, %v2196
      %v2198 = vrot.slane %v2197, 4
      %v2199 = vadd.f32 %v2197, %v2198
      %v2200 = vrot.slane %v2199, 2
      %v2201 = vadd.f32 %v2199, %v2200
      %v2202 = vrot.slane %v2201, 1
      %v2203 = vadd.f32 %v2201, %v2202
      %vm2204 = vcmask 1040384
      %v2205 = vsel %vm2204, %v2150, %v2203
      %vm2206 = vcmask 254976
      %2207 = vst.msk [vmem:[%s254] sm:$0x3] %vm2206, %v2205
      %p2208 = scmp.lt.s32.totalorder %s20, 1
      %s2209 = scalar_select %p2208, %s20, 1
      %p2210 = scmp.lt.s32.totalorder %s21, 1
      %s2211 = scalar_select %p2210, %s21, 1
      %s2212 = smul.addr %s2211, 20
      %s2213 = smul.addr %s2209, 40
      %s2214 = sadd.s32 %s2212, %s2213
      %s2215 = smul.addr %s2214, 4
      %s2216 = scalar_lea.vmem %s3, %s2215
      %p2217 = scmp.lt.s32.totalorder %s20, 1
      %s2218 = scalar_select %p2217, %s20, 1
      %p2219 = scmp.lt.s32.totalorder %s21, 1
      %s2220 = scalar_select %p2219, %s21, 1
      %s2221 = smul.addr %s2218, 2
      %s2222 = sadd.s32 %s2220, %s2221
      %s2223 = smul.addr %s2222, 2
      %s2224 = scalar_lea.vmem %s4, %s2223
      // Predicated region
      $region33: #{mlp_forward.2} parent=31 // pred_check
        %p2225 = pneg %p118
      $region34: #{mlp_forward.2} parent=31 // pred_check_branch
        %2227 = sbr.rel (%p2225) target = $region36
      $region35: #{mlp_forward.2} parent=31 // pred_region
        _
      $region36: #{mlp_forward.2} parent=31 // pred_fallthru
        _
      // Predicated region
      $region37: #{mlp_forward.2} parent=31 // pred_check
        %p2228 = pneg %p146
      $region38: #{mlp_forward.2} parent=31 // pred_check_branch
        %2230 = sbr.rel (%p2228) target = $region40
      $region39: #{mlp_forward.2} parent=31 // pred_region
        _
      $region40: #{mlp_forward.2} parent=31 // pred_fallthru
        _
    $region32: #{mlp_forward.2} parent=5 // pred_fallthru
      _
    %p2231 = scmp.le.s32.totalorder 2, %s11
    // Predicated region
    $region41: #{mlp_forward.2} parent=5 // pred_check
      %p2232 = pneg %p2231
    $region42: #{mlp_forward.2} parent=5 // pred_check_branch
      %2234 = sbr.rel (%p2232) target = $region44
    $region43: #{mlp_forward.2} parent=5 // pred_region
      %s2235 = ssub.s32 %s11, 2
      // Predicated region
      $region45: #{mlp_forward.2} parent=43 // pred_check
        %p2236 = pneg %p124
      $region46: #{mlp_forward.2} parent=43 // pred_check_branch
        %2238 = sbr.rel (%p2236) target = $region48
      $region47: #{mlp_forward.2} parent=43 // pred_region
        %p2239 = scmp.lt.s32.totalorder %s22, 1
        %s2240 = scalar_select %p2239, %s22, 1
        %p2241 = scmp.lt.s32.totalorder %s23, 1
        %s2242 = scalar_select %p2241, %s23, 1
        %s2243 = smul.addr %s2242, 20
        %s2244 = smul.addr %s2240, 40
        %s2245 = sadd.s32 %s2243, %s2244
        %s2246 = smul.addr %s2245, 4
        %s2247 = scalar_lea.vmem %s3, %s2246
      $region48: #{mlp_forward.2} parent=43 // pred_fallthru
        _
      // Predicated region
      $region49: #{mlp_forward.2} parent=43 // pred_check
        %p2248 = pneg %p152
      $region50: #{mlp_forward.2} parent=43 // pred_check_branch
        %2250 = sbr.rel (%p2248) target = $region52
      $region51: #{mlp_forward.2} parent=43 // pred_region
        %p2251 = scmp.lt.s32.totalorder %s22, 1
        %s2252 = scalar_select %p2251, %s22, 1
        %p2253 = scmp.lt.s32.totalorder %s23, 1
        %s2254 = scalar_select %p2253, %s23, 1
        %s2255 = smul.addr %s2252, 2
        %s2256 = sadd.s32 %s2254, %s2255
        %s2257 = smul.addr %s2256, 2
        %s2258 = scalar_lea.vmem %s4, %s2257
      $region52: #{mlp_forward.2} parent=43 // pred_fallthru
        _
    $region44: #{mlp_forward.2} parent=5 // pred_fallthru
      _
  $region6: #{mlp_forward.2} parent=0 // loop_footer
    %s15 = sadd.s32 1, %s11
  $region7: #{mlp_forward.2} parent=0 // loop_footer_branch
    %10 = sbr.rel target = $region3
  $region8: #{mlp_forward.2} parent=0 // loop_exit
    _

// kernel: mlp_forward.3
$region0: #{mlp_forward.3}
  #allocation0 [shape = 'u32[]', space=smem, size = 0x4, offset = 0x4, fixed_abs, tag = 'smem constant byte address 0x4 - core index']
  #allocation1 [shape = 'u32[144,128]{1,0:T(1,128)}', space=vmem, size = 0x12000, scoped, tag = 'internal scratch']
  %s0 = inlined_call_operand.vmem [shape: bf16[2,2,160,32], index: 0, kind: input, shape index: {}]
  %s1 = inlined_call_operand.vmem [shape: f32[1,32], index: 1, kind: input, shape index: {}]
  %s2 = inlined_call_operand.vmem [shape: f32[1,32], index: 2, kind: input, shape index: {}]
  %s3 = inlined_call_operand.vmem [shape: bf16[9,32,8], index: 3, kind: input, shape index: {}]
  %s4 = inlined_call_operand.vmem [shape: f32[1,8], index: 4, kind: input, shape index: {}]
  %s5 = inlined_call_operand.vmem [shape: f32[2,2,128,8], index: 5, kind: output, shape index: {}]
  %s6 = sld [smem:[#allocation0]]
  $region53: #{mlp_forward.3} parent=0
    _
  %s8 = ssub.s32 1, %s6
  %s9 = scalar_select 0, %s8, %s6
  loop: start=0, step=1, limit=6
  $region2: #{mlp_forward.3} parent=0 // loop_pre_header
    _
  $region3: #{mlp_forward.3} parent=0 // loop_header
    %s11 = sphi 0, %s15
    %p12 = scmp.ge.s32.totalorder %s11, 6
    %s18 = sphi 0, %s30
    %s19 = sphi 0, %s26
    %s20 = sphi 0, %s18
    %s21 = sphi 0, %s19
    %s22 = sphi 0, %s20
    %s23 = sphi 0, %s21
    %s35 = sphi 0, %s37
    %s38 = sphi 0, %s35
    %s39 = sphi 0, %s38
    %s55 = sphi 0, %s39
    %s59 = sphi 0, %s59
    %s61 = sphi 0, %s59
    %s62 = sphi 0, %s61
    %s76 = sphi 0, %s62
    %s80 = sphi 0, %s80
    %s82 = sphi 0, %s80
    %s83 = sphi 0, %s82
    %s97 = sphi 0, %s83
    %s101 = sphi 0, %s101
    %s103 = sphi 0, %s101
    %s104 = sphi 0, %s103
    %s118 = sphi 0, %s104
    %s122 = sphi 0, %s122
    %s124 = sphi 0, %s122
    %s125 = sphi 0, %s124
    %s139 = sphi 0, %s125
    %s147 = sphi 0, %s149
    %s150 = sphi 0, %s147
    %s151 = sphi 0, %s150
    %s167 = sphi 0, %s151
  $region4: #{mlp_forward.3} parent=0 // loop_header_branch
    %14 = sbr.rel (%p12) target = $region8
  $region5: #{mlp_forward.3} parent=0 // loop_body
    %s16 = ssub.s32 %s11, 1
    %s17 = ssub.s32 %s11, 2
    %s24 = sadd.s32 1, %s19
    %p25 = scmp.ge.s32.totalorder %s24, 2
    %s26 = scalar_select %p25, 0, %s24
    %s27 = sadd.s32 1, %s18
    %s28 = scalar_select %p25, %s27, %s18
    %p29 = scmp.ge.s32.totalorder %s28, 2
    %s30 = scalar_select %p29, 0, %s28
    %s31 = ssub.s32 %s18, %s30
    %s32 = ssub.s32 %s19, %s26
    %s33 = sor.u32 %s31, %s32
    %p34 = scmp.eq.s32.totalorder %s33, 0
    %s36 = sadd.s32 %s35, 1
    %s37 = scalar_select %p34, %s35, %s36
    %p40 = pneg %p34
    %p41 = scmp.eq.s32.totalorder %s11, 3
    %p42 = por %p40, %p41
    %p43 = scmp.ne.s32.totalorder %s35, %s38
    %p44 = scmp.eq.s32.totalorder %s11, 0
    %p45 = por %p43, %p44
    %p46 = scmp.ne.s32.totalorder %s35, %s38
    %p47 = scmp.eq.s32.totalorder %s16, 3
    %p48 = por %p46, %p47
    %p49 = scmp.ne.s32.totalorder %s38, %s39
    %p50 = scmp.eq.s32.totalorder %s16, 0
    %p51 = por %p49, %p50
    %p52 = scmp.ne.s32.totalorder %s38, %s39
    %p53 = scmp.eq.s32.totalorder %s17, 3
    %p54 = por %p52, %p53
    %p56 = scmp.ne.s32.totalorder %s39, %s55
    %p57 = scmp.eq.s32.totalorder %s17, 0
    %p58 = por %p56, %p57
    %s60 = sadd.s32 %s59, 1
    %p63 = scmp.eq.s32.totalorder %s11, 3
    %p64 = scmp.ne.s32.totalorder %s59, %s61
    %p65 = scmp.eq.s32.totalorder %s11, 0
    %p66 = por %p64, %p65
    %p67 = scmp.ne.s32.totalorder %s59, %s61
    %p68 = scmp.eq.s32.totalorder %s16, 3
    %p69 = por %p67, %p68
    %p70 = scmp.ne.s32.totalorder %s61, %s62
    %p71 = scmp.eq.s32.totalorder %s16, 0
    %p72 = por %p70, %p71
    %p73 = scmp.ne.s32.totalorder %s61, %s62
    %p74 = scmp.eq.s32.totalorder %s17, 3
    %p75 = por %p73, %p74
    %p77 = scmp.ne.s32.totalorder %s62, %s76
    %p78 = scmp.eq.s32.totalorder %s17, 0
    %p79 = por %p77, %p78
    %s81 = sadd.s32 %s80, 1
    %p84 = scmp.eq.s32.totalorder %s11, 3
    %p85 = scmp.ne.s32.totalorder %s80, %s82
    %p86 = scmp.eq.s32.totalorder %s11, 0
    %p87 = por %p85, %p86
    %p88 = scmp.ne.s32.totalorder %s80, %s82
    %p89 = scmp.eq.s32.totalorder %s16, 3
    %p90 = por %p88, %p89
    %p91 = scmp.ne.s32.totalorder %s82, %s83
    %p92 = scmp.eq.s32.totalorder %s16, 0
    %p93 = por %p91, %p92
    %p94 = scmp.ne.s32.totalorder %s82, %s83
    %p95 = scmp.eq.s32.totalorder %s17, 3
    %p96 = por %p94, %p95
    %p98 = scmp.ne.s32.totalorder %s83, %s97
    %p99 = scmp.eq.s32.totalorder %s17, 0
    %p100 = por %p98, %p99
    %s102 = sadd.s32 %s101, 1
    %p105 = scmp.eq.s32.totalorder %s11, 3
    %p106 = scmp.ne.s32.totalorder %s101, %s103
    %p107 = scmp.eq.s32.totalorder %s11, 0
    %p108 = por %p106, %p107
    %p109 = scmp.ne.s32.totalorder %s101, %s103
    %p110 = scmp.eq.s32.totalorder %s16, 3
    %p111 = por %p109, %p110
    %p112 = scmp.ne.s32.totalorder %s103, %s104
    %p113 = scmp.eq.s32.totalorder %s16, 0
    %p114 = por %p112, %p113
    %p115 = scmp.ne.s32.totalorder %s103, %s104
    %p116 = scmp.eq.s32.totalorder %s17, 3
    %p117 = por %p115, %p116
    %p119 = scmp.ne.s32.totalorder %s104, %s118
    %p120 = scmp.eq.s32.totalorder %s17, 0
    %p121 = por %p119, %p120
    %s123 = sadd.s32 %s122, 1
    %p126 = scmp.eq.s32.totalorder %s11, 3
    %p127 = scmp.ne.s32.totalorder %s122, %s124
    %p128 = scmp.eq.s32.totalorder %s11, 0
    %p129 = por %p127, %p128
    %p130 = scmp.ne.s32.totalorder %s122, %s124
    %p131 = scmp.eq.s32.totalorder %s16, 3
    %p132 = por %p130, %p131
    %p133 = scmp.ne.s32.totalorder %s124, %s125
    %p134 = scmp.eq.s32.totalorder %s16, 0
    %p135 = por %p133, %p134
    %p136 = scmp.ne.s32.totalorder %s124, %s125
    %p137 = scmp.eq.s32.totalorder %s17, 3
    %p138 = por %p136, %p137
    %p140 = scmp.ne.s32.totalorder %s125, %s139
    %p141 = scmp.eq.s32.totalorder %s17, 0
    %p142 = por %p140, %p141
    %s143 = ssub.s32 %s18, %s30
    %s144 = ssub.s32 %s19, %s26
    %s145 = sor.u32 %s143, %s144
    %p146 = scmp.eq.s32.totalorder %s145, 0
    %s148 = sadd.s32 %s147, 1
    %s149 = scalar_select %p146, %s147, %s148
    %p152 = pneg %p146
    %p153 = scmp.eq.s32.totalorder %s11, 3
    %p154 = por %p152, %p153
    %p155 = scmp.ne.s32.totalorder %s147, %s150
    %p156 = scmp.eq.s32.totalorder %s11, 0
    %p157 = por %p155, %p156
    %p158 = scmp.ne.s32.totalorder %s147, %s150
    %p159 = scmp.eq.s32.totalorder %s16, 3
    %p160 = por %p158, %p159
    %p161 = scmp.ne.s32.totalorder %s150, %s151
    %p162 = scmp.eq.s32.totalorder %s16, 0
    %p163 = por %p161, %p162
    %p164 = scmp.ne.s32.totalorder %s150, %s151
    %p165 = scmp.eq.s32.totalorder %s17, 3
    %p166 = por %p164, %p165
    %p168 = scmp.ne.s32.totalorder %s151, %s167
    %p169 = scmp.eq.s32.totalorder %s17, 0
    %p170 = por %p168, %p169
    %p171 = scmp.le.s32.totalorder 1, %s11
    %p172 = scmp.lt.s32.totalorder %s11, 5
    %p173 = pnand %p171, %p172
    %p174 = pneg %p173
    // Predicated region
    $region9: #{mlp_forward.3} parent=5 // pred_check
      _
    $region10: #{mlp_forward.3} parent=5 // pred_check_branch
      %176 = sbr.rel (%p173) target = $region12
    $region11: #{mlp_forward.3} parent=5 // pred_region
      %s177 = ssub.s32 %s11, 1
      // Predicated region
      $region13: #{mlp_forward.3} parent=11 // pred_check
        %p178 = pneg %p72
      $region14: #{mlp_forward.3} parent=11 // pred_check_branch
        %180 = sbr.rel (%p178) target = $region16
      $region15: #{mlp_forward.3} parent=11 // pred_region
        _
      $region16: #{mlp_forward.3} parent=11 // pred_fallthru
        _
      // Predicated region
      $region17: #{mlp_forward.3} parent=11 // pred_check
        %p181 = pneg %p93
      $region18: #{mlp_forward.3} parent=11 // pred_check_branch
        %183 = sbr.rel (%p181) target = $region20
      $region19: #{mlp_forward.3} parent=11 // pred_region
        _
      $region20: #{mlp_forward.3} parent=11 // pred_fallthru
        _
      // Predicated region
      $region21: #{mlp_forward.3} parent=11 // pred_check
        %p184 = pneg %p114
      $region22: #{mlp_forward.3} parent=11 // pred_check_branch
        %186 = sbr.rel (%p184) target = $region24
      $region23: #{mlp_forward.3} parent=11 // pred_region
        _
      $region24: #{mlp_forward.3} parent=11 // pred_fallthru
        _
      // Predicated region
      $region25: #{mlp_forward.3} parent=11 // pred_check
        %p187 = pneg %p135
      $region26: #{mlp_forward.3} parent=11 // pred_check_branch
        %189 = sbr.rel (%p187) target = $region28
      $region27: #{mlp_forward.3} parent=11 // pred_region
        _
      $region28: #{mlp_forward.3} parent=11 // pred_fallthru
        _
    $region12: #{mlp_forward.3} parent=5 // pred_fallthru
      _
    %p190 = scmp.lt.s32.totalorder %s11, 4
    // Predicated region
    $region29: #{mlp_forward.3} parent=5 // pred_check
      %p191 = pneg %p190
    $region30: #{mlp_forward.3} parent=5 // pred_check_branch
      %193 = sbr.rel (%p191) target = $region32
    $region31: #{mlp_forward.3} parent=5 // pred_region
      // Predicated region
      $region33: #{mlp_forward.3} parent=31 // pred_check
        %p194 = pneg %p45
      $region34: #{mlp_forward.3} parent=31 // pred_check_branch
        %196 = sbr.rel (%p194) target = $region36
      $region35: #{mlp_forward.3} parent=31 // pred_region
        %p197 = scmp.lt.s32.totalorder %s18, 1
        %s198 = scalar_select %p197, %s18, 1
        %p199 = scmp.lt.s32.totalorder %s19, 1
        %s200 = scalar_select %p199, %s19, 1
        %s201 = smul.addr %s200, 20
        %s202 = smul.addr %s198, 40
        %s203 = sadd.s32 %s201, %s202
        %s204 = smul.addr %s203, 4
        %s205 = scalar_lea.vmem %s0, %s204
      $region36: #{mlp_forward.3} parent=31 // pred_fallthru
        _
    $region32: #{mlp_forward.3} parent=5 // pred_fallthru
      _
    %p206 = scmp.le.s32.totalorder 1, %s11
    %p207 = scmp.lt.s32.totalorder %s11, 5
    %p208 = pnand %p206, %p207
    %p209 = pneg %p208
    // Predicated region
    $region37: #{mlp_forward.3} parent=5 // pred_check
      _
    $region38: #{mlp_forward.3} parent=5 // pred_check_branch
      %211 = sbr.rel (%p208) target = $region40
    $region39: #{mlp_forward.3} parent=5 // pred_region
      %s212 = ssub.s32 %s11, 1
      %p213 = scmp.lt.s32.totalorder %s20, 1
      %s214 = scalar_select %p213, %s20, 1
      %p215 = scmp.lt.s32.totalorder %s21, 1
      %s216 = scalar_select %p215, %s21, 1
      %s217 = smul.addr %s216, 20
      %s218 = smul.addr %s214, 40
      %s219 = sadd.s32 %s217, %s218
      %s220 = smul.addr %s219, 4
      %s221 = scalar_lea.vmem %s0, %s220
      %p222 = pneg %p51
      %p223 = pneg %p48
      %p224 = pneg %p72
      %p225 = pneg %p69
      %p226 = pneg %p93
      %p227 = pneg %p90
      %p228 = pneg %p114
      %p229 = pneg %p111
      %p230 = pneg %p135
      %p231 = pneg %p132
      %p232 = pneg %p163
      %p233 = pneg %p160
      %p234 = scmp.lt.s32.totalorder %s20, 1
      %s235 = scalar_select %p234, %s20, 1
      %p236 = scmp.lt.s32.totalorder %s21, 1
      %s237 = scalar_select %p236, %s21, 1
      %s238 = smul.addr %s237, 16
      %s239 = smul.addr %s235, 32
      %s240 = sadd.s32 %s238, %s239
      %s241 = smul.addr %s240, 8
      %s242 = scalar_lea.vmem %s5, %s241
      %p243 = scmp.lt.s32.totalorder %s20, 1
      %s244 = scalar_select %p243, %s20, 1
      %p245 = scmp.lt.s32.totalorder %s21, 1
      %s246 = scalar_select %p245, %s21, 1
      %s247 = smul.addr %s246, 20
      %s248 = smul.addr %s244, 40
      %s249 = sadd.s32 %s247, %s248
      %s250 = smul.addr %s249, 4
      %s251 = scalar_lea.vmem %s0, %s250
      %p252 = scmp.lt.s32.totalorder %s20, 1
      %s253 = scalar_select %p252, %s20, 1
      %p254 = scmp.lt.s32.totalorder %s21, 1
      %s255 = scalar_select %p254, %s21, 1
      %s256 = smul.addr %s255, 16
      %s257 = smul.addr %s253, 32
      %s258 = sadd.s32 %s256, %s257
      %s259 = smul.addr %s258, 8
      %s260 = scalar_lea.vmem %s5, %s259
      %v264 = vld [vmem:[%s251] sm:$0xf]
      %v265 = vld [vmem:[%s251 + $0x4] sm:$0xf]
      %v266 = vld [vmem:[%s251 + $0x8] sm:$0xf]
      %v267 = vld [vmem:[%s251 + $0xc] sm:$0xf]
      %v268 = vld [vmem:[%s251 + $0x10] sm:$0xf]
      %v269 = vld [vmem:[%s251 + $0x14] sm:$0xf]
      %v270 = vld [vmem:[%s251 + $0x18] sm:$0xf]
      %v271 = vld [vmem:[%s251 + $0x1c] sm:$0xf]
      %v272 = vld [vmem:[%s251 + $0x20] sm:$0xf]
      %v273 = vld [vmem:[%s251 + $0x24] sm:$0xf]
      %v274 = vld [vmem:[%s251 + $0x28] sm:$0xf]
      %v275 = vld [vmem:[%s251 + $0x2c] sm:$0xf]
      %v276 = vld [vmem:[%s251 + $0x30] sm:$0xf]
      %v277 = vld [vmem:[%s251 + $0x34] sm:$0xf]
      %v278 = vld [vmem:[%s251 + $0x38] sm:$0xf]
      %v279 = vld [vmem:[%s251 + $0x3c] sm:$0xf]
      %v280 = vld [vmem:[%s251 + $0x40] sm:$0xf]
      %v281 = vld [vmem:[%s251 + $0x44] sm:$0xf]
      %v282 = vld [vmem:[%s251 + $0x48] sm:$0xf]
      %v283 = vld [vmem:[%s251 + $0x4c] sm:$0xf]
      %v284 = vunpack.c.l.bf16 %v264
      %v285 = vunpack.c.l.bf16 %v265
      %v286 = vunpack.c.l.bf16 %v266
      %v287 = vunpack.c.l.bf16 %v267
      %v288 = vunpack.c.l.bf16 %v268
      %v289 = vunpack.c.l.bf16 %v269
      %v290 = vunpack.c.l.bf16 %v270
      %v291 = vunpack.c.l.bf16 %v271
      %v292 = vunpack.c.l.bf16 %v272
      %v293 = vunpack.c.l.bf16 %v273
      %v294 = vunpack.c.l.bf16 %v274
      %v295 = vunpack.c.l.bf16 %v275
      %v296 = vunpack.c.l.bf16 %v276
      %v297 = vunpack.c.l.bf16 %v277
      %v298 = vunpack.c.l.bf16 %v278
      %v299 = vunpack.c.l.bf16 %v279
      %v300 = vunpack.c.l.bf16 %v280
      %v301 = vunpack.c.l.bf16 %v281
      %v302 = vunpack.c.l.bf16 %v282
      %v303 = vunpack.c.l.bf16 %v283
      %v304 = vld [vmem:[%s1] sm:$0x1]
      %v306 = vlaneseq
      %v307 = vshrl.u32 %v306, 7
      %v308 = vsub.s32 0, %v307
      %v309 = vrot.slane %v304, %v308
      %v311 = vmul.f32 %v284, %v309
      %v312 = vmul.f32 %v285, %v309
      %v313 = vmul.f32 %v286, %v309
      %v314 = vmul.f32 %v287, %v309
      %v315 = vmul.f32 %v288, %v309
      %v316 = vmul.f32 %v289, %v309
      %v317 = vmul.f32 %v290, %v309
      %v318 = vmul.f32 %v291, %v309
      %v319 = vmul.f32 %v292, %v309
      %v320 = vmul.f32 %v293, %v309
      %v321 = vmul.f32 %v294, %v309
      %v322 = vmul.f32 %v295, %v309
      %v323 = vmul.f32 %v296, %v309
      %v324 = vmul.f32 %v297, %v309
      %v325 = vmul.f32 %v298, %v309
      %v326 = vmul.f32 %v299, %v309
      %v327 = vmul.f32 %v300, %v309
      %v328 = vmul.f32 %v301, %v309
      %v329 = vmul.f32 %v302, %v309
      %v330 = vmul.f32 %v303, %v309
      %v331 = vld [vmem:[%s2] sm:$0x1]
      %v333 = vlaneseq
      %v334 = vshrl.u32 %v333, 7
      %v335 = vsub.s32 0, %v334
      %v336 = vrot.slane %v331, %v335
      %v338 = vadd.f32 %v311, %v336
      %v339 = vadd.f32 %v312, %v336
      %v340 = vadd.f32 %v313, %v336
      %v341 = vadd.f32 %v314, %v336
      %v342 = vadd.f32 %v315, %v336
      %v343 = vadd.f32 %v316, %v336
      %v344 = vadd.f32 %v317, %v336
      %v345 = vadd.f32 %v318, %v336
      %v346 = vadd.f32 %v319, %v336
      %v347 = vadd.f32 %v320, %v336
      %v348 = vadd.f32 %v321, %v336
      %v349 = vadd.f32 %v322, %v336
      %v350 = vadd.f32 %v323, %v336
      %v351 = vadd.f32 %v324, %v336
      %v352 = vadd.f32 %v325, %v336
      %v353 = vadd.f32 %v326, %v336
      %v354 = vadd.f32 %v327, %v336
      %v355 = vadd.f32 %v328, %v336
      %v356 = vadd.f32 %v329, %v336
      %v357 = vadd.f32 %v330, %v336
      %v358 = vmul.f32 %v338, 0.5
      %v359 = vmul.f32 %v339, 0.5
      %v360 = vmul.f32 %v340, 0.5
      %v361 = vmul.f32 %v341, 0.5
      %v362 = vmul.f32 %v342, 0.5
      %v363 = vmul.f32 %v343, 0.5
      %v364 = vmul.f32 %v344, 0.5
      %v365 = vmul.f32 %v345, 0.5
      %v366 = vmul.f32 %v346, 0.5
      %v367 = vmul.f32 %v347, 0.5
      %v368 = vmul.f32 %v348, 0.5
      %v369 = vmul.f32 %v349, 0.5
      %v370 = vmul.f32 %v350, 0.5
      %v371 = vmul.f32 %v351, 0.5
      %v372 = vmul.f32 %v352, 0.5
      %v373 = vmul.f32 %v353, 0.5
      %v374 = vmul.f32 %v354, 0.5
      %v375 = vmul.f32 %v355, 0.5
      %v376 = vmul.f32 %v356, 0.5
      %v377 = vmul.f32 %v357, 0.5
      %v378 = vmul.f32 %v338, 0.70710677
      %v379 = vmul.f32 %v339, 0.70710677
      %v380 = vmul.f32 %v340, 0.70710677
      %v381 = vmul.f32 %v341, 0.70710677
      %v382 = vmul.f32 %v342, 0.70710677
      %v383 = vmul.f32 %v343, 0.70710677
      %v384 = vmul.f32 %v344, 0.70710677
      %v385 = vmul.f32 %v345, 0.70710677
      %v386 = vmul.f32 %v346, 0.70710677
      %v387 = vmul.f32 %v347, 0.70710677
      %v388 = vmul.f32 %v348, 0.70710677
      %v389 = vmul.f32 %v349, 0.70710677
      %v390 = vmul.f32 %v350, 0.70710677
      %v391 = vmul.f32 %v351, 0.70710677
      %v392 = vmul.f32 %v352, 0.70710677
      %v393 = vmul.f32 %v353, 0.70710677
      %v394 = vmul.f32 %v354, 0.70710677
      %v395 = vmul.f32 %v355, 0.70710677
      %v396 = vmul.f32 %v356, 0.70710677
      %v397 = vmul.f32 %v357, 0.70710677
      %v398 = verf.f32.pop %v378
      %v399 = verf.f32.pop %v379
      %v400 = verf.f32.pop %v380
      %v401 = verf.f32.pop %v381
      %v402 = verf.f32.pop %v382
      %v403 = verf.f32.pop %v383
      %v404 = verf.f32.pop %v384
      %v405 = verf.f32.pop %v385
      %v406 = verf.f32.pop %v386
      %v407 = verf.f32.pop %v387
      %v408 = verf.f32.pop %v388
      %v409 = verf.f32.pop %v389
      %v410 = verf.f32.pop %v390
      %v411 = verf.f32.pop %v391
      %v412 = verf.f32.pop %v392
      %v413 = verf.f32.pop %v393
      %v414 = verf.f32.pop %v394
      %v415 = verf.f32.pop %v395
      %v416 = verf.f32.pop %v396
      %v417 = verf.f32.pop %v397
      %v418 = vadd.f32 %v398, 1.0
      %v419 = vadd.f32 %v399, 1.0
      %v420 = vadd.f32 %v400, 1.0
      %v421 = vadd.f32 %v401, 1.0
      %v422 = vadd.f32 %v402, 1.0
      %v423 = vadd.f32 %v403, 1.0
      %v424 = vadd.f32 %v404, 1.0
      %v425 = vadd.f32 %v405, 1.0
      %v426 = vadd.f32 %v406, 1.0
      %v427 = vadd.f32 %v407, 1.0
      %v428 = vadd.f32 %v408, 1.0
      %v429 = vadd.f32 %v409, 1.0
      %v430 = vadd.f32 %v410, 1.0
      %v431 = vadd.f32 %v411, 1.0
      %v432 = vadd.f32 %v412, 1.0
      %v433 = vadd.f32 %v413, 1.0
      %v434 = vadd.f32 %v414, 1.0
      %v435 = vadd.f32 %v415, 1.0
      %v436 = vadd.f32 %v416, 1.0
      %v437 = vadd.f32 %v417, 1.0
      %v438 = vmul.f32 %v358, %v418
      %v439 = vmul.f32 %v359, %v419
      %v440 = vmul.f32 %v360, %v420
      %v441 = vmul.f32 %v361, %v421
      %v442 = vmul.f32 %v362, %v422
      %v443 = vmul.f32 %v363, %v423
      %v444 = vmul.f32 %v364, %v424
      %v445 = vmul.f32 %v365, %v425
      %v446 = vmul.f32 %v366, %v426
      %v447 = vmul.f32 %v367, %v427
      %v448 = vmul.f32 %v368, %v428
      %v449 = vmul.f32 %v369, %v429
      %v450 = vmul.f32 %v370, %v430
      %v451 = vmul.f32 %v371, %v431
      %v452 = vmul.f32 %v372, %v432
      %v453 = vmul.f32 %v373, %v433
      %v454 = vmul.f32 %v374, %v434
      %v455 = vmul.f32 %v375, %v435
      %v456 = vmul.f32 %v376, %v436
      %v457 = vmul.f32 %v377, %v437
      %s458 = smul.u32 %s21, 8
      %s459 = ssub.s32 %s458, 1
      %v460 = vstv %s459
      %v461 = vadd.s32 %v460, 1
      %v462 = vadd.s32 %v460, 2
      %v463 = vadd.s32 %v460, 3
      %v464 = vadd.s32 %v460, 4
      %v465 = vadd.s32 %v460, 5
      %v466 = vadd.s32 %v460, 6
      %v467 = vadd.s32 %v460, 7
      %v468 = vadd.s32 %v460, 8
      %v469 = vadd.s32 %v460, 9
      %vm470 = vcmp.ge.s32.totalorder %v460, 0
      %vm471 = vcmp.ge.s32.totalorder %v461, 0
      %vm472 = vcmp.ge.s32.totalorder %v462, 0
      %vm473 = vcmp.ge.s32.totalorder %v463, 0
      %vm474 = vcmp.ge.s32.totalorder %v464, 0
      %vm475 = vcmp.ge.s32.totalorder %v465, 0
      %vm476 = vcmp.ge.s32.totalorder %v466, 0
      %vm477 = vcmp.ge.s32.totalorder %v467, 0
      %vm478 = vcmp.ge.s32.totalorder %v468, 0
      %vm479 = vcmp.ge.s32.totalorder %v469, 0
      %vm480 = vcmp.lt.s32.totalorder %v460, 16
      %vm481 = vcmp.lt.s32.totalorder %v461, 16
      %vm482 = vcmp.lt.s32.totalorder %v462, 16
      %vm483 = vcmp.lt.s32.totalorder %v463, 16
      %vm484 = vcmp.lt.s32.totalorder %v464, 16
      %vm485 = vcmp.lt.s32.totalorder %v465, 16
      %vm486 = vcmp.lt.s32.totalorder %v466, 16
      %vm487 = vcmp.lt.s32.totalorder %v467, 16
      %vm488 = vcmp.lt.s32.totalorder %v468, 16
      %vm489 = vcmp.lt.s32.totalorder %v469, 16
      %vm490 = vmand %vm470, %vm480
      %vm491 = vmand %vm471, %vm481
      %vm492 = vmand %vm472, %vm482
      %vm493 = vmand %vm473, %vm483
      %vm494 = vmand %vm474, %vm484
      %vm495 = vmand %vm475, %vm485
      %vm496 = vmand %vm476, %vm486
      %vm497 = vmand %vm477, %vm487
      %vm498 = vmand %vm478, %vm488
      %vm499 = vmand %vm479, %vm489
      %v500 = vsel %vm490, %v438, 0.0
      %v501 = vsel %vm490, %v439, 0.0
      %v502 = vsel %vm491, %v440, 0.0
      %v503 = vsel %vm491, %v441, 0.0
      %v504 = vsel %vm492, %v442, 0.0
      %v505 = vsel %vm492, %v443, 0.0
      %v506 = vsel %vm493, %v444, 0.0
      %v507 = vsel %vm493, %v445, 0.0
      %v508 = vsel %vm494, %v446, 0.0
      %v509 = vsel %vm494, %v447, 0.0
      %v510 = vsel %vm495, %v448, 0.0
      %v511 = vsel %vm495, %v449, 0.0
      %v512 = vsel %vm496, %v450, 0.0
      %v513 = vsel %vm496, %v451, 0.0
      %v514 = vsel %vm497, %v452, 0.0
      %v515 = vsel %vm497, %v453, 0.0
      %v516 = vsel %vm498, %v454, 0.0
      %v517 = vsel %vm498, %v455, 0.0
      %v518 = vsel %vm499, %v456, 0.0
      %v519 = vsel %vm499, %v457, 0.0
      %v520 = vpack.c.bf16 %v501, %v500
      %v521 = vpack.c.bf16 %v503, %v502
      %v522 = vpack.c.bf16 %v505, %v504
      %v523 = vpack.c.bf16 %v507, %v506
      %v524 = vpack.c.bf16 %v509, %v508
      %v525 = vpack.c.bf16 %v511, %v510
      %v526 = vpack.c.bf16 %v513, %v512
      %v527 = vpack.c.bf16 %v515, %v514
      %v528 = vpack.c.bf16 %v517, %v516
      %v529 = vpack.c.bf16 %v519, %v518
      %vm530 = vsmask.f32 256
      %v532 = vshrl.u32 %v520, 16
      %v534 = vrot.slane %v532, 7
      %v535 = vshll.u32 %v520, 16
      %v537 = vor.u32 %v534, %v535
      %v539 = vshrl.u32 %v521, 16
      %v541 = vrot.slane %v539, 7
      %v542 = vshll.u32 %v521, 16
      %v544 = vor.u32 %v541, %v542
      %v545 = vsel %vm530, %v534, %v544
      %v547 = vshrl.u32 %v522, 16
      %v549 = vrot.slane %v547, 7
      %v550 = vshll.u32 %v522, 16
      %v552 = vor.u32 %v549, %v550
      %v553 = vsel %vm530, %v541, %v552
      %v555 = vshrl.u32 %v523, 16
      %v557 = vrot.slane %v555, 7
      %v558 = vshll.u32 %v523, 16
      %v560 = vor.u32 %v557, %v558
      %v561 = vsel %vm530, %v549, %v560
      %v563 = vshrl.u32 %v524, 16
      %v565 = vrot.slane %v563, 7
      %v566 = vshll.u32 %v524, 16
      %v568 = vor.u32 %v565, %v566
      %v569 = vsel %vm530, %v557, %v568
      %v571 = vshrl.u32 %v525, 16
      %v573 = vrot.slane %v571, 7
      %v574 = vshll.u32 %v525, 16
      %v576 = vor.u32 %v573, %v574
      %v577 = vsel %vm530, %v565, %v576
      %v579 = vshrl.u32 %v526, 16
      %v581 = vrot.slane %v579, 7
      %v582 = vshll.u32 %v526, 16
      %v584 = vor.u32 %v581, %v582
      %v585 = vsel %vm530, %v573, %v584
      %v587 = vshrl.u32 %v527, 16
      %v589 = vrot.slane %v587, 7
      %v590 = vshll.u32 %v527, 16
      %v592 = vor.u32 %v589, %v590
      %v593 = vsel %vm530, %v581, %v592
      %v595 = vshrl.u32 %v528, 16
      %v597 = vrot.slane %v595, 7
      %v598 = vshll.u32 %v528, 16
      %v600 = vor.u32 %v597, %v598
      %v601 = vsel %vm530, %v589, %v600
      %v603 = vshrl.u32 %v529, 16
      %v605 = vrot.slane %v603, 7
      %v606 = vshll.u32 %v529, 16
      %v608 = vor.u32 %v605, %v606
      %v609 = vsel %vm530, %v597, %v608
      %vm621 = vcmask 1040384
      %vm622 = vmand %vm621, %vm530
      %v623 = vsel %vm622, 0, %v537
      %v624 = vsel %vm622, %v605, 0
      %v625 = vlaneseq
      %v626 = vshrl.u32 %v625, 7
      %v627 = vadd.s32 %v626, 8
      %vm628 = vcmp.ne.s32.totalorder %v626, 0
      %vm629 = vcmp.ne.s32.totalorder %v627, 0
      %vm630 = vcmp.ne.s32.totalorder %v626, 15
      %vm631 = vcmp.ne.s32.totalorder %v627, 15
      %vm632 = vmpackc.low %vm628, %vm628
      %vm633 = vmpackc.low %vm629, %vm629
      %v634 = vsel %vm632, 65537, 0
      %v635 = vsel %vm633, 65537, 0
      %v636 = vunpack.c.l.b16 %v634
      %v637 = vunpack.c.l.b16 %v635
      %v638 = vpack.c.b16 %v637, %v636
      %vm639 = vcmp.ne.s16.totalorder %v638, 0
      %v640 = vsel %vm639, %v623, 0
      %v641 = vsel %vm639, %v545, 0
      %v642 = vsel %vm639, %v553, 0
      %v643 = vsel %vm639, %v561, 0
      %v644 = vsel %vm639, %v569, 0
      %v645 = vsel %vm639, %v577, 0
      %v646 = vsel %vm639, %v585, 0
      %v647 = vsel %vm639, %v593, 0
      %v648 = vld [vmem:[%s3] sm:$0xf]
      %v649 = vld [vmem:[%s3 + $0x4] sm:$0xf]
      %v650 = vld [vmem:[%s3 + $0x8] sm:$0xf]
      %v651 = vld [vmem:[%s3 + $0xc] sm:$0xf]
      %s652 = scalar_lea.vmem %s3, 16
      %v653 = vld [vmem:[%s652] sm:$0xf]
      %v654 = vld [vmem:[%s652 + $0x4] sm:$0xf]
      %v655 = vld [vmem:[%s652 + $0x8] sm:$0xf]
      %v656 = vld [vmem:[%s652 + $0xc] sm:$0xf]
      %vm657 = vsmask.f32 7424
      %v659 = vshrl.u32 %v623, 16
      %v661 = vshll.u32 %v623, 16
      %v663 = vrot.slane %v661, 1
      %v664 = vor.u32 %v659, %v663
      %v666 = vshll.u32 %v545, 16
      %v668 = vrot.slane %v666, 1
      %v669 = vsel %vm657, %v664, %v668
      %v670 = vshrl.u32 %v545, 16
      %v672 = vor.u32 %v670, %v668
      %v674 = vshll.u32 %v553, 16
      %v676 = vrot.slane %v674, 1
      %v677 = vsel %vm657, %v672, %v676
      %v678 = vshrl.u32 %v553, 16
      %v680 = vor.u32 %v678, %v676
      %v682 = vshll.u32 %v561, 16
      %v684 = vrot.slane %v682, 1
      %v685 = vsel %vm657, %v680, %v684
      %v686 = vshrl.u32 %v561, 16
      %v688 = vor.u32 %v686, %v684
      %v690 = vshll.u32 %v569, 16
      %v692 = vrot.slane %v690, 1
      %v693 = vsel %vm657, %v688, %v692
      %v694 = vshrl.u32 %v569, 16
      %v696 = vor.u32 %v694, %v692
      %v698 = vshll.u32 %v577, 16
      %v700 = vrot.slane %v698, 1
      %v701 = vsel %vm657, %v696, %v700
      %v702 = vshrl.u32 %v577, 16
      %v704 = vor.u32 %v702, %v700
      %v706 = vshll.u32 %v585, 16
      %v708 = vrot.slane %v706, 1
      %v709 = vsel %vm657, %v704, %v708
      %v710 = vshrl.u32 %v585, 16
      %v712 = vor.u32 %v710, %v708
      %v714 = vshll.u32 %v593, 16
      %v716 = vrot.slane %v714, 1
      %v717 = vsel %vm657, %v712, %v716
      %v718 = vshrl.u32 %v593, 16
      %v720 = vor.u32 %v718, %v716
      %v722 = vshll.u32 %v601, 16
      %v724 = vrot.slane %v722, 1
      %v725 = vsel %vm657, %v720, %v724
      %v730 = vunpack.c.l.b16 %v653
      %v731 = vunpack.c.l.b16 %v654
      %v732 = vunpack.c.l.b16 %v655
      %v733 = vunpack.c.l.b16 %v656
      %v734 = vpack.c.b16 %v731, %v730
      %v735 = vpack.c.b16 %v733, %v732
      %vm738 = vcmask 261120
      %v740 = vsel %vm738, %v669, 0
      %v743 = vsel %vm738, %v677, 0
      %v746 = vsel %vm738, %v685, 0
      %v749 = vsel %vm738, %v693, 0
      %v752 = vsel %vm738, %v701, 0
      %v755 = vsel %vm738, %v709, 0
      %v758 = vsel %vm738, %v717, 0
      %v761 = vsel %vm738, %v725, 0
      %763 = vmatprep.subr.bf16.mxu0 0
      %764 = vmatpush1.bf16.msra.mxu0 0
      %765 = vmatprep.subr.bf16.mxu0 0
      %766 = vmatpush1.bf16.msra.mxu0 0
      %767 = vmatprep.subr.bf16.mxu0 0
      %768 = vmatpush1.bf16.msra.mxu0 0
      %769 = vmatprep.subr.bf16.mxu0 0
      %770 = vmatpush1.bf16.msra.mxu0 0
      %771 = vmatprep.subr.bf16.mxu0 0
      %772 = vmatpush1.bf16.msra.mxu0 0
      %773 = vmatprep.subr.bf16.mxu0 0
      %774 = vmatpush1.bf16.msra.mxu0 0
      %775 = vmatprep.subr.bf16.mxu0 0
      %776 = vmatpush1.bf16.msra.mxu0 %v735
      %777 = vmatprep.subr.bf16.mxu0 0
      %778 = vmatpush1.bf16.msra.mxu0 %v734
      %779 = vmatprep.subr.bf16.mxu0 0
      %780 = vmatpush2.bf16.msra.mxu0 0
      %781 = vmatprep.subr.bf16.mxu0 0
      %782 = vmatpush2.bf16.msra.mxu0 0
      %783 = vmatprep.subr.bf16.mxu0 0
      %784 = vmatpush2.bf16.msra.mxu0 0
      %785 = vmatprep.subr.bf16.mxu0 0
      %786 = vmatpush2.bf16.msra.mxu0 0
      %787 = vmatprep.subr.bf16.mxu0 0
      %788 = vmatpush2.bf16.msra.mxu0 0
      %789 = vmatprep.subr.bf16.mxu0 0
      %790 = vmatpush2.bf16.msra.mxu0 0
      %791 = vmatprep.subr.bf16.mxu0 0
      %792 = vmatpush2.bf16.msra.mxu0 0
      %793 = vmatprep.subr.bf16.mxu0 0
      %794 = vmatpush2.bf16.msra.mxu0 0
      %795 = vmatprep.mubr.bf16.mxu0 0
      %796 = vmatmul.mubr.bf16.gmra.mxu0 %v740
      %v797 = vpop.f32.mrf.mxu0
      %v798 = vadd.f32 0.0, %v797
      %v799 = vpop.f32.mrf.mxu0
      %v800 = vpop.f32.mrf.mxu0
      %v801 = vadd.f32 0.0, %v800
      %v802 = vpop.f32.mrf.mxu0
      %803 = vmatprep.mubr.bf16.mxu0 0
      %804 = vmatmul.mubr.bf16.gmra.mxu0 %v743
      %v805 = vpop.f32.mrf.mxu0
      %v806 = vadd.f32 0.0, %v805
      %v807 = vpop.f32.mrf.mxu0
      %v808 = vpop.f32.mrf.mxu0
      %v809 = vadd.f32 0.0, %v808
      %v810 = vpop.f32.mrf.mxu0
      %811 = vmatprep.mubr.bf16.mxu0 0
      %812 = vmatmul.mubr.bf16.gmra.mxu0 %v746
      %v813 = vpop.f32.mrf.mxu0
      %v814 = vadd.f32 0.0, %v813
      %v815 = vpop.f32.mrf.mxu0
      %v816 = vpop.f32.mrf.mxu0
      %v817 = vadd.f32 0.0, %v816
      %v818 = vpop.f32.mrf.mxu0
      %819 = vmatprep.mubr.bf16.mxu0 0
      %820 = vmatmul.mubr.bf16.gmra.mxu0 %v749
      %v821 = vpop.f32.mrf.mxu0
      %v822 = vadd.f32 0.0, %v821
      %v823 = vpop.f32.mrf.mxu0
      %v824 = vpop.f32.mrf.mxu0
      %v825 = vadd.f32 0.0, %v824
      %v826 = vpop.f32.mrf.mxu0
      %827 = vmatprep.mubr.bf16.mxu0 0
      %828 = vmatmul.mubr.bf16.gmra.mxu0 %v752
      %v829 = vpop.f32.mrf.mxu0
      %v830 = vadd.f32 0.0, %v829
      %v831 = vpop.f32.mrf.mxu0
      %v832 = vpop.f32.mrf.mxu0
      %v833 = vadd.f32 0.0, %v832
      %v834 = vpop.f32.mrf.mxu0
      %835 = vmatprep.mubr.bf16.mxu0 0
      %836 = vmatmul.mubr.bf16.gmra.mxu0 %v755
      %v837 = vpop.f32.mrf.mxu0
      %v838 = vadd.f32 0.0, %v837
      %v839 = vpop.f32.mrf.mxu0
      %v840 = vpop.f32.mrf.mxu0
      %v841 = vadd.f32 0.0, %v840
      %v842 = vpop.f32.mrf.mxu0
      %843 = vmatprep.mubr.bf16.mxu0 0
      %844 = vmatmul.mubr.bf16.gmra.mxu0 %v758
      %v845 = vpop.f32.mrf.mxu0
      %v846 = vadd.f32 0.0, %v845
      %v847 = vpop.f32.mrf.mxu0
      %v848 = vpop.f32.mrf.mxu0
      %v849 = vadd.f32 0.0, %v848
      %v850 = vpop.f32.mrf.mxu0
      %851 = vmatprep.mubr.bf16.mxu0 0
      %852 = vmatmul.mubr.bf16.gmra.mxu0 %v761
      %v853 = vpop.f32.mrf.mxu0
      %v854 = vadd.f32 0.0, %v853
      %v855 = vpop.f32.mrf.mxu0
      %v856 = vpop.f32.mrf.mxu0
      %v857 = vadd.f32 0.0, %v856
      %v858 = vpop.f32.mrf.mxu0
      %859 = vdwg.mxu0
      %v864 = vunpack.c.l.b16 %v648
      %v865 = vunpack.c.l.b16 %v649
      %v866 = vunpack.c.l.b16 %v650
      %v867 = vunpack.c.l.b16 %v651
      %v868 = vpack.c.b16 %v865, %v864
      %v869 = vpack.c.b16 %v867, %v866
      %v873 = vsel %vm738, %v640, 0
      %v876 = vsel %vm738, %v641, 0
      %v879 = vsel %vm738, %v642, 0
      %v882 = vsel %vm738, %v643, 0
      %v885 = vsel %vm738, %v644, 0
      %v888 = vsel %vm738, %v645, 0
      %v891 = vsel %vm738, %v646, 0
      %v894 = vsel %vm738, %v647, 0
      %896 = vmatprep.subr.bf16.mxu0 0
      %897 = vmatpush1.bf16.msra.mxu0 0
      %898 = vmatprep.subr.bf16.mxu0 0
      %899 = vmatpush1.bf16.msra.mxu0 0
      %900 = vmatprep.subr.bf16.mxu0 0
      %901 = vmatpush1.bf16.msra.mxu0 0
      %902 = vmatprep.subr.bf16.mxu0 0
      %903 = vmatpush1.bf16.msra.mxu0 0
      %904 = vmatprep.subr.bf16.mxu0 0
      %905 = vmatpush1.bf16.msra.mxu0 0
      %906 = vmatprep.subr.bf16.mxu0 0
      %907 = vmatpush1.bf16.msra.mxu0 0
      %908 = vmatprep.subr.bf16.mxu0 0
      %909 = vmatpush1.bf16.msra.mxu0 %v869
      %910 = vmatprep.subr.bf16.mxu0 0
      %911 = vmatpush1.bf16.msra.mxu0 %v868
      %912 = vmatprep.subr.bf16.mxu0 0
      %913 = vmatpush2.bf16.msra.mxu0 0
      %914 = vmatprep.subr.bf16.mxu0 0
      %915 = vmatpush2.bf16.msra.mxu0 0
      %916 = vmatprep.subr.bf16.mxu0 0
      %917 = vmatpush2.bf16.msra.mxu0 0
      %918 = vmatprep.subr.bf16.mxu0 0
      %919 = vmatpush2.bf16.msra.mxu0 0
      %920 = vmatprep.subr.bf16.mxu0 0
      %921 = vmatpush2.bf16.msra.mxu0 0
      %922 = vmatprep.subr.bf16.mxu0 0
      %923 = vmatpush2.bf16.msra.mxu0 0
      %924 = vmatprep.subr.bf16.mxu0 0
      %925 = vmatpush2.bf16.msra.mxu0 0
      %926 = vmatprep.subr.bf16.mxu0 0
      %927 = vmatpush2.bf16.msra.mxu0 0
      %928 = vmatprep.mubr.bf16.mxu0 0
      %929 = vmatmul.mubr.bf16.gmra.mxu0 %v873
      %v930 = vpop.f32.mrf.mxu0
      %v931 = vadd.f32 %v798, %v930
      %v932 = vpop.f32.mrf.mxu0
      %v933 = vpop.f32.mrf.mxu0
      %v934 = vadd.f32 %v801, %v933
      %v935 = vpop.f32.mrf.mxu0
      %936 = vmatprep.mubr.bf16.mxu0 0
      %937 = vmatmul.mubr.bf16.gmra.mxu0 %v876
      %v938 = vpop.f32.mrf.mxu0
      %v939 = vadd.f32 %v806, %v938
      %v940 = vpop.f32.mrf.mxu0
      %v941 = vpop.f32.mrf.mxu0
      %v942 = vadd.f32 %v809, %v941
      %v943 = vpop.f32.mrf.mxu0
      %944 = vmatprep.mubr.bf16.mxu0 0
      %945 = vmatmul.mubr.bf16.gmra.mxu0 %v879
      %v946 = vpop.f32.mrf.mxu0
      %v947 = vadd.f32 %v814, %v946
      %v948 = vpop.f32.mrf.mxu0
      %v949 = vpop.f32.mrf.mxu0
      %v950 = vadd.f32 %v817, %v949
      %v951 = vpop.f32.mrf.mxu0
      %952 = vmatprep.mubr.bf16.mxu0 0
      %953 = vmatmul.mubr.bf16.gmra.mxu0 %v882
      %v954 = vpop.f32.mrf.mxu0
      %v955 = vadd.f32 %v822, %v954
      %v956 = vpop.f32.mrf.mxu0
      %v957 = vpop.f32.mrf.mxu0
      %v958 = vadd.f32 %v825, %v957
      %v959 = vpop.f32.mrf.mxu0
      %960 = vmatprep.mubr.bf16.mxu0 0
      %961 = vmatmul.mubr.bf16.gmra.mxu0 %v885
      %v962 = vpop.f32.mrf.mxu0
      %v963 = vadd.f32 %v830, %v962
      %v964 = vpop.f32.mrf.mxu0
      %v965 = vpop.f32.mrf.mxu0
      %v966 = vadd.f32 %v833, %v965
      %v967 = vpop.f32.mrf.mxu0
      %968 = vmatprep.mubr.bf16.mxu0 0
      %969 = vmatmul.mubr.bf16.gmra.mxu0 %v888
      %v970 = vpop.f32.mrf.mxu0
      %v971 = vadd.f32 %v838, %v970
      %v972 = vpop.f32.mrf.mxu0
      %v973 = vpop.f32.mrf.mxu0
      %v974 = vadd.f32 %v841, %v973
      %v975 = vpop.f32.mrf.mxu0
      %976 = vmatprep.mubr.bf16.mxu0 0
      %977 = vmatmul.mubr.bf16.gmra.mxu0 %v891
      %v978 = vpop.f32.mrf.mxu0
      %v979 = vadd.f32 %v846, %v978
      %v980 = vpop.f32.mrf.mxu0
      %v981 = vpop.f32.mrf.mxu0
      %v982 = vadd.f32 %v849, %v981
      %v983 = vpop.f32.mrf.mxu0
      %984 = vmatprep.mubr.bf16.mxu0 0
      %985 = vmatmul.mubr.bf16.gmra.mxu0 %v894
      %v986 = vpop.f32.mrf.mxu0
      %v987 = vadd.f32 %v854, %v986
      %v988 = vpop.f32.mrf.mxu0
      %v989 = vpop.f32.mrf.mxu0
      %v990 = vadd.f32 %v857, %v989
      %v991 = vpop.f32.mrf.mxu0
      %992 = vdwg.mxu0
      %vm993 = vmpackc.low %vm630, %vm630
      %vm994 = vmpackc.low %vm631, %vm631
      %v995 = vsel %vm993, 65537, 0
      %v996 = vsel %vm994, 65537, 0
      %v997 = vunpack.c.l.b16 %v995
      %v998 = vunpack.c.l.b16 %v996
      %v999 = vpack.c.b16 %v998, %v997
      %v1000 = vrot.slane %v999, 7
      %v1001 = vsel %vm621, %v1000, %v1000
      %vm1002 = vcmp.ne.s16.totalorder %v1000, 0
      %vm1003 = vcmp.ne.s16.totalorder %v1001, 0
      %v1004 = vsel %vm1002, %v623, 0
      %v1005 = vsel %vm1003, %v545, 0
      %v1006 = vsel %vm1003, %v553, 0
      %v1007 = vsel %vm1003, %v561, 0
      %v1008 = vsel %vm1003, %v569, 0
      %v1009 = vsel %vm1003, %v577, 0
      %v1010 = vsel %vm1003, %v585, 0
      %v1011 = vsel %vm1003, %v593, 0
      %v1012 = vsel %vm1002, %v601, 0
      %s1013 = scalar_lea.vmem %s3, 32
      %v1014 = vld [vmem:[%s1013] sm:$0xf]
      %v1015 = vld [vmem:[%s1013 + $0x4] sm:$0xf]
      %v1016 = vld [vmem:[%s1013 + $0x8] sm:$0xf]
      %v1017 = vld [vmem:[%s1013 + $0xc] sm:$0xf]
      %vm1027 = vcmask 1046528
      %v1028 = vrot.slane %v1004, 1
      %v1029 = vrot.slane %v1005, 1
      %v1030 = vsel %vm1027, %v1028, %v1029
      %v1031 = vrot.slane %v1006, 1
      %v1032 = vsel %vm1027, %v1029, %v1031
      %v1033 = vrot.slane %v1007, 1
      %v1034 = vsel %vm1027, %v1031, %v1033
      %v1035 = vrot.slane %v1008, 1
      %v1036 = vsel %vm1027, %v1033, %v1035
      %v1037 = vrot.slane %v1009, 1
      %v1038 = vsel %vm1027, %v1035, %v1037
      %v1039 = vrot.slane %v1010, 1
      %v1040 = vsel %vm1027, %v1037, %v1039
      %v1041 = vrot.slane %v1011, 1
      %v1042 = vsel %vm1027, %v1039, %v1041
      %v1043 = vrot.slane %v1012, 1
      %v1044 = vsel %vm1027, %v1041, %v1043
      %v1049 = vunpack.c.l.b16 %v1014
      %v1050 = vunpack.c.l.b16 %v1015
      %v1051 = vunpack.c.l.b16 %v1016
      %v1052 = vunpack.c.l.b16 %v1017
      %v1053 = vpack.c.b16 %v1050, %v1049
      %v1054 = vpack.c.b16 %v1052, %v1051
      %v1058 = vsel %vm738, %v1030, 0
      %v1061 = vsel %vm738, %v1032, 0
      %v1064 = vsel %vm738, %v1034, 0
      %v1067 = vsel %vm738, %v1036, 0
      %v1070 = vsel %vm738, %v1038, 0
      %v1073 = vsel %vm738, %v1040, 0
      %v1076 = vsel %vm738, %v1042, 0
      %v1079 = vsel %vm738, %v1044, 0
      %1081 = vmatprep.subr.bf16.mxu0 0
      %1082 = vmatpush1.bf16.msra.mxu0 0
      %1083 = vmatprep.subr.bf16.mxu0 0
      %1084 = vmatpush1.bf16.msra.mxu0 0
      %1085 = vmatprep.subr.bf16.mxu0 0
      %1086 = vmatpush1.bf16.msra.mxu0 0
      %1087 = vmatprep.subr.bf16.mxu0 0
      %1088 = vmatpush1.bf16.msra.mxu0 0
      %1089 = vmatprep.subr.bf16.mxu0 0
      %1090 = vmatpush1.bf16.msra.mxu0 0
      %1091 = vmatprep.subr.bf16.mxu0 0
      %1092 = vmatpush1.bf16.msra.mxu0 0
      %1093 = vmatprep.subr.bf16.mxu0 0
      %1094 = vmatpush1.bf16.msra.mxu0 %v1054
      %1095 = vmatprep.subr.bf16.mxu0 0
      %1096 = vmatpush1.bf16.msra.mxu0 %v1053
      %1097 = vmatprep.subr.bf16.mxu0 0
      %1098 = vmatpush2.bf16.msra.mxu0 0
      %1099 = vmatprep.subr.bf16.mxu0 0
      %1100 = vmatpush2.bf16.msra.mxu0 0
      %1101 = vmatprep.subr.bf16.mxu0 0
      %1102 = vmatpush2.bf16.msra.mxu0 0
      %1103 = vmatprep.subr.bf16.mxu0 0
      %1104 = vmatpush2.bf16.msra.mxu0 0
      %1105 = vmatprep.subr.bf16.mxu0 0
      %1106 = vmatpush2.bf16.msra.mxu0 0
      %1107 = vmatprep.subr.bf16.mxu0 0
      %1108 = vmatpush2.bf16.msra.mxu0 0
      %1109 = vmatprep.subr.bf16.mxu0 0
      %1110 = vmatpush2.bf16.msra.mxu0 0
      %1111 = vmatprep.subr.bf16.mxu0 0
      %1112 = vmatpush2.bf16.msra.mxu0 0
      %1113 = vmatprep.mubr.bf16.mxu0 0
      %1114 = vmatmul.mubr.bf16.gmra.mxu0 %v1058
      %v1115 = vpop.f32.mrf.mxu0
      %v1116 = vadd.f32 0.0, %v1115
      %v1117 = vpop.f32.mrf.mxu0
      %v1118 = vpop.f32.mrf.mxu0
      %v1119 = vadd.f32 0.0, %v1118
      %v1120 = vpop.f32.mrf.mxu0
      %1121 = vmatprep.mubr.bf16.mxu0 0
      %1122 = vmatmul.mubr.bf16.gmra.mxu0 %v1061
      %v1123 = vpop.f32.mrf.mxu0
      %v1124 = vadd.f32 0.0, %v1123
      %v1125 = vpop.f32.mrf.mxu0
      %v1126 = vpop.f32.mrf.mxu0
      %v1127 = vadd.f32 0.0, %v1126
      %v1128 = vpop.f32.mrf.mxu0
      %1129 = vmatprep.mubr.bf16.mxu0 0
      %1130 = vmatmul.mubr.bf16.gmra.mxu0 %v1064
      %v1131 = vpop.f32.mrf.mxu0
      %v1132 = vadd.f32 0.0, %v1131
      %v1133 = vpop.f32.mrf.mxu0
      %v1134 = vpop.f32.mrf.mxu0
      %v1135 = vadd.f32 0.0, %v1134
      %v1136 = vpop.f32.mrf.mxu0
      %1137 = vmatprep.mubr.bf16.mxu0 0
      %1138 = vmatmul.mubr.bf16.gmra.mxu0 %v1067
      %v1139 = vpop.f32.mrf.mxu0
      %v1140 = vadd.f32 0.0, %v1139
      %v1141 = vpop.f32.mrf.mxu0
      %v1142 = vpop.f32.mrf.mxu0
      %v1143 = vadd.f32 0.0, %v1142
      %v1144 = vpop.f32.mrf.mxu0
      %1145 = vmatprep.mubr.bf16.mxu0 0
      %1146 = vmatmul.mubr.bf16.gmra.mxu0 %v1070
      %v1147 = vpop.f32.mrf.mxu0
      %v1148 = vadd.f32 0.0, %v1147
      %v1149 = vpop.f32.mrf.mxu0
      %v1150 = vpop.f32.mrf.mxu0
      %v1151 = vadd.f32 0.0, %v1150
      %v1152 = vpop.f32.mrf.mxu0
      %1153 = vmatprep.mubr.bf16.mxu0 0
      %1154 = vmatmul.mubr.bf16.gmra.mxu0 %v1073
      %v1155 = vpop.f32.mrf.mxu0
      %v1156 = vadd.f32 0.0, %v1155
      %v1157 = vpop.f32.mrf.mxu0
      %v1158 = vpop.f32.mrf.mxu0
      %v1159 = vadd.f32 0.0, %v1158
      %v1160 = vpop.f32.mrf.mxu0
      %1161 = vmatprep.mubr.bf16.mxu0 0
      %1162 = vmatmul.mubr.bf16.gmra.mxu0 %v1076
      %v1163 = vpop.f32.mrf.mxu0
      %v1164 = vadd.f32 0.0, %v1163
      %v1165 = vpop.f32.mrf.mxu0
      %v1166 = vpop.f32.mrf.mxu0
      %v1167 = vadd.f32 0.0, %v1166
      %v1168 = vpop.f32.mrf.mxu0
      %1169 = vmatprep.mubr.bf16.mxu0 0
      %1170 = vmatmul.mubr.bf16.gmra.mxu0 %v1079
      %v1171 = vpop.f32.mrf.mxu0
      %v1172 = vadd.f32 0.0, %v1171
      %v1173 = vpop.f32.mrf.mxu0
      %v1174 = vpop.f32.mrf.mxu0
      %v1175 = vadd.f32 0.0, %v1174
      %v1176 = vpop.f32.mrf.mxu0
      %1177 = vdwg.mxu0
      %v1178 = vadd.f32 %v931, %v1116
      %v1179 = vadd.f32 %v934, %v1119
      %v1180 = vadd.f32 %v939, %v1124
      %v1181 = vadd.f32 %v942, %v1127
      %v1182 = vadd.f32 %v947, %v1132
      %v1183 = vadd.f32 %v950, %v1135
      %v1184 = vadd.f32 %v955, %v1140
      %v1185 = vadd.f32 %v958, %v1143
      %v1186 = vadd.f32 %v963, %v1148
      %v1187 = vadd.f32 %v966, %v1151
      %v1188 = vadd.f32 %v971, %v1156
      %v1189 = vadd.f32 %v974, %v1159
      %v1190 = vadd.f32 %v979, %v1164
      %v1191 = vadd.f32 %v982, %v1167
      %v1192 = vadd.f32 %v987, %v1172
      %v1193 = vadd.f32 %v990, %v1175
      %v1194 = vsel %vm639, %v601, 0
      %s1195 = scalar_lea.vmem %s3, 48
      %v1196 = vld [vmem:[%s1195] sm:$0xf]
      %v1197 = vld [vmem:[%s1195 + $0x4] sm:$0xf]
      %v1198 = vld [vmem:[%s1195 + $0x8] sm:$0xf]
      %v1199 = vld [vmem:[%s1195 + $0xc] sm:$0xf]
      %v1204 = vunpack.c.l.b16 %v1196
      %v1205 = vunpack.c.l.b16 %v1197
      %v1206 = vunpack.c.l.b16 %v1198
      %v1207 = vunpack.c.l.b16 %v1199
      %v1208 = vpack.c.b16 %v1205, %v1204
      %v1209 = vpack.c.b16 %v1207, %v1206
      %v1213 = vsel %vm738, %v1194, 0
      %1215 = vmatprep.subr.bf16.mxu0 0
      %1216 = vmatpush1.bf16.msra.mxu0 0
      %1217 = vmatprep.subr.bf16.mxu0 0
      %1218 = vmatpush1.bf16.msra.mxu0 0
      %1219 = vmatprep.subr.bf16.mxu0 0
      %1220 = vmatpush1.bf16.msra.mxu0 0
      %1221 = vmatprep.subr.bf16.mxu0 0
      %1222 = vmatpush1.bf16.msra.mxu0 0
      %1223 = vmatprep.subr.bf16.mxu0 0
      %1224 = vmatpush1.bf16.msra.mxu0 0
      %1225 = vmatprep.subr.bf16.mxu0 0
      %1226 = vmatpush1.bf16.msra.mxu0 0
      %1227 = vmatprep.subr.bf16.mxu0 0
      %1228 = vmatpush1.bf16.msra.mxu0 %v1209
      %1229 = vmatprep.subr.bf16.mxu0 0
      %1230 = vmatpush1.bf16.msra.mxu0 %v1208
      %1231 = vmatprep.subr.bf16.mxu0 0
      %1232 = vmatpush2.bf16.msra.mxu0 0
      %1233 = vmatprep.subr.bf16.mxu0 0
      %1234 = vmatpush2.bf16.msra.mxu0 0
      %1235 = vmatprep.subr.bf16.mxu0 0
      %1236 = vmatpush2.bf16.msra.mxu0 0
      %1237 = vmatprep.subr.bf16.mxu0 0
      %1238 = vmatpush2.bf16.msra.mxu0 0
      %1239 = vmatprep.subr.bf16.mxu0 0
      %1240 = vmatpush2.bf16.msra.mxu0 0
      %1241 = vmatprep.subr.bf16.mxu0 0
      %1242 = vmatpush2.bf16.msra.mxu0 0
      %1243 = vmatprep.subr.bf16.mxu0 0
      %1244 = vmatpush2.bf16.msra.mxu0 0
      %1245 = vmatprep.subr.bf16.mxu0 0
      %1246 = vmatpush2.bf16.msra.mxu0 0
      %1247 = vmatprep.mubr.bf16.mxu0 0
      %1248 = vmatmul.mubr.bf16.gmra.mxu0 %v876
      %v1249 = vpop.f32.mrf.mxu0
      %v1250 = vadd.f32 0.0, %v1249
      %v1251 = vpop.f32.mrf.mxu0
      %v1252 = vpop.f32.mrf.mxu0
      %v1253 = vadd.f32 0.0, %v1252
      %v1254 = vpop.f32.mrf.mxu0
      %1255 = vmatprep.mubr.bf16.mxu0 0
      %1256 = vmatmul.mubr.bf16.gmra.mxu0 %v879
      %v1257 = vpop.f32.mrf.mxu0
      %v1258 = vadd.f32 0.0, %v1257
      %v1259 = vpop.f32.mrf.mxu0
      %v1260 = vpop.f32.mrf.mxu0
      %v1261 = vadd.f32 0.0, %v1260
      %v1262 = vpop.f32.mrf.mxu0
      %1263 = vmatprep.mubr.bf16.mxu0 0
      %1264 = vmatmul.mubr.bf16.gmra.mxu0 %v882
      %v1265 = vpop.f32.mrf.mxu0
      %v1266 = vadd.f32 0.0, %v1265
      %v1267 = vpop.f32.mrf.mxu0
      %v1268 = vpop.f32.mrf.mxu0
      %v1269 = vadd.f32 0.0, %v1268
      %v1270 = vpop.f32.mrf.mxu0
      %1271 = vmatprep.mubr.bf16.mxu0 0
      %1272 = vmatmul.mubr.bf16.gmra.mxu0 %v885
      %v1273 = vpop.f32.mrf.mxu0
      %v1274 = vadd.f32 0.0, %v1273
      %v1275 = vpop.f32.mrf.mxu0
      %v1276 = vpop.f32.mrf.mxu0
      %v1277 = vadd.f32 0.0, %v1276
      %v1278 = vpop.f32.mrf.mxu0
      %1279 = vmatprep.mubr.bf16.mxu0 0
      %1280 = vmatmul.mubr.bf16.gmra.mxu0 %v888
      %v1281 = vpop.f32.mrf.mxu0
      %v1282 = vadd.f32 0.0, %v1281
      %v1283 = vpop.f32.mrf.mxu0
      %v1284 = vpop.f32.mrf.mxu0
      %v1285 = vadd.f32 0.0, %v1284
      %v1286 = vpop.f32.mrf.mxu0
      %1287 = vmatprep.mubr.bf16.mxu0 0
      %1288 = vmatmul.mubr.bf16.gmra.mxu0 %v891
      %v1289 = vpop.f32.mrf.mxu0
      %v1290 = vadd.f32 0.0, %v1289
      %v1291 = vpop.f32.mrf.mxu0
      %v1292 = vpop.f32.mrf.mxu0
      %v1293 = vadd.f32 0.0, %v1292
      %v1294 = vpop.f32.mrf.mxu0
      %1295 = vmatprep.mubr.bf16.mxu0 0
      %1296 = vmatmul.mubr.bf16.gmra.mxu0 %v894
      %v1297 = vpop.f32.mrf.mxu0
      %v1298 = vadd.f32 0.0, %v1297
      %v1299 = vpop.f32.mrf.mxu0
      %v1300 = vpop.f32.mrf.mxu0
      %v1301 = vadd.f32 0.0, %v1300
      %v1302 = vpop.f32.mrf.mxu0
      %1303 = vmatprep.mubr.bf16.mxu0 0
      %1304 = vmatmul.mubr.bf16.gmra.mxu0 %v1213
      %v1305 = vpop.f32.mrf.mxu0
      %v1306 = vadd.f32 0.0, %v1305
      %v1307 = vpop.f32.mrf.mxu0
      %v1308 = vpop.f32.mrf.mxu0
      %v1309 = vadd.f32 0.0, %v1308
      %v1310 = vpop.f32.mrf.mxu0
      %1311 = vdwg.mxu0
      %v1312 = vadd.f32 %v1178, %v1250
      %v1313 = vadd.f32 %v1179, %v1253
      %v1314 = vadd.f32 %v1180, %v1258
      %v1315 = vadd.f32 %v1181, %v1261
      %v1316 = vadd.f32 %v1182, %v1266
      %v1317 = vadd.f32 %v1183, %v1269
      %v1318 = vadd.f32 %v1184, %v1274
      %v1319 = vadd.f32 %v1185, %v1277
      %v1320 = vadd.f32 %v1186, %v1282
      %v1321 = vadd.f32 %v1187, %v1285
      %v1322 = vadd.f32 %v1188, %v1290
      %v1323 = vadd.f32 %v1189, %v1293
      %v1324 = vadd.f32 %v1190, %v1298
      %v1325 = vadd.f32 %v1191, %v1301
      %v1326 = vadd.f32 %v1192, %v1306
      %v1327 = vadd.f32 %v1193, %v1309
      %s1328 = scalar_lea.vmem %s3, 64
      %v1329 = vld [vmem:[%s1328] sm:$0xf]
      %v1330 = vld [vmem:[%s1328 + $0x4] sm:$0xf]
      %v1331 = vld [vmem:[%s1328 + $0x8] sm:$0xf]
      %v1332 = vld [vmem:[%s1328 + $0xc] sm:$0xf]
      %v1333 = vshrl.u32 %v601, 16
      %v1335 = vor.u32 %v1333, %v724
      %v1337 = vshll.u32 %v609, 16
      %v1339 = vrot.slane %v1337, 1
      %v1340 = vsel %vm657, %v1335, %v1339
      %v1345 = vunpack.c.l.b16 %v1329
      %v1346 = vunpack.c.l.b16 %v1330
      %v1347 = vunpack.c.l.b16 %v1331
      %v1348 = vunpack.c.l.b16 %v1332
      %v1349 = vpack.c.b16 %v1346, %v1345
      %v1350 = vpack.c.b16 %v1348, %v1347
      %v1354 = vsel %vm738, %v1340, 0
      %1356 = vmatprep.subr.bf16.mxu0 0
      %1357 = vmatpush1.bf16.msra.mxu0 0
      %1358 = vmatprep.subr.bf16.mxu0 0
      %1359 = vmatpush1.bf16.msra.mxu0 0
      %1360 = vmatprep.subr.bf16.mxu0 0
      %1361 = vmatpush1.bf16.msra.mxu0 0
      %1362 = vmatprep.subr.bf16.mxu0 0
      %1363 = vmatpush1.bf16.msra.mxu0 0
      %1364 = vmatprep.subr.bf16.mxu0 0
      %1365 = vmatpush1.bf16.msra.mxu0 0
      %1366 = vmatprep.subr.bf16.mxu0 0
      %1367 = vmatpush1.bf16.msra.mxu0 0
      %1368 = vmatprep.subr.bf16.mxu0 0
      %1369 = vmatpush1.bf16.msra.mxu0 %v1350
      %1370 = vmatprep.subr.bf16.mxu0 0
      %1371 = vmatpush1.bf16.msra.mxu0 %v1349
      %1372 = vmatprep.subr.bf16.mxu0 0
      %1373 = vmatpush2.bf16.msra.mxu0 0
      %1374 = vmatprep.subr.bf16.mxu0 0
      %1375 = vmatpush2.bf16.msra.mxu0 0
      %1376 = vmatprep.subr.bf16.mxu0 0
      %1377 = vmatpush2.bf16.msra.mxu0 0
      %1378 = vmatprep.subr.bf16.mxu0 0
      %1379 = vmatpush2.bf16.msra.mxu0 0
      %1380 = vmatprep.subr.bf16.mxu0 0
      %1381 = vmatpush2.bf16.msra.mxu0 0
      %1382 = vmatprep.subr.bf16.mxu0 0
      %1383 = vmatpush2.bf16.msra.mxu0 0
      %1384 = vmatprep.subr.bf16.mxu0 0
      %1385 = vmatpush2.bf16.msra.mxu0 0
      %1386 = vmatprep.subr.bf16.mxu0 0
      %1387 = vmatpush2.bf16.msra.mxu0 0
      %1388 = vmatprep.mubr.bf16.mxu0 0
      %1389 = vmatmul.mubr.bf16.gmra.mxu0 %v743
      %v1390 = vpop.f32.mrf.mxu0
      %v1391 = vadd.f32 0.0, %v1390
      %v1392 = vpop.f32.mrf.mxu0
      %v1393 = vpop.f32.mrf.mxu0
      %v1394 = vadd.f32 0.0, %v1393
      %v1395 = vpop.f32.mrf.mxu0
      %1396 = vmatprep.mubr.bf16.mxu0 0
      %1397 = vmatmul.mubr.bf16.gmra.mxu0 %v746
      %v1398 = vpop.f32.mrf.mxu0
      %v1399 = vadd.f32 0.0, %v1398
      %v1400 = vpop.f32.mrf.mxu0
      %v1401 = vpop.f32.mrf.mxu0
      %v1402 = vadd.f32 0.0, %v1401
      %v1403 = vpop.f32.mrf.mxu0
      %1404 = vmatprep.mubr.bf16.mxu0 0
      %1405 = vmatmul.mubr.bf16.gmra.mxu0 %v749
      %v1406 = vpop.f32.mrf.mxu0
      %v1407 = vadd.f32 0.0, %v1406
      %v1408 = vpop.f32.mrf.mxu0
      %v1409 = vpop.f32.mrf.mxu0
      %v1410 = vadd.f32 0.0, %v1409
      %v1411 = vpop.f32.mrf.mxu0
      %1412 = vmatprep.mubr.bf16.mxu0 0
      %1413 = vmatmul.mubr.bf16.gmra.mxu0 %v752
      %v1414 = vpop.f32.mrf.mxu0
      %v1415 = vadd.f32 0.0, %v1414
      %v1416 = vpop.f32.mrf.mxu0
      %v1417 = vpop.f32.mrf.mxu0
      %v1418 = vadd.f32 0.0, %v1417
      %v1419 = vpop.f32.mrf.mxu0
      %1420 = vmatprep.mubr.bf16.mxu0 0
      %1421 = vmatmul.mubr.bf16.gmra.mxu0 %v755
      %v1422 = vpop.f32.mrf.mxu0
      %v1423 = vadd.f32 0.0, %v1422
      %v1424 = vpop.f32.mrf.mxu0
      %v1425 = vpop.f32.mrf.mxu0
      %v1426 = vadd.f32 0.0, %v1425
      %v1427 = vpop.f32.mrf.mxu0
      %1428 = vmatprep.mubr.bf16.mxu0 0
      %1429 = vmatmul.mubr.bf16.gmra.mxu0 %v758
      %v1430 = vpop.f32.mrf.mxu0
      %v1431 = vadd.f32 0.0, %v1430
      %v1432 = vpop.f32.mrf.mxu0
      %v1433 = vpop.f32.mrf.mxu0
      %v1434 = vadd.f32 0.0, %v1433
      %v1435 = vpop.f32.mrf.mxu0
      %1436 = vmatprep.mubr.bf16.mxu0 0
      %1437 = vmatmul.mubr.bf16.gmra.mxu0 %v761
      %v1438 = vpop.f32.mrf.mxu0
      %v1439 = vadd.f32 0.0, %v1438
      %v1440 = vpop.f32.mrf.mxu0
      %v1441 = vpop.f32.mrf.mxu0
      %v1442 = vadd.f32 0.0, %v1441
      %v1443 = vpop.f32.mrf.mxu0
      %1444 = vmatprep.mubr.bf16.mxu0 0
      %1445 = vmatmul.mubr.bf16.gmra.mxu0 %v1354
      %v1446 = vpop.f32.mrf.mxu0
      %v1447 = vadd.f32 0.0, %v1446
      %v1448 = vpop.f32.mrf.mxu0
      %v1449 = vpop.f32.mrf.mxu0
      %v1450 = vadd.f32 0.0, %v1449
      %v1451 = vpop.f32.mrf.mxu0
      %1452 = vdwg.mxu0
      %v1453 = vadd.f32 %v1312, %v1391
      %v1454 = vadd.f32 %v1313, %v1394
      %v1455 = vadd.f32 %v1314, %v1399
      %v1456 = vadd.f32 %v1315, %v1402
      %v1457 = vadd.f32 %v1316, %v1407
      %v1458 = vadd.f32 %v1317, %v1410
      %v1459 = vadd.f32 %v1318, %v1415
      %v1460 = vadd.f32 %v1319, %v1418
      %v1461 = vadd.f32 %v1320, %v1423
      %v1462 = vadd.f32 %v1321, %v1426
      %v1463 = vadd.f32 %v1322, %v1431
      %v1464 = vadd.f32 %v1323, %v1434
      %v1465 = vadd.f32 %v1324, %v1439
      %v1466 = vadd.f32 %v1325, %v1442
      %v1467 = vadd.f32 %v1326, %v1447
      %v1468 = vadd.f32 %v1327, %v1450
      %v1469 = vsel %vm1002, %v545, 0
      %v1470 = vsel %vm1003, %v601, 0
      %v1471 = vsel %vm1002, %v609, 0
      %s1472 = scalar_lea.vmem %s3, 80
      %v1473 = vld [vmem:[%s1472] sm:$0xf]
      %v1474 = vld [vmem:[%s1472 + $0x4] sm:$0xf]
      %v1475 = vld [vmem:[%s1472 + $0x8] sm:$0xf]
      %v1476 = vld [vmem:[%s1472 + $0xc] sm:$0xf]
      %v1480 = vrot.slane %v1469, 1
      %v1481 = vsel %vm1027, %v1480, %v1031
      %v1482 = vrot.slane %v1470, 1
      %v1483 = vsel %vm1027, %v1041, %v1482
      %v1484 = vrot.slane %v1471, 1
      %v1485 = vsel %vm1027, %v1482, %v1484
      %v1490 = vunpack.c.l.b16 %v1473
      %v1491 = vunpack.c.l.b16 %v1474
      %v1492 = vunpack.c.l.b16 %v1475
      %v1493 = vunpack.c.l.b16 %v1476
      %v1494 = vpack.c.b16 %v1491, %v1490
      %v1495 = vpack.c.b16 %v1493, %v1492
      %v1499 = vsel %vm738, %v1481, 0
      %v1502 = vsel %vm738, %v1483, 0
      %v1505 = vsel %vm738, %v1485, 0
      %1507 = vmatprep.subr.bf16.mxu0 0
      %1508 = vmatpush1.bf16.msra.mxu0 0
      %1509 = vmatprep.subr.bf16.mxu0 0
      %1510 = vmatpush1.bf16.msra.mxu0 0
      %1511 = vmatprep.subr.bf16.mxu0 0
      %1512 = vmatpush1.bf16.msra.mxu0 0
      %1513 = vmatprep.subr.bf16.mxu0 0
      %1514 = vmatpush1.bf16.msra.mxu0 0
      %1515 = vmatprep.subr.bf16.mxu0 0
      %1516 = vmatpush1.bf16.msra.mxu0 0
      %1517 = vmatprep.subr.bf16.mxu0 0
      %1518 = vmatpush1.bf16.msra.mxu0 0
      %1519 = vmatprep.subr.bf16.mxu0 0
      %1520 = vmatpush1.bf16.msra.mxu0 %v1495
      %1521 = vmatprep.subr.bf16.mxu0 0
      %1522 = vmatpush1.bf16.msra.mxu0 %v1494
      %1523 = vmatprep.subr.bf16.mxu0 0
      %1524 = vmatpush2.bf16.msra.mxu0 0
      %1525 = vmatprep.subr.bf16.mxu0 0
      %1526 = vmatpush2.bf16.msra.mxu0 0
      %1527 = vmatprep.subr.bf16.mxu0 0
      %1528 = vmatpush2.bf16.msra.mxu0 0
      %1529 = vmatprep.subr.bf16.mxu0 0
      %1530 = vmatpush2.bf16.msra.mxu0 0
      %1531 = vmatprep.subr.bf16.mxu0 0
      %1532 = vmatpush2.bf16.msra.mxu0 0
      %1533 = vmatprep.subr.bf16.mxu0 0
      %1534 = vmatpush2.bf16.msra.mxu0 0
      %1535 = vmatprep.subr.bf16.mxu0 0
      %1536 = vmatpush2.bf16.msra.mxu0 0
      %1537 = vmatprep.subr.bf16.mxu0 0
      %1538 = vmatpush2.bf16.msra.mxu0 0
      %1539 = vmatprep.mubr.bf16.mxu0 0
      %1540 = vmatmul.mubr.bf16.gmra.mxu0 %v1499
      %v1541 = vpop.f32.mrf.mxu0
      %v1542 = vadd.f32 0.0, %v1541
      %v1543 = vpop.f32.mrf.mxu0
      %v1544 = vpop.f32.mrf.mxu0
      %v1545 = vadd.f32 0.0, %v1544
      %v1546 = vpop.f32.mrf.mxu0
      %1547 = vmatprep.mubr.bf16.mxu0 0
      %1548 = vmatmul.mubr.bf16.gmra.mxu0 %v1064
      %v1549 = vpop.f32.mrf.mxu0
      %v1550 = vadd.f32 0.0, %v1549
      %v1551 = vpop.f32.mrf.mxu0
      %v1552 = vpop.f32.mrf.mxu0
      %v1553 = vadd.f32 0.0, %v1552
      %v1554 = vpop.f32.mrf.mxu0
      %1555 = vmatprep.mubr.bf16.mxu0 0
      %1556 = vmatmul.mubr.bf16.gmra.mxu0 %v1067
      %v1557 = vpop.f32.mrf.mxu0
      %v1558 = vadd.f32 0.0, %v1557
      %v1559 = vpop.f32.mrf.mxu0
      %v1560 = vpop.f32.mrf.mxu0
      %v1561 = vadd.f32 0.0, %v1560
      %v1562 = vpop.f32.mrf.mxu0
      %1563 = vmatprep.mubr.bf16.mxu0 0
      %1564 = vmatmul.mubr.bf16.gmra.mxu0 %v1070
      %v1565 = vpop.f32.mrf.mxu0
      %v1566 = vadd.f32 0.0, %v1565
      %v1567 = vpop.f32.mrf.mxu0
      %v1568 = vpop.f32.mrf.mxu0
      %v1569 = vadd.f32 0.0, %v1568
      %v1570 = vpop.f32.mrf.mxu0
      %1571 = vmatprep.mubr.bf16.mxu0 0
      %1572 = vmatmul.mubr.bf16.gmra.mxu0 %v1073
      %v1573 = vpop.f32.mrf.mxu0
      %v1574 = vadd.f32 0.0, %v1573
      %v1575 = vpop.f32.mrf.mxu0
      %v1576 = vpop.f32.mrf.mxu0
      %v1577 = vadd.f32 0.0, %v1576
      %v1578 = vpop.f32.mrf.mxu0
      %1579 = vmatprep.mubr.bf16.mxu0 0
      %1580 = vmatmul.mubr.bf16.gmra.mxu0 %v1076
      %v1581 = vpop.f32.mrf.mxu0
      %v1582 = vadd.f32 0.0, %v1581
      %v1583 = vpop.f32.mrf.mxu0
      %v1584 = vpop.f32.mrf.mxu0
      %v1585 = vadd.f32 0.0, %v1584
      %v1586 = vpop.f32.mrf.mxu0
      %1587 = vmatprep.mubr.bf16.mxu0 0
      %1588 = vmatmul.mubr.bf16.gmra.mxu0 %v1502
      %v1589 = vpop.f32.mrf.mxu0
      %v1590 = vadd.f32 0.0, %v1589
      %v1591 = vpop.f32.mrf.mxu0
      %v1592 = vpop.f32.mrf.mxu0
      %v1593 = vadd.f32 0.0, %v1592
      %v1594 = vpop.f32.mrf.mxu0
      %1595 = vmatprep.mubr.bf16.mxu0 0
      %1596 = vmatmul.mubr.bf16.gmra.mxu0 %v1505
      %v1597 = vpop.f32.mrf.mxu0
      %v1598 = vadd.f32 0.0, %v1597
      %v1599 = vpop.f32.mrf.mxu0
      %v1600 = vpop.f32.mrf.mxu0
      %v1601 = vadd.f32 0.0, %v1600
      %v1602 = vpop.f32.mrf.mxu0
      %1603 = vdwg.mxu0
      %v1604 = vadd.f32 %v1453, %v1542
      %v1605 = vadd.f32 %v1454, %v1545
      %v1606 = vadd.f32 %v1455, %v1550
      %v1607 = vadd.f32 %v1456, %v1553
      %v1608 = vadd.f32 %v1457, %v1558
      %v1609 = vadd.f32 %v1458, %v1561
      %v1610 = vadd.f32 %v1459, %v1566
      %v1611 = vadd.f32 %v1460, %v1569
      %v1612 = vadd.f32 %v1461, %v1574
      %v1613 = vadd.f32 %v1462, %v1577
      %v1614 = vadd.f32 %v1463, %v1582
      %v1615 = vadd.f32 %v1464, %v1585
      %v1616 = vadd.f32 %v1465, %v1590
      %v1617 = vadd.f32 %v1466, %v1593
      %v1618 = vadd.f32 %v1467, %v1598
      %v1619 = vadd.f32 %v1468, %v1601
      %v1620 = vsel %vm639, %v609, 0
      %s1621 = scalar_lea.vmem %s3, 96
      %v1622 = vld [vmem:[%s1621] sm:$0xf]
      %v1623 = vld [vmem:[%s1621 + $0x4] sm:$0xf]
      %v1624 = vld [vmem:[%s1621 + $0x8] sm:$0xf]
      %v1625 = vld [vmem:[%s1621 + $0xc] sm:$0xf]
      %v1630 = vunpack.c.l.b16 %v1622
      %v1631 = vunpack.c.l.b16 %v1623
      %v1632 = vunpack.c.l.b16 %v1624
      %v1633 = vunpack.c.l.b16 %v1625
      %v1634 = vpack.c.b16 %v1631, %v1630
      %v1635 = vpack.c.b16 %v1633, %v1632
      %v1639 = vsel %vm738, %v1620, 0
      %1641 = vmatprep.subr.bf16.mxu0 0
      %1642 = vmatpush1.bf16.msra.mxu0 0
      %1643 = vmatprep.subr.bf16.mxu0 0
      %1644 = vmatpush1.bf16.msra.mxu0 0
      %1645 = vmatprep.subr.bf16.mxu0 0
      %1646 = vmatpush1.bf16.msra.mxu0 0
      %1647 = vmatprep.subr.bf16.mxu0 0
      %1648 = vmatpush1.bf16.msra.mxu0 0
      %1649 = vmatprep.subr.bf16.mxu0 0
      %1650 = vmatpush1.bf16.msra.mxu0 0
      %1651 = vmatprep.subr.bf16.mxu0 0
      %1652 = vmatpush1.bf16.msra.mxu0 0
      %1653 = vmatprep.subr.bf16.mxu0 0
      %1654 = vmatpush1.bf16.msra.mxu0 %v1635
      %1655 = vmatprep.subr.bf16.mxu0 0
      %1656 = vmatpush1.bf16.msra.mxu0 %v1634
      %1657 = vmatprep.subr.bf16.mxu0 0
      %1658 = vmatpush2.bf16.msra.mxu0 0
      %1659 = vmatprep.subr.bf16.mxu0 0
      %1660 = vmatpush2.bf16.msra.mxu0 0
      %1661 = vmatprep.subr.bf16.mxu0 0
      %1662 = vmatpush2.bf16.msra.mxu0 0
      %1663 = vmatprep.subr.bf16.mxu0 0
      %1664 = vmatpush2.bf16.msra.mxu0 0
      %1665 = vmatprep.subr.bf16.mxu0 0
      %1666 = vmatpush2.bf16.msra.mxu0 0
      %1667 = vmatprep.subr.bf16.mxu0 0
      %1668 = vmatpush2.bf16.msra.mxu0 0
      %1669 = vmatprep.subr.bf16.mxu0 0
      %1670 = vmatpush2.bf16.msra.mxu0 0
      %1671 = vmatprep.subr.bf16.mxu0 0
      %1672 = vmatpush2.bf16.msra.mxu0 0
      %1673 = vmatprep.mubr.bf16.mxu0 0
      %1674 = vmatmul.mubr.bf16.gmra.mxu0 %v879
      %v1675 = vpop.f32.mrf.mxu0
      %v1676 = vadd.f32 0.0, %v1675
      %v1677 = vpop.f32.mrf.mxu0
      %v1678 = vpop.f32.mrf.mxu0
      %v1679 = vadd.f32 0.0, %v1678
      %v1680 = vpop.f32.mrf.mxu0
      %1681 = vmatprep.mubr.bf16.mxu0 0
      %1682 = vmatmul.mubr.bf16.gmra.mxu0 %v882
      %v1683 = vpop.f32.mrf.mxu0
      %v1684 = vadd.f32 0.0, %v1683
      %v1685 = vpop.f32.mrf.mxu0
      %v1686 = vpop.f32.mrf.mxu0
      %v1687 = vadd.f32 0.0, %v1686
      %v1688 = vpop.f32.mrf.mxu0
      %1689 = vmatprep.mubr.bf16.mxu0 0
      %1690 = vmatmul.mubr.bf16.gmra.mxu0 %v885
      %v1691 = vpop.f32.mrf.mxu0
      %v1692 = vadd.f32 0.0, %v1691
      %v1693 = vpop.f32.mrf.mxu0
      %v1694 = vpop.f32.mrf.mxu0
      %v1695 = vadd.f32 0.0, %v1694
      %v1696 = vpop.f32.mrf.mxu0
      %1697 = vmatprep.mubr.bf16.mxu0 0
      %1698 = vmatmul.mubr.bf16.gmra.mxu0 %v888
      %v1699 = vpop.f32.mrf.mxu0
      %v1700 = vadd.f32 0.0, %v1699
      %v1701 = vpop.f32.mrf.mxu0
      %v1702 = vpop.f32.mrf.mxu0
      %v1703 = vadd.f32 0.0, %v1702
      %v1704 = vpop.f32.mrf.mxu0
      %1705 = vmatprep.mubr.bf16.mxu0 0
      %1706 = vmatmul.mubr.bf16.gmra.mxu0 %v891
      %v1707 = vpop.f32.mrf.mxu0
      %v1708 = vadd.f32 0.0, %v1707
      %v1709 = vpop.f32.mrf.mxu0
      %v1710 = vpop.f32.mrf.mxu0
      %v1711 = vadd.f32 0.0, %v1710
      %v1712 = vpop.f32.mrf.mxu0
      %1713 = vmatprep.mubr.bf16.mxu0 0
      %1714 = vmatmul.mubr.bf16.gmra.mxu0 %v894
      %v1715 = vpop.f32.mrf.mxu0
      %v1716 = vadd.f32 0.0, %v1715
      %v1717 = vpop.f32.mrf.mxu0
      %v1718 = vpop.f32.mrf.mxu0
      %v1719 = vadd.f32 0.0, %v1718
      %v1720 = vpop.f32.mrf.mxu0
      %1721 = vmatprep.mubr.bf16.mxu0 0
      %1722 = vmatmul.mubr.bf16.gmra.mxu0 %v1213
      %v1723 = vpop.f32.mrf.mxu0
      %v1724 = vadd.f32 0.0, %v1723
      %v1725 = vpop.f32.mrf.mxu0
      %v1726 = vpop.f32.mrf.mxu0
      %v1727 = vadd.f32 0.0, %v1726
      %v1728 = vpop.f32.mrf.mxu0
      %1729 = vmatprep.mubr.bf16.mxu0 0
      %1730 = vmatmul.mubr.bf16.gmra.mxu0 %v1639
      %v1731 = vpop.f32.mrf.mxu0
      %v1732 = vadd.f32 0.0, %v1731
      %v1733 = vpop.f32.mrf.mxu0
      %v1734 = vpop.f32.mrf.mxu0
      %v1735 = vadd.f32 0.0, %v1734
      %v1736 = vpop.f32.mrf.mxu0
      %1737 = vdwg.mxu0
      %v1738 = vadd.f32 %v1604, %v1676
      %v1739 = vadd.f32 %v1605, %v1679
      %v1740 = vadd.f32 %v1606, %v1684
      %v1741 = vadd.f32 %v1607, %v1687
      %v1742 = vadd.f32 %v1608, %v1692
      %v1743 = vadd.f32 %v1609, %v1695
      %v1744 = vadd.f32 %v1610, %v1700
      %v1745 = vadd.f32 %v1611, %v1703
      %v1746 = vadd.f32 %v1612, %v1708
      %v1747 = vadd.f32 %v1613, %v1711
      %v1748 = vadd.f32 %v1614, %v1716
      %v1749 = vadd.f32 %v1615, %v1719
      %v1750 = vadd.f32 %v1616, %v1724
      %v1751 = vadd.f32 %v1617, %v1727
      %v1752 = vadd.f32 %v1618, %v1732
      %v1753 = vadd.f32 %v1619, %v1735
      %s1754 = scalar_lea.vmem %s3, 112
      %v1755 = vld [vmem:[%s1754] sm:$0xf]
      %v1756 = vld [vmem:[%s1754 + $0x4] sm:$0xf]
      %v1757 = vld [vmem:[%s1754 + $0x8] sm:$0xf]
      %v1758 = vld [vmem:[%s1754 + $0xc] sm:$0xf]
      %v1759 = vshrl.u32 %v609, 16
      %v1761 = vor.u32 %v1759, %v1339
      %v1763 = vshll.u32 %v624, 16
      %v1765 = vrot.slane %v1763, 1
      %v1766 = vsel %vm657, %v1761, %v1765
      %v1771 = vunpack.c.l.b16 %v1755
      %v1772 = vunpack.c.l.b16 %v1756
      %v1773 = vunpack.c.l.b16 %v1757
      %v1774 = vunpack.c.l.b16 %v1758
      %v1775 = vpack.c.b16 %v1772, %v1771
      %v1776 = vpack.c.b16 %v1774, %v1773
      %v1780 = vsel %vm738, %v1766, 0
      %1782 = vmatprep.subr.bf16.mxu0 0
      %1783 = vmatpush1.bf16.msra.mxu0 0
      %1784 = vmatprep.subr.bf16.mxu0 0
      %1785 = vmatpush1.bf16.msra.mxu0 0
      %1786 = vmatprep.subr.bf16.mxu0 0
      %1787 = vmatpush1.bf16.msra.mxu0 0
      %1788 = vmatprep.subr.bf16.mxu0 0
      %1789 = vmatpush1.bf16.msra.mxu0 0
      %1790 = vmatprep.subr.bf16.mxu0 0
      %1791 = vmatpush1.bf16.msra.mxu0 0
      %1792 = vmatprep.subr.bf16.mxu0 0
      %1793 = vmatpush1.bf16.msra.mxu0 0
      %1794 = vmatprep.subr.bf16.mxu0 0
      %1795 = vmatpush1.bf16.msra.mxu0 %v1776
      %1796 = vmatprep.subr.bf16.mxu0 0
      %1797 = vmatpush1.bf16.msra.mxu0 %v1775
      %1798 = vmatprep.subr.bf16.mxu0 0
      %1799 = vmatpush2.bf16.msra.mxu0 0
      %1800 = vmatprep.subr.bf16.mxu0 0
      %1801 = vmatpush2.bf16.msra.mxu0 0
      %1802 = vmatprep.subr.bf16.mxu0 0
      %1803 = vmatpush2.bf16.msra.mxu0 0
      %1804 = vmatprep.subr.bf16.mxu0 0
      %1805 = vmatpush2.bf16.msra.mxu0 0
      %1806 = vmatprep.subr.bf16.mxu0 0
      %1807 = vmatpush2.bf16.msra.mxu0 0
      %1808 = vmatprep.subr.bf16.mxu0 0
      %1809 = vmatpush2.bf16.msra.mxu0 0
      %1810 = vmatprep.subr.bf16.mxu0 0
      %1811 = vmatpush2.bf16.msra.mxu0 0
      %1812 = vmatprep.subr.bf16.mxu0 0
      %1813 = vmatpush2.bf16.msra.mxu0 0
      %1814 = vmatprep.mubr.bf16.mxu0 0
      %1815 = vmatmul.mubr.bf16.gmra.mxu0 %v746
      %v1816 = vpop.f32.mrf.mxu0
      %v1817 = vadd.f32 0.0, %v1816
      %v1818 = vpop.f32.mrf.mxu0
      %v1819 = vpop.f32.mrf.mxu0
      %v1820 = vadd.f32 0.0, %v1819
      %v1821 = vpop.f32.mrf.mxu0
      %1822 = vmatprep.mubr.bf16.mxu0 0
      %1823 = vmatmul.mubr.bf16.gmra.mxu0 %v749
      %v1824 = vpop.f32.mrf.mxu0
      %v1825 = vadd.f32 0.0, %v1824
      %v1826 = vpop.f32.mrf.mxu0
      %v1827 = vpop.f32.mrf.mxu0
      %v1828 = vadd.f32 0.0, %v1827
      %v1829 = vpop.f32.mrf.mxu0
      %1830 = vmatprep.mubr.bf16.mxu0 0
      %1831 = vmatmul.mubr.bf16.gmra.mxu0 %v752
      %v1832 = vpop.f32.mrf.mxu0
      %v1833 = vadd.f32 0.0, %v1832
      %v1834 = vpop.f32.mrf.mxu0
      %v1835 = vpop.f32.mrf.mxu0
      %v1836 = vadd.f32 0.0, %v1835
      %v1837 = vpop.f32.mrf.mxu0
      %1838 = vmatprep.mubr.bf16.mxu0 0
      %1839 = vmatmul.mubr.bf16.gmra.mxu0 %v755
      %v1840 = vpop.f32.mrf.mxu0
      %v1841 = vadd.f32 0.0, %v1840
      %v1842 = vpop.f32.mrf.mxu0
      %v1843 = vpop.f32.mrf.mxu0
      %v1844 = vadd.f32 0.0, %v1843
      %v1845 = vpop.f32.mrf.mxu0
      %1846 = vmatprep.mubr.bf16.mxu0 0
      %1847 = vmatmul.mubr.bf16.gmra.mxu0 %v758
      %v1848 = vpop.f32.mrf.mxu0
      %v1849 = vadd.f32 0.0, %v1848
      %v1850 = vpop.f32.mrf.mxu0
      %v1851 = vpop.f32.mrf.mxu0
      %v1852 = vadd.f32 0.0, %v1851
      %v1853 = vpop.f32.mrf.mxu0
      %1854 = vmatprep.mubr.bf16.mxu0 0
      %1855 = vmatmul.mubr.bf16.gmra.mxu0 %v761
      %v1856 = vpop.f32.mrf.mxu0
      %v1857 = vadd.f32 0.0, %v1856
      %v1858 = vpop.f32.mrf.mxu0
      %v1859 = vpop.f32.mrf.mxu0
      %v1860 = vadd.f32 0.0, %v1859
      %v1861 = vpop.f32.mrf.mxu0
      %1862 = vmatprep.mubr.bf16.mxu0 0
      %1863 = vmatmul.mubr.bf16.gmra.mxu0 %v1354
      %v1864 = vpop.f32.mrf.mxu0
      %v1865 = vadd.f32 0.0, %v1864
      %v1866 = vpop.f32.mrf.mxu0
      %v1867 = vpop.f32.mrf.mxu0
      %v1868 = vadd.f32 0.0, %v1867
      %v1869 = vpop.f32.mrf.mxu0
      %1870 = vmatprep.mubr.bf16.mxu0 0
      %1871 = vmatmul.mubr.bf16.gmra.mxu0 %v1780
      %v1872 = vpop.f32.mrf.mxu0
      %v1873 = vadd.f32 0.0, %v1872
      %v1874 = vpop.f32.mrf.mxu0
      %v1875 = vpop.f32.mrf.mxu0
      %v1876 = vadd.f32 0.0, %v1875
      %v1877 = vpop.f32.mrf.mxu0
      %1878 = vdwg.mxu0
      %v1879 = vadd.f32 %v1738, %v1817
      %v1880 = vadd.f32 %v1739, %v1820
      %v1881 = vadd.f32 %v1740, %v1825
      %v1882 = vadd.f32 %v1741, %v1828
      %v1883 = vadd.f32 %v1742, %v1833
      %v1884 = vadd.f32 %v1743, %v1836
      %v1885 = vadd.f32 %v1744, %v1841
      %v1886 = vadd.f32 %v1745, %v1844
      %v1887 = vadd.f32 %v1746, %v1849
      %v1888 = vadd.f32 %v1747, %v1852
      %v1889 = vadd.f32 %v1748, %v1857
      %v1890 = vadd.f32 %v1749, %v1860
      %v1891 = vadd.f32 %v1750, %v1865
      %v1892 = vadd.f32 %v1751, %v1868
      %v1893 = vadd.f32 %v1752, %v1873
      %v1894 = vadd.f32 %v1753, %v1876
      %v1895 = vsel %vm1002, %v553, 0
      %v1896 = vsel %vm1003, %v609, 0
      %v1897 = vsel %vm1002, %v624, 0
      %s1898 = scalar_lea.vmem %s3, 128
      %v1899 = vld [vmem:[%s1898] sm:$0xf]
      %v1900 = vld [vmem:[%s1898 + $0x4] sm:$0xf]
      %v1901 = vld [vmem:[%s1898 + $0x8] sm:$0xf]
      %v1902 = vld [vmem:[%s1898 + $0xc] sm:$0xf]
      %v1906 = vrot.slane %v1895, 1
      %v1907 = vsel %vm1027, %v1906, %v1033
      %v1908 = vrot.slane %v1896, 1
      %v1909 = vsel %vm1027, %v1482, %v1908
      %v1910 = vrot.slane %v1897, 1
      %v1911 = vsel %vm1027, %v1908, %v1910
      %v1916 = vunpack.c.l.b16 %v1899
      %v1917 = vunpack.c.l.b16 %v1900
      %v1918 = vunpack.c.l.b16 %v1901
      %v1919 = vunpack.c.l.b16 %v1902
      %v1920 = vpack.c.b16 %v1917, %v1916
      %v1921 = vpack.c.b16 %v1919, %v1918
      %v1925 = vsel %vm738, %v1907, 0
      %v1928 = vsel %vm738, %v1909, 0
      %v1931 = vsel %vm738, %v1911, 0
      %1933 = vmatprep.subr.bf16.mxu0 0
      %1934 = vmatpush1.bf16.msra.mxu0 0
      %1935 = vmatprep.subr.bf16.mxu0 0
      %1936 = vmatpush1.bf16.msra.mxu0 0
      %1937 = vmatprep.subr.bf16.mxu0 0
      %1938 = vmatpush1.bf16.msra.mxu0 0
      %1939 = vmatprep.subr.bf16.mxu0 0
      %1940 = vmatpush1.bf16.msra.mxu0 0
      %1941 = vmatprep.subr.bf16.mxu0 0
      %1942 = vmatpush1.bf16.msra.mxu0 0
      %1943 = vmatprep.subr.bf16.mxu0 0
      %1944 = vmatpush1.bf16.msra.mxu0 0
      %1945 = vmatprep.subr.bf16.mxu0 0
      %1946 = vmatpush1.bf16.msra.mxu0 %v1921
      %1947 = vmatprep.subr.bf16.mxu0 0
      %1948 = vmatpush1.bf16.msra.mxu0 %v1920
      %1949 = vmatprep.subr.bf16.mxu0 0
      %1950 = vmatpush2.bf16.msra.mxu0 0
      %1951 = vmatprep.subr.bf16.mxu0 0
      %1952 = vmatpush2.bf16.msra.mxu0 0
      %1953 = vmatprep.subr.bf16.mxu0 0
      %1954 = vmatpush2.bf16.msra.mxu0 0
      %1955 = vmatprep.subr.bf16.mxu0 0
      %1956 = vmatpush2.bf16.msra.mxu0 0
      %1957 = vmatprep.subr.bf16.mxu0 0
      %1958 = vmatpush2.bf16.msra.mxu0 0
      %1959 = vmatprep.subr.bf16.mxu0 0
      %1960 = vmatpush2.bf16.msra.mxu0 0
      %1961 = vmatprep.subr.bf16.mxu0 0
      %1962 = vmatpush2.bf16.msra.mxu0 0
      %1963 = vmatprep.subr.bf16.mxu0 0
      %1964 = vmatpush2.bf16.msra.mxu0 0
      %1965 = vmatprep.mubr.bf16.mxu0 0
      %1966 = vmatmul.mubr.bf16.gmra.mxu0 %v1925
      %v1967 = vpop.f32.mrf.mxu0
      %v1968 = vadd.f32 0.0, %v1967
      %v1969 = vpop.f32.mrf.mxu0
      %v1970 = vpop.f32.mrf.mxu0
      %v1971 = vadd.f32 0.0, %v1970
      %v1972 = vpop.f32.mrf.mxu0
      %1973 = vmatprep.mubr.bf16.mxu0 0
      %1974 = vmatmul.mubr.bf16.gmra.mxu0 %v1067
      %v1975 = vpop.f32.mrf.mxu0
      %v1976 = vadd.f32 0.0, %v1975
      %v1977 = vpop.f32.mrf.mxu0
      %v1978 = vpop.f32.mrf.mxu0
      %v1979 = vadd.f32 0.0, %v1978
      %v1980 = vpop.f32.mrf.mxu0
      %1981 = vmatprep.mubr.bf16.mxu0 0
      %1982 = vmatmul.mubr.bf16.gmra.mxu0 %v1070
      %v1983 = vpop.f32.mrf.mxu0
      %v1984 = vadd.f32 0.0, %v1983
      %v1985 = vpop.f32.mrf.mxu0
      %v1986 = vpop.f32.mrf.mxu0
      %v1987 = vadd.f32 0.0, %v1986
      %v1988 = vpop.f32.mrf.mxu0
      %1989 = vmatprep.mubr.bf16.mxu0 0
      %1990 = vmatmul.mubr.bf16.gmra.mxu0 %v1073
      %v1991 = vpop.f32.mrf.mxu0
      %v1992 = vadd.f32 0.0, %v1991
      %v1993 = vpop.f32.mrf.mxu0
      %v1994 = vpop.f32.mrf.mxu0
      %v1995 = vadd.f32 0.0, %v1994
      %v1996 = vpop.f32.mrf.mxu0
      %1997 = vmatprep.mubr.bf16.mxu0 0
      %1998 = vmatmul.mubr.bf16.gmra.mxu0 %v1076
      %v1999 = vpop.f32.mrf.mxu0
      %v2000 = vadd.f32 0.0, %v1999
      %v2001 = vpop.f32.mrf.mxu0
      %v2002 = vpop.f32.mrf.mxu0
      %v2003 = vadd.f32 0.0, %v2002
      %v2004 = vpop.f32.mrf.mxu0
      %2005 = vmatprep.mubr.bf16.mxu0 0
      %2006 = vmatmul.mubr.bf16.gmra.mxu0 %v1502
      %v2007 = vpop.f32.mrf.mxu0
      %v2008 = vadd.f32 0.0, %v2007
      %v2009 = vpop.f32.mrf.mxu0
      %v2010 = vpop.f32.mrf.mxu0
      %v2011 = vadd.f32 0.0, %v2010
      %v2012 = vpop.f32.mrf.mxu0
      %2013 = vmatprep.mubr.bf16.mxu0 0
      %2014 = vmatmul.mubr.bf16.gmra.mxu0 %v1928
      %v2015 = vpop.f32.mrf.mxu0
      %v2016 = vadd.f32 0.0, %v2015
      %v2017 = vpop.f32.mrf.mxu0
      %v2018 = vpop.f32.mrf.mxu0
      %v2019 = vadd.f32 0.0, %v2018
      %v2020 = vpop.f32.mrf.mxu0
      %2021 = vmatprep.mubr.bf16.mxu0 0
      %2022 = vmatmul.mubr.bf16.gmra.mxu0 %v1931
      %v2023 = vpop.f32.mrf.mxu0
      %v2024 = vadd.f32 0.0, %v2023
      %v2025 = vpop.f32.mrf.mxu0
      %v2026 = vpop.f32.mrf.mxu0
      %v2027 = vadd.f32 0.0, %v2026
      %v2028 = vpop.f32.mrf.mxu0
      %2029 = vdwg.mxu0
      %v2030 = vadd.f32 %v1879, %v1968
      %v2031 = vadd.f32 %v1880, %v1971
      %v2032 = vadd.f32 %v1881, %v1976
      %v2033 = vadd.f32 %v1882, %v1979
      %v2034 = vadd.f32 %v1883, %v1984
      %v2035 = vadd.f32 %v1884, %v1987
      %v2036 = vadd.f32 %v1885, %v1992
      %v2037 = vadd.f32 %v1886, %v1995
      %v2038 = vadd.f32 %v1887, %v2000
      %v2039 = vadd.f32 %v1888, %v2003
      %v2040 = vadd.f32 %v1889, %v2008
      %v2041 = vadd.f32 %v1890, %v2011
      %v2042 = vadd.f32 %v1891, %v2016
      %v2043 = vadd.f32 %v1892, %v2019
      %v2044 = vadd.f32 %v1893, %v2024
      %v2045 = vadd.f32 %v1894, %v2027
      %v2046 = vld [vmem:[%s4] sm:$0x1]
      %v2048 = vlaneseq
      %v2049 = vshrl.u32 %v2048, 7
      %v2050 = vsub.s32 0, %v2049
      %v2051 = vrot.slane %v2046, %v2050
      %v2053 = vadd.f32 %v2030, %v2051
      %v2054 = vadd.f32 %v2031, %v2051
      %v2055 = vadd.f32 %v2032, %v2051
      %v2056 = vadd.f32 %v2033, %v2051
      %v2057 = vadd.f32 %v2034, %v2051
      %v2058 = vadd.f32 %v2035, %v2051
      %v2059 = vadd.f32 %v2036, %v2051
      %v2060 = vadd.f32 %v2037, %v2051
      %v2061 = vadd.f32 %v2038, %v2051
      %v2062 = vadd.f32 %v2039, %v2051
      %v2063 = vadd.f32 %v2040, %v2051
      %v2064 = vadd.f32 %v2041, %v2051
      %v2065 = vadd.f32 %v2042, %v2051
      %v2066 = vadd.f32 %v2043, %v2051
      %v2067 = vadd.f32 %v2044, %v2051
      %v2068 = vadd.f32 %v2045, %v2051
      %vm2069 = vcmask 64512
      %2070 = vst.msk [vmem:[%s260] sm:$0xff] %vm2069, %v2053
      %2071 = vst.msk [vmem:[%s260 + $0x8] sm:$0xff] %vm2069, %v2054
      %2072 = vst.msk [vmem:[%s260 + $0x10] sm:$0xff] %vm2069, %v2055
      %2073 = vst.msk [vmem:[%s260 + $0x18] sm:$0xff] %vm2069, %v2056
      %2074 = vst.msk [vmem:[%s260 + $0x20] sm:$0xff] %vm2069, %v2057
      %2075 = vst.msk [vmem:[%s260 + $0x28] sm:$0xff] %vm2069, %v2058
      %2076 = vst.msk [vmem:[%s260 + $0x30] sm:$0xff] %vm2069, %v2059
      %2077 = vst.msk [vmem:[%s260 + $0x38] sm:$0xff] %vm2069, %v2060
      %2078 = vst.msk [vmem:[%s260 + $0x40] sm:$0xff] %vm2069, %v2061
      %2079 = vst.msk [vmem:[%s260 + $0x48] sm:$0xff] %vm2069, %v2062
      %2080 = vst.msk [vmem:[%s260 + $0x50] sm:$0xff] %vm2069, %v2063
      %2081 = vst.msk [vmem:[%s260 + $0x58] sm:$0xff] %vm2069, %v2064
      %2082 = vst.msk [vmem:[%s260 + $0x60] sm:$0xff] %vm2069, %v2065
      %2083 = vst.msk [vmem:[%s260 + $0x68] sm:$0xff] %vm2069, %v2066
      %2084 = vst.msk [vmem:[%s260 + $0x70] sm:$0xff] %vm2069, %v2067
      %2085 = vst.msk [vmem:[%s260 + $0x78] sm:$0xff] %vm2069, %v2068
      %p2086 = scmp.lt.s32.totalorder %s20, 1
      %s2087 = scalar_select %p2086, %s20, 1
      %p2088 = scmp.lt.s32.totalorder %s21, 1
      %s2089 = scalar_select %p2088, %s21, 1
      %s2090 = smul.addr %s2089, 16
      %s2091 = smul.addr %s2087, 32
      %s2092 = sadd.s32 %s2090, %s2091
      %s2093 = smul.addr %s2092, 8
      %s2094 = scalar_lea.vmem %s5, %s2093
      // Predicated region
      $region41: #{mlp_forward.3} parent=39 // pred_check
        %p2095 = pneg %p160
      $region42: #{mlp_forward.3} parent=39 // pred_check_branch
        %2097 = sbr.rel (%p2095) target = $region44
      $region43: #{mlp_forward.3} parent=39 // pred_region
        _
      $region44: #{mlp_forward.3} parent=39 // pred_fallthru
        _
    $region40: #{mlp_forward.3} parent=5 // pred_fallthru
      _
    %p2098 = scmp.le.s32.totalorder 2, %s11
    // Predicated region
    $region45: #{mlp_forward.3} parent=5 // pred_check
      %p2099 = pneg %p2098
    $region46: #{mlp_forward.3} parent=5 // pred_check_branch
      %2101 = sbr.rel (%p2099) target = $region48
    $region47: #{mlp_forward.3} parent=5 // pred_region
      %s2102 = ssub.s32 %s11, 2
      // Predicated region
      $region49: #{mlp_forward.3} parent=47 // pred_check
        %p2103 = pneg %p166
      $region50: #{mlp_forward.3} parent=47 // pred_check_branch
        %2105 = sbr.rel (%p2103) target = $region52
      $region51: #{mlp_forward.3} parent=47 // pred_region
        %p2106 = scmp.lt.s32.totalorder %s22, 1
        %s2107 = scalar_select %p2106, %s22, 1
        %p2108 = scmp.lt.s32.totalorder %s23, 1
        %s2109 = scalar_select %p2108, %s23, 1
        %s2110 = smul.addr %s2109, 16
        %s2111 = smul.addr %s2107, 32
        %s2112 = sadd.s32 %s2110, %s2111
        %s2113 = smul.addr %s2112, 8
        %s2114 = scalar_lea.vmem %s5, %s2113
      $region52: #{mlp_forward.3} parent=47 // pred_fallthru
        _
    $region48: #{mlp_forward.3} parent=5 // pred_fallthru
      _
  $region6: #{mlp_forward.3} parent=0 // loop_footer
    %s15 = sadd.s32 1, %s11
  $region7: #{mlp_forward.3} parent=0 // loop_footer_branch
    %10 = sbr.rel target = $region3
  $region8: #{mlp_forward.3} parent=0 // loop_exit
    _

</llo_original>
